<compile_context>
chip_gen: v7x
topology: tpu7x:2x2x1
jax: 0.10.0
libtpu: 0.0.40
codegen_flags: <defaults>
</compile_context>

<pallas_src>
import math
import numpy as np

import jax
import jax.numpy as jnp
from jax.experimental import pallas as pl
from jax.experimental.pallas import tpu as pltpu

# ----- constants from the PyTorch module -----
N_QUBITS = 9
N_A_QUBITS = 1
Q_DEPTH = 6
N_GENERATORS = 48
DIM = 2 ** N_QUBITS                      # 512 amplitudes
PATCH = 2 ** (N_QUBITS - N_A_QUBITS)     # 256 output patch size per generator
N_ANGLES = Q_DEPTH * N_QUBITS            # 54 effective angles per row
ROWS = 16                                # (batch, generator) rows per tile (full sublanes)


# --------------------------- Pallas kernel ---------------------------------

def _patch_kernel(cos_ref, sin_ref, out_ref):
    """cos_ref/sin_ref: (ROWS, 54) f32 per-row cos/sin of theta/2.
    out_ref: (ROWS, 256) normalized patch per row."""
    lane = jax.lax.broadcasted_iota(jnp.int32, (1, DIM), 1)      # (1, 512)

    # Fused CZ ladder: sign[i] = (-1)^(# adjacent bit pairs both 1 in i).
    pairs = lane & (lane >> 1)
    par = pairs ^ (pairs >> 4)
    par = par ^ (par >> 2)
    par = par ^ (par >> 1)
    sign_cz = jnp.where((par & 1) == 1, -1.0, 1.0).astype(jnp.float32)   # (1, 512)

    # Per-wire bit masks, reused across all layers (wire 0 == MSB of lane index).
    bits = [((lane >> (N_QUBITS - 1 - q)) & 1) == 1 for q in range(N_QUBITS)]

    cos_v = cos_ref[...]                                          # (ROWS, 54)
    sin_v = sin_ref[...]

    # Layer 0: embedding RY + first weight RY layer merged -> product state.
    state = jnp.where(bits[0], sin_v[:, 0:1], cos_v[:, 0:1])
    for q in range(1, N_QUBITS):
        state = state * jnp.where(bits[q], sin_v[:, q:q + 1], cos_v[:, q:q + 1])
    state = state * sign_cz                                       # CZ ladder, layer 0

    # Layers 1..Q_DEPTH-1: 9 RY gates + fused CZ ladder (skipped on last layer:
    # a diagonal +/-1 sign does not affect probs = state^2).
    col = N_QUBITS
    for d in range(1, Q_DEPTH):
        for q in range(N_QUBITS):
            c = cos_v[:, col:col + 1]                             # (ROWS, 1)
            s = sin_v[:, col:col + 1]
            col += 1
            stride = 1 << (N_QUBITS - 1 - q)
            p_plus = pltpu.roll(state, DIM - stride, axis=1)      # state[i + stride]
            p_minus = pltpu.roll(state, stride, axis=1)           # state[i - stride]
            partner_signed = jnp.where(bits[q], p_minus, -p_plus)
            state = c * state + s * partner_signed
        if d < Q_DEPTH - 1:
            state = state * sign_cz

    # partial_measure: probs[:256] / max(probs[:256])
    # (the /sum(probs) of the original cancels exactly against the /max step).
    probs = state * state                                         # (ROWS, 512)
    p0 = probs[:, :PATCH]                                         # (ROWS, 256)
    m = jnp.max(p0, axis=1, keepdims=True)                        # (ROWS, 1)
    out_ref[...] = (p0 * pl.reciprocal(m, approx=False)).astype(out_ref.dtype)


@jax.jit
def patch_quantum_generator(x, q_params):
    """x: (B, n_qubits) f32 noise; q_params: (n_generators, q_depth*n_qubits) f32."""
    B = x.shape[0]
    x = x.astype(jnp.float32)
    w = q_params.reshape(N_GENERATORS, Q_DEPTH, N_QUBITS).astype(jnp.float32)

    R = B * N_GENERATORS                     # one row per (batch, generator) pair
    # Row r = (b, g) with b = r // G, g = r % G  (batch-major rows -> no transpose).
    # Layer-0 effective angle = noise + first weight layer (same-axis RYs add).
    ang0 = x[:, None, :] + w[None, :, 0, :]                         # (B, G, 9)
    angw = jnp.broadcast_to(w[None, :, 1:, :],
                            (B, N_GENERATORS, Q_DEPTH - 1, N_QUBITS))
    angles = jnp.concatenate(
        [ang0, angw.reshape(B, N_GENERATORS, (Q_DEPTH - 1) * N_QUBITS)], axis=-1)
    angles = angles.reshape(R, N_ANGLES)                            # (R, 54)
    half = angles * 0.5
    cos_all = jnp.cos(half)
    sin_all = jnp.sin(half)

    # Pad rows to a multiple of ROWS (dummy rows: cos=1, sin=0 -> state |0..0>).
    R_pad = ((R + ROWS - 1) // ROWS) * ROWS
    if R_pad != R:
        pad = R_pad - R
        cos_all = jnp.concatenate(
            [cos_all, jnp.ones((pad, N_ANGLES), jnp.float32)], axis=0)
        sin_all = jnp.concatenate(
            [sin_all, jnp.zeros((pad, N_ANGLES), jnp.float32)], axis=0)

    n_tiles = R_pad // ROWS
    rows = pl.pallas_call(
        _patch_kernel,
        out_shape=jax.ShapeDtypeStruct((R_pad, PATCH), jnp.float32),
        grid_spec=pltpu.PrefetchScalarGridSpec(
            num_scalar_prefetch=0,
            grid=(n_tiles,),
            in_specs=[
                pl.BlockSpec((ROWS, N_ANGLES), lambda t: (t, 0)),
                pl.BlockSpec((ROWS, N_ANGLES), lambda t: (t, 0)),
            ],
            out_specs=pl.BlockSpec((ROWS, PATCH), lambda t: (t, 0)),
        ),
        compiler_params=pltpu.CompilerParams(
            dimension_semantics=("parallel",)),
    )(cos_all, sin_all)

    rows = rows[:R]
    # Batch-major rows: (B*G, 256) -> (B, G*256) matches torch.cat(..., dim=1).
    return rows.reshape(B, N_GENERATORS * PATCH)


# --------------------------- pure-JAX reference -----------------------------

@jax.jit
def _ref_circuit(noise, w):
    """noise: (9,), w: (6, 9) -> normalized patch (256,). Independent tensor-form sim."""
    state = jnp.zeros((2,) * N_QUBITS, jnp.float32).at[(0,) * N_QUBITS].set(1.0)

    def ry(state, q, theta):
        c = jnp.cos(theta * 0.5)
        s = jnp.sin(theta * 0.5)
        s0 = jax.lax.index_in_dim(state, 0, q, keepdims=False)
        s1 = jax.lax.index_in_dim(state, 1, q, keepdims=False)
        return jnp.stack([c * s0 - s * s1, s * s0 + c * s1], axis=q)

    def cz(state, q):
        idx = [slice(None)] * N_QUBITS
        idx[q] = 1
        idx[q + 1] = 1
        return state.at[tuple(idx)].multiply(-1.0)

    for q in range(N_QUBITS):
        state = ry(state, q, noise[q])
    for d in range(Q_DEPTH):
        for q in range(N_QUBITS):
            state = ry(state, q, w[d, q])
        for q in range(N_QUBITS - 1):
            state = cz(state, q)

    probs = (state * state).reshape(-1)              # wire 0 is MSB (PennyLane order)
    p0 = probs[:PATCH] / jnp.sum(probs)
    return p0 / jnp.max(p0)


def ref_forward(x, q_params):
    w = q_params.reshape(N_GENERATORS, Q_DEPTH, N_QUBITS)
    cols = []
    for g in range(N_GENERATORS):
        rows = [_ref_circuit(x[b], w[g]) for b in range(x.shape[0])]
        cols.append(jnp.stack(rows, axis=0))
    return jnp.concatenate(cols, axis=1)


# ------------------------------- main ---------------------------------------

if __name__ == "__main__":
    key = jax.random.PRNGKey(0)
    k_x, k_w = jax.random.split(key)

    B = 2
    # noise angles in [0, pi/2), as in the original patch-GAN setup
    x = jax.random.uniform(k_x, (B, N_QUBITS), jnp.float32, 0.0, math.pi / 2)
    # q_delta * torch.rand(q_depth * n_qubits) per generator, q_delta = 1
    q_params = jax.random.uniform(k_w, (N_GENERATORS, Q_DEPTH * N_QUBITS), jnp.float32)

    out = patch_quantum_generator(x, q_params)
    out = jax.block_until_ready(out)
    assert out.shape == (B, N_GENERATORS * PATCH)

    ref = jax.block_until_ready(ref_forward(x, q_params))
    np.testing.assert_allclose(np.asarray(out), np.asarray(ref), rtol=1e-3, atol=1e-4)

    # TODO(synk): parameter-shift gradients (training path) are not implemented; forward only.
    print("KERNEL_OK")
</pallas_src>

<mosaic_0001>
module attributes {stable_mosaic.version = 11 : i64} {
  func.func @_patch_kernel(%arg0: i32, %arg1: memref<16x54xf32, #tpu.memory_space<vmem>>, %arg2: memref<16x54xf32, #tpu.memory_space<vmem>>, %arg3: memref<16x256xf32, #tpu.memory_space<vmem>>) attributes {dimension_semantics = [#tpu.dimension_semantics<parallel>], iteration_bounds = array<i64: 6>, scalar_prefetch = 0 : i64, scratch_operands = 0 : i64, tpu.core_type = #tpu.core_type<tc>, window_params = [{transform_indices = @transform_0, window_bounds = array<i64: 16, 54>}, {transform_indices = @transform_1, window_bounds = array<i64: 16, 54>}, {transform_indices = @transform_2, window_bounds = array<i64: 16, 256>}]} {
    %0 = tpu.iota {dimensions = array<i32: 1>} : vector<1x512xi32>
    %c1_i32 = arith.constant 1 : i32
    %1 = vector.broadcast %c1_i32 : i32 to vector<1x512xi32>
    %2 = arith.shrsi %0, %1 : vector<1x512xi32>
    %3 = arith.andi %0, %2 : vector<1x512xi32>
    %c4_i32 = arith.constant 4 : i32
    %4 = vector.broadcast %c4_i32 : i32 to vector<1x512xi32>
    %5 = arith.shrsi %3, %4 : vector<1x512xi32>
    %6 = arith.xori %3, %5 : vector<1x512xi32>
    %c2_i32 = arith.constant 2 : i32
    %7 = vector.broadcast %c2_i32 : i32 to vector<1x512xi32>
    %8 = arith.shrsi %6, %7 : vector<1x512xi32>
    %9 = arith.xori %6, %8 : vector<1x512xi32>
    %c1_i32_0 = arith.constant 1 : i32
    %10 = vector.broadcast %c1_i32_0 : i32 to vector<1x512xi32>
    %11 = arith.shrsi %9, %10 : vector<1x512xi32>
    %12 = arith.xori %9, %11 : vector<1x512xi32>
    %c1_i32_1 = arith.constant 1 : i32
    %13 = vector.broadcast %c1_i32_1 : i32 to vector<1x512xi32>
    %14 = arith.andi %12, %13 : vector<1x512xi32>
    %c1_i32_2 = arith.constant 1 : i32
    %15 = vector.broadcast %c1_i32_2 : i32 to vector<1x512xi32>
    %16 = arith.cmpi eq, %14, %15 : vector<1x512xi32>
    %cst = arith.constant -1.000000e+00 : f32
    %cst_3 = arith.constant 1.000000e+00 : f32
    %17 = vector.broadcast %cst : f32 to vector<1x512xf32>
    %18 = vector.broadcast %cst_3 : f32 to vector<1x512xf32>
    %19 = arith.select %16, %17, %18 : vector<1x512xi1>, vector<1x512xf32>
    %c8_i32 = arith.constant 8 : i32
    %20 = vector.broadcast %c8_i32 : i32 to vector<1x512xi32>
    %21 = arith.shrsi %0, %20 : vector<1x512xi32>
    %c1_i32_4 = arith.constant 1 : i32
    %22 = vector.broadcast %c1_i32_4 : i32 to vector<1x512xi32>
    %23 = arith.andi %21, %22 : vector<1x512xi32>
    %c1_i32_5 = arith.constant 1 : i32
    %24 = vector.broadcast %c1_i32_5 : i32 to vector<1x512xi32>
    %25 = arith.cmpi eq, %23, %24 : vector<1x512xi32>
    %c7_i32 = arith.constant 7 : i32
    %26 = vector.broadcast %c7_i32 : i32 to vector<1x512xi32>
    %27 = arith.shrsi %0, %26 : vector<1x512xi32>
    %c1_i32_6 = arith.constant 1 : i32
    %28 = vector.broadcast %c1_i32_6 : i32 to vector<1x512xi32>
    %29 = arith.andi %27, %28 : vector<1x512xi32>
    %c1_i32_7 = arith.constant 1 : i32
    %30 = vector.broadcast %c1_i32_7 : i32 to vector<1x512xi32>
    %31 = arith.cmpi eq, %29, %30 : vector<1x512xi32>
    %c6_i32 = arith.constant 6 : i32
    %32 = vector.broadcast %c6_i32 : i32 to vector<1x512xi32>
    %33 = arith.shrsi %0, %32 : vector<1x512xi32>
    %c1_i32_8 = arith.constant 1 : i32
    %34 = vector.broadcast %c1_i32_8 : i32 to vector<1x512xi32>
    %35 = arith.andi %33, %34 : vector<1x512xi32>
    %c1_i32_9 = arith.constant 1 : i32
    %36 = vector.broadcast %c1_i32_9 : i32 to vector<1x512xi32>
    %37 = arith.cmpi eq, %35, %36 : vector<1x512xi32>
    %c5_i32 = arith.constant 5 : i32
    %38 = vector.broadcast %c5_i32 : i32 to vector<1x512xi32>
    %39 = arith.shrsi %0, %38 : vector<1x512xi32>
    %c1_i32_10 = arith.constant 1 : i32
    %40 = vector.broadcast %c1_i32_10 : i32 to vector<1x512xi32>
    %41 = arith.andi %39, %40 : vector<1x512xi32>
    %c1_i32_11 = arith.constant 1 : i32
    %42 = vector.broadcast %c1_i32_11 : i32 to vector<1x512xi32>
    %43 = arith.cmpi eq, %41, %42 : vector<1x512xi32>
    %c4_i32_12 = arith.constant 4 : i32
    %44 = vector.broadcast %c4_i32_12 : i32 to vector<1x512xi32>
    %45 = arith.shrsi %0, %44 : vector<1x512xi32>
    %c1_i32_13 = arith.constant 1 : i32
    %46 = vector.broadcast %c1_i32_13 : i32 to vector<1x512xi32>
    %47 = arith.andi %45, %46 : vector<1x512xi32>
    %c1_i32_14 = arith.constant 1 : i32
    %48 = vector.broadcast %c1_i32_14 : i32 to vector<1x512xi32>
    %49 = arith.cmpi eq, %47, %48 : vector<1x512xi32>
    %c3_i32 = arith.constant 3 : i32
    %50 = vector.broadcast %c3_i32 : i32 to vector<1x512xi32>
    %51 = arith.shrsi %0, %50 : vector<1x512xi32>
    %c1_i32_15 = arith.constant 1 : i32
    %52 = vector.broadcast %c1_i32_15 : i32 to vector<1x512xi32>
    %53 = arith.andi %51, %52 : vector<1x512xi32>
    %c1_i32_16 = arith.constant 1 : i32
    %54 = vector.broadcast %c1_i32_16 : i32 to vector<1x512xi32>
    %55 = arith.cmpi eq, %53, %54 : vector<1x512xi32>
    %c2_i32_17 = arith.constant 2 : i32
    %56 = vector.broadcast %c2_i32_17 : i32 to vector<1x512xi32>
    %57 = arith.shrsi %0, %56 : vector<1x512xi32>
    %c1_i32_18 = arith.constant 1 : i32
    %58 = vector.broadcast %c1_i32_18 : i32 to vector<1x512xi32>
    %59 = arith.andi %57, %58 : vector<1x512xi32>
    %c1_i32_19 = arith.constant 1 : i32
    %60 = vector.broadcast %c1_i32_19 : i32 to vector<1x512xi32>
    %61 = arith.cmpi eq, %59, %60 : vector<1x512xi32>
    %c1_i32_20 = arith.constant 1 : i32
    %62 = vector.broadcast %c1_i32_20 : i32 to vector<1x512xi32>
    %63 = arith.shrsi %0, %62 : vector<1x512xi32>
    %c1_i32_21 = arith.constant 1 : i32
    %64 = vector.broadcast %c1_i32_21 : i32 to vector<1x512xi32>
    %65 = arith.andi %63, %64 : vector<1x512xi32>
    %c1_i32_22 = arith.constant 1 : i32
    %66 = vector.broadcast %c1_i32_22 : i32 to vector<1x512xi32>
    %67 = arith.cmpi eq, %65, %66 : vector<1x512xi32>
    %c0_i32 = arith.constant 0 : i32
    %68 = vector.broadcast %c0_i32 : i32 to vector<1x512xi32>
    %69 = arith.shrsi %0, %68 : vector<1x512xi32>
    %c1_i32_23 = arith.constant 1 : i32
    %70 = vector.broadcast %c1_i32_23 : i32 to vector<1x512xi32>
    %71 = arith.andi %69, %70 : vector<1x512xi32>
    %c1_i32_24 = arith.constant 1 : i32
    %72 = vector.broadcast %c1_i32_24 : i32 to vector<1x512xi32>
    %73 = arith.cmpi eq, %71, %72 : vector<1x512xi32>
    %c0 = arith.constant 0 : index
    %c0_25 = arith.constant 0 : index
    %74 = vector.load %arg1[%c0, %c0_25] : memref<16x54xf32, #tpu.memory_space<vmem>>, vector<16x54xf32>
    %c0_26 = arith.constant 0 : index
    %c0_27 = arith.constant 0 : index
    %75 = vector.load %arg2[%c0_26, %c0_27] : memref<16x54xf32, #tpu.memory_space<vmem>>, vector<16x54xf32>
    %76 = vector.extract_strided_slice %75 {offsets = [0, 0], sizes = [16, 1], strides = [1, 1]} : vector<16x54xf32> to vector<16x1xf32>
    %77 = vector.extract_strided_slice %74 {offsets = [0, 0], sizes = [16, 1], strides = [1, 1]} : vector<16x54xf32> to vector<16x1xf32>
    %78 = vector.shape_cast %25 : vector<1x512xi1> to vector<1x512xi1>
    %79 = vector.broadcast %78 : vector<1x512xi1> to vector<16x512xi1>
    %80 = vector.shape_cast %76 : vector<16x1xf32> to vector<16x1xf32>
    %81 = vector.broadcast %80 : vector<16x1xf32> to vector<16x512xf32>
    %82 = vector.shape_cast %77 : vector<16x1xf32> to vector<16x1xf32>
    %83 = vector.broadcast %82 : vector<16x1xf32> to vector<16x512xf32>
    %84 = arith.select %79, %81, %83 : vector<16x512xi1>, vector<16x512xf32>
    %85 = vector.extract_strided_slice %75 {offsets = [0, 1], sizes = [16, 1], strides = [1, 1]} : vector<16x54xf32> to vector<16x1xf32>
    %86 = vector.extract_strided_slice %74 {offsets = [0, 1], sizes = [16, 1], strides = [1, 1]} : vector<16x54xf32> to vector<16x1xf32>
    %87 = vector.shape_cast %31 : vector<1x512xi1> to vector<1x512xi1>
    %88 = vector.broadcast %87 : vector<1x512xi1> to vector<16x512xi1>
    %89 = vector.shape_cast %85 : vector<16x1xf32> to vector<16x1xf32>
    %90 = vector.broadcast %89 : vector<16x1xf32> to vector<16x512xf32>
    %91 = vector.shape_cast %86 : vector<16x1xf32> to vector<16x1xf32>
    %92 = vector.broadcast %91 : vector<16x1xf32> to vector<16x512xf32>
    %93 = arith.select %88, %90, %92 : vector<16x512xi1>, vector<16x512xf32>
    %94 = arith.mulf %84, %93 : vector<16x512xf32>
    %95 = vector.extract_strided_slice %75 {offsets = [0, 2], sizes = [16, 1], strides = [1, 1]} : vector<16x54xf32> to vector<16x1xf32>
    %96 = vector.extract_strided_slice %74 {offsets = [0, 2], sizes = [16, 1], strides = [1, 1]} : vector<16x54xf32> to vector<16x1xf32>
    %97 = vector.shape_cast %37 : vector<1x512xi1> to vector<1x512xi1>
    %98 = vector.broadcast %97 : vector<1x512xi1> to vector<16x512xi1>
    %99 = vector.shape_cast %95 : vector<16x1xf32> to vector<16x1xf32>
    %100 = vector.broadcast %99 : vector<16x1xf32> to vector<16x512xf32>
    %101 = vector.shape_cast %96 : vector<16x1xf32> to vector<16x1xf32>
    %102 = vector.broadcast %101 : vector<16x1xf32> to vector<16x512xf32>
    %103 = arith.select %98, %100, %102 : vector<16x512xi1>, vector<16x512xf32>
    %104 = arith.mulf %94, %103 : vector<16x512xf32>
    %105 = vector.extract_strided_slice %75 {offsets = [0, 3], sizes = [16, 1], strides = [1, 1]} : vector<16x54xf32> to vector<16x1xf32>
    %106 = vector.extract_strided_slice %74 {offsets = [0, 3], sizes = [16, 1], strides = [1, 1]} : vector<16x54xf32> to vector<16x1xf32>
    %107 = vector.shape_cast %43 : vector<1x512xi1> to vector<1x512xi1>
    %108 = vector.broadcast %107 : vector<1x512xi1> to vector<16x512xi1>
    %109 = vector.shape_cast %105 : vector<16x1xf32> to vector<16x1xf32>
    %110 = vector.broadcast %109 : vector<16x1xf32> to vector<16x512xf32>
    %111 = vector.shape_cast %106 : vector<16x1xf32> to vector<16x1xf32>
    %112 = vector.broadcast %111 : vector<16x1xf32> to vector<16x512xf32>
    %113 = arith.select %108, %110, %112 : vector<16x512xi1>, vector<16x512xf32>
    %114 = arith.mulf %104, %113 : vector<16x512xf32>
    %115 = vector.extract_strided_slice %75 {offsets = [0, 4], sizes = [16, 1], strides = [1, 1]} : vector<16x54xf32> to vector<16x1xf32>
    %116 = vector.extract_strided_slice %74 {offsets = [0, 4], sizes = [16, 1], strides = [1, 1]} : vector<16x54xf32> to vector<16x1xf32>
    %117 = vector.shape_cast %49 : vector<1x512xi1> to vector<1x512xi1>
    %118 = vector.broadcast %117 : vector<1x512xi1> to vector<16x512xi1>
    %119 = vector.shape_cast %115 : vector<16x1xf32> to vector<16x1xf32>
    %120 = vector.broadcast %119 : vector<16x1xf32> to vector<16x512xf32>
    %121 = vector.shape_cast %116 : vector<16x1xf32> to vector<16x1xf32>
    %122 = vector.broadcast %121 : vector<16x1xf32> to vector<16x512xf32>
    %123 = arith.select %118, %120, %122 : vector<16x512xi1>, vector<16x512xf32>
    %124 = arith.mulf %114, %123 : vector<16x512xf32>
    %125 = vector.extract_strided_slice %75 {offsets = [0, 5], sizes = [16, 1], strides = [1, 1]} : vector<16x54xf32> to vector<16x1xf32>
    %126 = vector.extract_strided_slice %74 {offsets = [0, 5], sizes = [16, 1], strides = [1, 1]} : vector<16x54xf32> to vector<16x1xf32>
    %127 = vector.shape_cast %55 : vector<1x512xi1> to vector<1x512xi1>
    %128 = vector.broadcast %127 : vector<1x512xi1> to vector<16x512xi1>
    %129 = vector.shape_cast %125 : vector<16x1xf32> to vector<16x1xf32>
    %130 = vector.broadcast %129 : vector<16x1xf32> to vector<16x512xf32>
    %131 = vector.shape_cast %126 : vector<16x1xf32> to vector<16x1xf32>
    %132 = vector.broadcast %131 : vector<16x1xf32> to vector<16x512xf32>
    %133 = arith.select %128, %130, %132 : vector<16x512xi1>, vector<16x512xf32>
    %134 = arith.mulf %124, %133 : vector<16x512xf32>
    %135 = vector.extract_strided_slice %75 {offsets = [0, 6], sizes = [16, 1], strides = [1, 1]} : vector<16x54xf32> to vector<16x1xf32>
    %136 = vector.extract_strided_slice %74 {offsets = [0, 6], sizes = [16, 1], strides = [1, 1]} : vector<16x54xf32> to vector<16x1xf32>
    %137 = vector.shape_cast %61 : vector<1x512xi1> to vector<1x512xi1>
    %138 = vector.broadcast %137 : vector<1x512xi1> to vector<16x512xi1>
    %139 = vector.shape_cast %135 : vector<16x1xf32> to vector<16x1xf32>
    %140 = vector.broadcast %139 : vector<16x1xf32> to vector<16x512xf32>
    %141 = vector.shape_cast %136 : vector<16x1xf32> to vector<16x1xf32>
    %142 = vector.broadcast %141 : vector<16x1xf32> to vector<16x512xf32>
    %143 = arith.select %138, %140, %142 : vector<16x512xi1>, vector<16x512xf32>
    %144 = arith.mulf %134, %143 : vector<16x512xf32>
    %145 = vector.extract_strided_slice %75 {offsets = [0, 7], sizes = [16, 1], strides = [1, 1]} : vector<16x54xf32> to vector<16x1xf32>
    %146 = vector.extract_strided_slice %74 {offsets = [0, 7], sizes = [16, 1], strides = [1, 1]} : vector<16x54xf32> to vector<16x1xf32>
    %147 = vector.shape_cast %67 : vector<1x512xi1> to vector<1x512xi1>
    %148 = vector.broadcast %147 : vector<1x512xi1> to vector<16x512xi1>
    %149 = vector.shape_cast %145 : vector<16x1xf32> to vector<16x1xf32>
    %150 = vector.broadcast %149 : vector<16x1xf32> to vector<16x512xf32>
    %151 = vector.shape_cast %146 : vector<16x1xf32> to vector<16x1xf32>
    %152 = vector.broadcast %151 : vector<16x1xf32> to vector<16x512xf32>
    %153 = arith.select %148, %150, %152 : vector<16x512xi1>, vector<16x512xf32>
    %154 = arith.mulf %144, %153 : vector<16x512xf32>
    %155 = vector.extract_strided_slice %75 {offsets = [0, 8], sizes = [16, 1], strides = [1, 1]} : vector<16x54xf32> to vector<16x1xf32>
    %156 = vector.extract_strided_slice %74 {offsets = [0, 8], sizes = [16, 1], strides = [1, 1]} : vector<16x54xf32> to vector<16x1xf32>
    %157 = vector.shape_cast %73 : vector<1x512xi1> to vector<1x512xi1>
    %158 = vector.broadcast %157 : vector<1x512xi1> to vector<16x512xi1>
    %159 = vector.shape_cast %155 : vector<16x1xf32> to vector<16x1xf32>
    %160 = vector.broadcast %159 : vector<16x1xf32> to vector<16x512xf32>
    %161 = vector.shape_cast %156 : vector<16x1xf32> to vector<16x1xf32>
    %162 = vector.broadcast %161 : vector<16x1xf32> to vector<16x512xf32>
    %163 = arith.select %158, %160, %162 : vector<16x512xi1>, vector<16x512xf32>
    %164 = arith.mulf %154, %163 : vector<16x512xf32>
    %165 = vector.broadcast %19 : vector<1x512xf32> to vector<16x512xf32>
    %166 = arith.mulf %164, %165 : vector<16x512xf32>
    %167 = vector.extract_strided_slice %74 {offsets = [0, 9], sizes = [16, 1], strides = [1, 1]} : vector<16x54xf32> to vector<16x1xf32>
    %168 = vector.extract_strided_slice %75 {offsets = [0, 9], sizes = [16, 1], strides = [1, 1]} : vector<16x54xf32> to vector<16x1xf32>
    %c256_i32 = arith.constant 256 : i32
    %169 = tpu.dynamic_rotate %166 by %c256_i32 dim 1 : vector<16x512xf32>, i32 -> vector<16x512xf32>
    %c256_i32_28 = arith.constant 256 : i32
    %170 = tpu.dynamic_rotate %166 by %c256_i32_28 dim 1 : vector<16x512xf32>, i32 -> vector<16x512xf32>
    %cst_29 = arith.constant 0.000000e+00 : f32
    %171 = vector.broadcast %cst_29 : f32 to vector<16x512xf32>
    %172 = arith.subf %171, %169 : vector<16x512xf32>
    %173 = vector.shape_cast %25 : vector<1x512xi1> to vector<1x512xi1>
    %174 = vector.broadcast %173 : vector<1x512xi1> to vector<16x512xi1>
    %175 = arith.select %174, %170, %172 : vector<16x512xi1>, vector<16x512xf32>
    %176 = vector.broadcast %167 : vector<16x1xf32> to vector<16x512xf32>
    %177 = arith.mulf %176, %166 : vector<16x512xf32>
    %178 = vector.broadcast %168 : vector<16x1xf32> to vector<16x512xf32>
    %179 = arith.mulf %178, %175 : vector<16x512xf32>
    %180 = arith.addf %177, %179 : vector<16x512xf32>
    %181 = vector.extract_strided_slice %74 {offsets = [0, 10], sizes = [16, 1], strides = [1, 1]} : vector<16x54xf32> to vector<16x1xf32>
    %182 = vector.extract_strided_slice %75 {offsets = [0, 10], sizes = [16, 1], strides = [1, 1]} : vector<16x54xf32> to vector<16x1xf32>
    %c384_i32 = arith.constant 384 : i32
    %183 = tpu.dynamic_rotate %180 by %c384_i32 dim 1 : vector<16x512xf32>, i32 -> vector<16x512xf32>
    %c128_i32 = arith.constant 128 : i32
    %184 = tpu.dynamic_rotate %180 by %c128_i32 dim 1 : vector<16x512xf32>, i32 -> vector<16x512xf32>
    %cst_30 = arith.constant 0.000000e+00 : f32
    %185 = vector.broadcast %cst_30 : f32 to vector<16x512xf32>
    %186 = arith.subf %185, %183 : vector<16x512xf32>
    %187 = vector.shape_cast %31 : vector<1x512xi1> to vector<1x512xi1>
    %188 = vector.broadcast %187 : vector<1x512xi1> to vector<16x512xi1>
    %189 = arith.select %188, %184, %186 : vector<16x512xi1>, vector<16x512xf32>
    %190 = vector.broadcast %181 : vector<16x1xf32> to vector<16x512xf32>
    %191 = arith.mulf %190, %180 : vector<16x512xf32>
    %192 = vector.broadcast %182 : vector<16x1xf32> to vector<16x512xf32>
    %193 = arith.mulf %192, %189 : vector<16x512xf32>
    %194 = arith.addf %191, %193 : vector<16x512xf32>
    %195 = vector.extract_strided_slice %74 {offsets = [0, 11], sizes = [16, 1], strides = [1, 1]} : vector<16x54xf32> to vector<16x1xf32>
    %196 = vector.extract_strided_slice %75 {offsets = [0, 11], sizes = [16, 1], strides = [1, 1]} : vector<16x54xf32> to vector<16x1xf32>
    %c448_i32 = arith.constant 448 : i32
    %197 = tpu.dynamic_rotate %194 by %c448_i32 dim 1 : vector<16x512xf32>, i32 -> vector<16x512xf32>
    %c64_i32 = arith.constant 64 : i32
    %198 = tpu.dynamic_rotate %194 by %c64_i32 dim 1 : vector<16x512xf32>, i32 -> vector<16x512xf32>
    %cst_31 = arith.constant 0.000000e+00 : f32
    %199 = vector.broadcast %cst_31 : f32 to vector<16x512xf32>
    %200 = arith.subf %199, %197 : vector<16x512xf32>
    %201 = vector.shape_cast %37 : vector<1x512xi1> to vector<1x512xi1>
    %202 = vector.broadcast %201 : vector<1x512xi1> to vector<16x512xi1>
    %203 = arith.select %202, %198, %200 : vector<16x512xi1>, vector<16x512xf32>
    %204 = vector.broadcast %195 : vector<16x1xf32> to vector<16x512xf32>
    %205 = arith.mulf %204, %194 : vector<16x512xf32>
    %206 = vector.broadcast %196 : vector<16x1xf32> to vector<16x512xf32>
    %207 = arith.mulf %206, %203 : vector<16x512xf32>
    %208 = arith.addf %205, %207 : vector<16x512xf32>
    %209 = vector.extract_strided_slice %74 {offsets = [0, 12], sizes = [16, 1], strides = [1, 1]} : vector<16x54xf32> to vector<16x1xf32>
    %210 = vector.extract_strided_slice %75 {offsets = [0, 12], sizes = [16, 1], strides = [1, 1]} : vector<16x54xf32> to vector<16x1xf32>
    %c480_i32 = arith.constant 480 : i32
    %211 = tpu.dynamic_rotate %208 by %c480_i32 dim 1 : vector<16x512xf32>, i32 -> vector<16x512xf32>
    %c32_i32 = arith.constant 32 : i32
    %212 = tpu.dynamic_rotate %208 by %c32_i32 dim 1 : vector<16x512xf32>, i32 -> vector<16x512xf32>
    %cst_32 = arith.constant 0.000000e+00 : f32
    %213 = vector.broadcast %cst_32 : f32 to vector<16x512xf32>
    %214 = arith.subf %213, %211 : vector<16x512xf32>
    %215 = vector.shape_cast %43 : vector<1x512xi1> to vector<1x512xi1>
    %216 = vector.broadcast %215 : vector<1x512xi1> to vector<16x512xi1>
    %217 = arith.select %216, %212, %214 : vector<16x512xi1>, vector<16x512xf32>
    %218 = vector.broadcast %209 : vector<16x1xf32> to vector<16x512xf32>
    %219 = arith.mulf %218, %208 : vector<16x512xf32>
    %220 = vector.broadcast %210 : vector<16x1xf32> to vector<16x512xf32>
    %221 = arith.mulf %220, %217 : vector<16x512xf32>
    %222 = arith.addf %219, %221 : vector<16x512xf32>
    %223 = vector.extract_strided_slice %74 {offsets = [0, 13], sizes = [16, 1], strides = [1, 1]} : vector<16x54xf32> to vector<16x1xf32>
    %224 = vector.extract_strided_slice %75 {offsets = [0, 13], sizes = [16, 1], strides = [1, 1]} : vector<16x54xf32> to vector<16x1xf32>
    %c496_i32 = arith.constant 496 : i32
    %225 = tpu.dynamic_rotate %222 by %c496_i32 dim 1 : vector<16x512xf32>, i32 -> vector<16x512xf32>
    %c16_i32 = arith.constant 16 : i32
    %226 = tpu.dynamic_rotate %222 by %c16_i32 dim 1 : vector<16x512xf32>, i32 -> vector<16x512xf32>
    %cst_33 = arith.constant 0.000000e+00 : f32
    %227 = vector.broadcast %cst_33 : f32 to vector<16x512xf32>
    %228 = arith.subf %227, %225 : vector<16x512xf32>
    %229 = vector.shape_cast %49 : vector<1x512xi1> to vector<1x512xi1>
    %230 = vector.broadcast %229 : vector<1x512xi1> to vector<16x512xi1>
    %231 = arith.select %230, %226, %228 : vector<16x512xi1>, vector<16x512xf32>
    %232 = vector.broadcast %223 : vector<16x1xf32> to vector<16x512xf32>
    %233 = arith.mulf %232, %222 : vector<16x512xf32>
    %234 = vector.broadcast %224 : vector<16x1xf32> to vector<16x512xf32>
    %235 = arith.mulf %234, %231 : vector<16x512xf32>
    %236 = arith.addf %233, %235 : vector<16x512xf32>
    %237 = vector.extract_strided_slice %74 {offsets = [0, 14], sizes = [16, 1], strides = [1, 1]} : vector<16x54xf32> to vector<16x1xf32>
    %238 = vector.extract_strided_slice %75 {offsets = [0, 14], sizes = [16, 1], strides = [1, 1]} : vector<16x54xf32> to vector<16x1xf32>
    %c504_i32 = arith.constant 504 : i32
    %239 = tpu.dynamic_rotate %236 by %c504_i32 dim 1 : vector<16x512xf32>, i32 -> vector<16x512xf32>
    %c8_i32_34 = arith.constant 8 : i32
    %240 = tpu.dynamic_rotate %236 by %c8_i32_34 dim 1 : vector<16x512xf32>, i32 -> vector<16x512xf32>
    %cst_35 = arith.constant 0.000000e+00 : f32
    %241 = vector.broadcast %cst_35 : f32 to vector<16x512xf32>
    %242 = arith.subf %241, %239 : vector<16x512xf32>
    %243 = vector.shape_cast %55 : vector<1x512xi1> to vector<1x512xi1>
    %244 = vector.broadcast %243 : vector<1x512xi1> to vector<16x512xi1>
    %245 = arith.select %244, %240, %242 : vector<16x512xi1>, vector<16x512xf32>
    %246 = vector.broadcast %237 : vector<16x1xf32> to vector<16x512xf32>
    %247 = arith.mulf %246, %236 : vector<16x512xf32>
    %248 = vector.broadcast %238 : vector<16x1xf32> to vector<16x512xf32>
    %249 = arith.mulf %248, %245 : vector<16x512xf32>
    %250 = arith.addf %247, %249 : vector<16x512xf32>
    %251 = vector.extract_strided_slice %74 {offsets = [0, 15], sizes = [16, 1], strides = [1, 1]} : vector<16x54xf32> to vector<16x1xf32>
    %252 = vector.extract_strided_slice %75 {offsets = [0, 15], sizes = [16, 1], strides = [1, 1]} : vector<16x54xf32> to vector<16x1xf32>
    %c508_i32 = arith.constant 508 : i32
    %253 = tpu.dynamic_rotate %250 by %c508_i32 dim 1 : vector<16x512xf32>, i32 -> vector<16x512xf32>
    %c4_i32_36 = arith.constant 4 : i32
    %254 = tpu.dynamic_rotate %250 by %c4_i32_36 dim 1 : vector<16x512xf32>, i32 -> vector<16x512xf32>
    %cst_37 = arith.constant 0.000000e+00 : f32
    %255 = vector.broadcast %cst_37 : f32 to vector<16x512xf32>
    %256 = arith.subf %255, %253 : vector<16x512xf32>
    %257 = vector.shape_cast %61 : vector<1x512xi1> to vector<1x512xi1>
    %258 = vector.broadcast %257 : vector<1x512xi1> to vector<16x512xi1>
    %259 = arith.select %258, %254, %256 : vector<16x512xi1>, vector<16x512xf32>
    %260 = vector.broadcast %251 : vector<16x1xf32> to vector<16x512xf32>
    %261 = arith.mulf %260, %250 : vector<16x512xf32>
    %262 = vector.broadcast %252 : vector<16x1xf32> to vector<16x512xf32>
    %263 = arith.mulf %262, %259 : vector<16x512xf32>
    %264 = arith.addf %261, %263 : vector<16x512xf32>
    %265 = vector.extract_strided_slice %74 {offsets = [0, 16], sizes = [16, 1], strides = [1, 1]} : vector<16x54xf32> to vector<16x1xf32>
    %266 = vector.extract_strided_slice %75 {offsets = [0, 16], sizes = [16, 1], strides = [1, 1]} : vector<16x54xf32> to vector<16x1xf32>
    %c510_i32 = arith.constant 510 : i32
    %267 = tpu.dynamic_rotate %264 by %c510_i32 dim 1 : vector<16x512xf32>, i32 -> vector<16x512xf32>
    %c2_i32_38 = arith.constant 2 : i32
    %268 = tpu.dynamic_rotate %264 by %c2_i32_38 dim 1 : vector<16x512xf32>, i32 -> vector<16x512xf32>
    %cst_39 = arith.constant 0.000000e+00 : f32
    %269 = vector.broadcast %cst_39 : f32 to vector<16x512xf32>
    %270 = arith.subf %269, %267 : vector<16x512xf32>
    %271 = vector.shape_cast %67 : vector<1x512xi1> to vector<1x512xi1>
    %272 = vector.broadcast %271 : vector<1x512xi1> to vector<16x512xi1>
    %273 = arith.select %272, %268, %270 : vector<16x512xi1>, vector<16x512xf32>
    %274 = vector.broadcast %265 : vector<16x1xf32> to vector<16x512xf32>
    %275 = arith.mulf %274, %264 : vector<16x512xf32>
    %276 = vector.broadcast %266 : vector<16x1xf32> to vector<16x512xf32>
    %277 = arith.mulf %276, %273 : vector<16x512xf32>
    %278 = arith.addf %275, %277 : vector<16x512xf32>
    %279 = vector.extract_strided_slice %74 {offsets = [0, 17], sizes = [16, 1], strides = [1, 1]} : vector<16x54xf32> to vector<16x1xf32>
    %280 = vector.extract_strided_slice %75 {offsets = [0, 17], sizes = [16, 1], strides = [1, 1]} : vector<16x54xf32> to vector<16x1xf32>
    %c511_i32 = arith.constant 511 : i32
    %281 = tpu.dynamic_rotate %278 by %c511_i32 dim 1 : vector<16x512xf32>, i32 -> vector<16x512xf32>
    %c1_i32_40 = arith.constant 1 : i32
    %282 = tpu.dynamic_rotate %278 by %c1_i32_40 dim 1 : vector<16x512xf32>, i32 -> vector<16x512xf32>
    %cst_41 = arith.constant 0.000000e+00 : f32
    %283 = vector.broadcast %cst_41 : f32 to vector<16x512xf32>
    %284 = arith.subf %283, %281 : vector<16x512xf32>
    %285 = vector.shape_cast %73 : vector<1x512xi1> to vector<1x512xi1>
    %286 = vector.broadcast %285 : vector<1x512xi1> to vector<16x512xi1>
    %287 = arith.select %286, %282, %284 : vector<16x512xi1>, vector<16x512xf32>
    %288 = vector.broadcast %279 : vector<16x1xf32> to vector<16x512xf32>
    %289 = arith.mulf %288, %278 : vector<16x512xf32>
    %290 = vector.broadcast %280 : vector<16x1xf32> to vector<16x512xf32>
    %291 = arith.mulf %290, %287 : vector<16x512xf32>
    %292 = arith.addf %289, %291 : vector<16x512xf32>
    %293 = vector.broadcast %19 : vector<1x512xf32> to vector<16x512xf32>
    %294 = arith.mulf %292, %293 : vector<16x512xf32>
    %295 = vector.extract_strided_slice %74 {offsets = [0, 18], sizes = [16, 1], strides = [1, 1]} : vector<16x54xf32> to vector<16x1xf32>
    %296 = vector.extract_strided_slice %75 {offsets = [0, 18], sizes = [16, 1], strides = [1, 1]} : vector<16x54xf32> to vector<16x1xf32>
    %c256_i32_42 = arith.constant 256 : i32
    %297 = tpu.dynamic_rotate %294 by %c256_i32_42 dim 1 : vector<16x512xf32>, i32 -> vector<16x512xf32>
    %c256_i32_43 = arith.constant 256 : i32
    %298 = tpu.dynamic_rotate %294 by %c256_i32_43 dim 1 : vector<16x512xf32>, i32 -> vector<16x512xf32>
    %cst_44 = arith.constant 0.000000e+00 : f32
    %299 = vector.broadcast %cst_44 : f32 to vector<16x512xf32>
    %300 = arith.subf %299, %297 : vector<16x512xf32>
    %301 = vector.shape_cast %25 : vector<1x512xi1> to vector<1x512xi1>
    %302 = vector.broadcast %301 : vector<1x512xi1> to vector<16x512xi1>
    %303 = arith.select %302, %298, %300 : vector<16x512xi1>, vector<16x512xf32>
    %304 = vector.broadcast %295 : vector<16x1xf32> to vector<16x512xf32>
    %305 = arith.mulf %304, %294 : vector<16x512xf32>
    %306 = vector.broadcast %296 : vector<16x1xf32> to vector<16x512xf32>
    %307 = arith.mulf %306, %303 : vector<16x512xf32>
    %308 = arith.addf %305, %307 : vector<16x512xf32>
    %309 = vector.extract_strided_slice %74 {offsets = [0, 19], sizes = [16, 1], strides = [1, 1]} : vector<16x54xf32> to vector<16x1xf32>
    %310 = vector.extract_strided_slice %75 {offsets = [0, 19], sizes = [16, 1], strides = [1, 1]} : vector<16x54xf32> to vector<16x1xf32>
    %c384_i32_45 = arith.constant 384 : i32
    %311 = tpu.dynamic_rotate %308 by %c384_i32_45 dim 1 : vector<16x512xf32>, i32 -> vector<16x512xf32>
    %c128_i32_46 = arith.constant 128 : i32
    %312 = tpu.dynamic_rotate %308 by %c128_i32_46 dim 1 : vector<16x512xf32>, i32 -> vector<16x512xf32>
    %cst_47 = arith.constant 0.000000e+00 : f32
    %313 = vector.broadcast %cst_47 : f32 to vector<16x512xf32>
    %314 = arith.subf %313, %311 : vector<16x512xf32>
    %315 = vector.shape_cast %31 : vector<1x512xi1> to vector<1x512xi1>
    %316 = vector.broadcast %315 : vector<1x512xi1> to vector<16x512xi1>
    %317 = arith.select %316, %312, %314 : vector<16x512xi1>, vector<16x512xf32>
    %318 = vector.broadcast %309 : vector<16x1xf32> to vector<16x512xf32>
    %319 = arith.mulf %318, %308 : vector<16x512xf32>
    %320 = vector.broadcast %310 : vector<16x1xf32> to vector<16x512xf32>
    %321 = arith.mulf %320, %317 : vector<16x512xf32>
    %322 = arith.addf %319, %321 : vector<16x512xf32>
    %323 = vector.extract_strided_slice %74 {offsets = [0, 20], sizes = [16, 1], strides = [1, 1]} : vector<16x54xf32> to vector<16x1xf32>
    %324 = vector.extract_strided_slice %75 {offsets = [0, 20], sizes = [16, 1], strides = [1, 1]} : vector<16x54xf32> to vector<16x1xf32>
    %c448_i32_48 = arith.constant 448 : i32
    %325 = tpu.dynamic_rotate %322 by %c448_i32_48 dim 1 : vector<16x512xf32>, i32 -> vector<16x512xf32>
    %c64_i32_49 = arith.constant 64 : i32
    %326 = tpu.dynamic_rotate %322 by %c64_i32_49 dim 1 : vector<16x512xf32>, i32 -> vector<16x512xf32>
    %cst_50 = arith.constant 0.000000e+00 : f32
    %327 = vector.broadcast %cst_50 : f32 to vector<16x512xf32>
    %328 = arith.subf %327, %325 : vector<16x512xf32>
    %329 = vector.shape_cast %37 : vector<1x512xi1> to vector<1x512xi1>
    %330 = vector.broadcast %329 : vector<1x512xi1> to vector<16x512xi1>
    %331 = arith.select %330, %326, %328 : vector<16x512xi1>, vector<16x512xf32>
    %332 = vector.broadcast %323 : vector<16x1xf32> to vector<16x512xf32>
    %333 = arith.mulf %332, %322 : vector<16x512xf32>
    %334 = vector.broadcast %324 : vector<16x1xf32> to vector<16x512xf32>
    %335 = arith.mulf %334, %331 : vector<16x512xf32>
    %336 = arith.addf %333, %335 : vector<16x512xf32>
    %337 = vector.extract_strided_slice %74 {offsets = [0, 21], sizes = [16, 1], strides = [1, 1]} : vector<16x54xf32> to vector<16x1xf32>
    %338 = vector.extract_strided_slice %75 {offsets = [0, 21], sizes = [16, 1], strides = [1, 1]} : vector<16x54xf32> to vector<16x1xf32>
    %c480_i32_51 = arith.constant 480 : i32
    %339 = tpu.dynamic_rotate %336 by %c480_i32_51 dim 1 : vector<16x512xf32>, i32 -> vector<16x512xf32>
    %c32_i32_52 = arith.constant 32 : i32
    %340 = tpu.dynamic_rotate %336 by %c32_i32_52 dim 1 : vector<16x512xf32>, i32 -> vector<16x512xf32>
    %cst_53 = arith.constant 0.000000e+00 : f32
    %341 = vector.broadcast %cst_53 : f32 to vector<16x512xf32>
    %342 = arith.subf %341, %339 : vector<16x512xf32>
    %343 = vector.shape_cast %43 : vector<1x512xi1> to vector<1x512xi1>
    %344 = vector.broadcast %343 : vector<1x512xi1> to vector<16x512xi1>
    %345 = arith.select %344, %340, %342 : vector<16x512xi1>, vector<16x512xf32>
    %346 = vector.broadcast %337 : vector<16x1xf32> to vector<16x512xf32>
    %347 = arith.mulf %346, %336 : vector<16x512xf32>
    %348 = vector.broadcast %338 : vector<16x1xf32> to vector<16x512xf32>
    %349 = arith.mulf %348, %345 : vector<16x512xf32>
    %350 = arith.addf %347, %349 : vector<16x512xf32>
    %351 = vector.extract_strided_slice %74 {offsets = [0, 22], sizes = [16, 1], strides = [1, 1]} : vector<16x54xf32> to vector<16x1xf32>
    %352 = vector.extract_strided_slice %75 {offsets = [0, 22], sizes = [16, 1], strides = [1, 1]} : vector<16x54xf32> to vector<16x1xf32>
    %c496_i32_54 = arith.constant 496 : i32
    %353 = tpu.dynamic_rotate %350 by %c496_i32_54 dim 1 : vector<16x512xf32>, i32 -> vector<16x512xf32>
    %c16_i32_55 = arith.constant 16 : i32
    %354 = tpu.dynamic_rotate %350 by %c16_i32_55 dim 1 : vector<16x512xf32>, i32 -> vector<16x512xf32>
    %cst_56 = arith.constant 0.000000e+00 : f32
    %355 = vector.broadcast %cst_56 : f32 to vector<16x512xf32>
    %356 = arith.subf %355, %353 : vector<16x512xf32>
    %357 = vector.shape_cast %49 : vector<1x512xi1> to vector<1x512xi1>
    %358 = vector.broadcast %357 : vector<1x512xi1> to vector<16x512xi1>
    %359 = arith.select %358, %354, %356 : vector<16x512xi1>, vector<16x512xf32>
    %360 = vector.broadcast %351 : vector<16x1xf32> to vector<16x512xf32>
    %361 = arith.mulf %360, %350 : vector<16x512xf32>
    %362 = vector.broadcast %352 : vector<16x1xf32> to vector<16x512xf32>
    %363 = arith.mulf %362, %359 : vector<16x512xf32>
    %364 = arith.addf %361, %363 : vector<16x512xf32>
    %365 = vector.extract_strided_slice %74 {offsets = [0, 23], sizes = [16, 1], strides = [1, 1]} : vector<16x54xf32> to vector<16x1xf32>
    %366 = vector.extract_strided_slice %75 {offsets = [0, 23], sizes = [16, 1], strides = [1, 1]} : vector<16x54xf32> to vector<16x1xf32>
    %c504_i32_57 = arith.constant 504 : i32
    %367 = tpu.dynamic_rotate %364 by %c504_i32_57 dim 1 : vector<16x512xf32>, i32 -> vector<16x512xf32>
    %c8_i32_58 = arith.constant 8 : i32
    %368 = tpu.dynamic_rotate %364 by %c8_i32_58 dim 1 : vector<16x512xf32>, i32 -> vector<16x512xf32>
    %cst_59 = arith.constant 0.000000e+00 : f32
    %369 = vector.broadcast %cst_59 : f32 to vector<16x512xf32>
    %370 = arith.subf %369, %367 : vector<16x512xf32>
    %371 = vector.shape_cast %55 : vector<1x512xi1> to vector<1x512xi1>
    %372 = vector.broadcast %371 : vector<1x512xi1> to vector<16x512xi1>
    %373 = arith.select %372, %368, %370 : vector<16x512xi1>, vector<16x512xf32>
    %374 = vector.broadcast %365 : vector<16x1xf32> to vector<16x512xf32>
    %375 = arith.mulf %374, %364 : vector<16x512xf32>
    %376 = vector.broadcast %366 : vector<16x1xf32> to vector<16x512xf32>
    %377 = arith.mulf %376, %373 : vector<16x512xf32>
    %378 = arith.addf %375, %377 : vector<16x512xf32>
    %379 = vector.extract_strided_slice %74 {offsets = [0, 24], sizes = [16, 1], strides = [1, 1]} : vector<16x54xf32> to vector<16x1xf32>
    %380 = vector.extract_strided_slice %75 {offsets = [0, 24], sizes = [16, 1], strides = [1, 1]} : vector<16x54xf32> to vector<16x1xf32>
    %c508_i32_60 = arith.constant 508 : i32
    %381 = tpu.dynamic_rotate %378 by %c508_i32_60 dim 1 : vector<16x512xf32>, i32 -> vector<16x512xf32>
    %c4_i32_61 = arith.constant 4 : i32
    %382 = tpu.dynamic_rotate %378 by %c4_i32_61 dim 1 : vector<16x512xf32>, i32 -> vector<16x512xf32>
    %cst_62 = arith.constant 0.000000e+00 : f32
    %383 = vector.broadcast %cst_62 : f32 to vector<16x512xf32>
    %384 = arith.subf %383, %381 : vector<16x512xf32>
    %385 = vector.shape_cast %61 : vector<1x512xi1> to vector<1x512xi1>
    %386 = vector.broadcast %385 : vector<1x512xi1> to vector<16x512xi1>
    %387 = arith.select %386, %382, %384 : vector<16x512xi1>, vector<16x512xf32>
    %388 = vector.broadcast %379 : vector<16x1xf32> to vector<16x512xf32>
    %389 = arith.mulf %388, %378 : vector<16x512xf32>
    %390 = vector.broadcast %380 : vector<16x1xf32> to vector<16x512xf32>
    %391 = arith.mulf %390, %387 : vector<16x512xf32>
    %392 = arith.addf %389, %391 : vector<16x512xf32>
    %393 = vector.extract_strided_slice %74 {offsets = [0, 25], sizes = [16, 1], strides = [1, 1]} : vector<16x54xf32> to vector<16x1xf32>
    %394 = vector.extract_strided_slice %75 {offsets = [0, 25], sizes = [16, 1], strides = [1, 1]} : vector<16x54xf32> to vector<16x1xf32>
    %c510_i32_63 = arith.constant 510 : i32
    %395 = tpu.dynamic_rotate %392 by %c510_i32_63 dim 1 : vector<16x512xf32>, i32 -> vector<16x512xf32>
    %c2_i32_64 = arith.constant 2 : i32
    %396 = tpu.dynamic_rotate %392 by %c2_i32_64 dim 1 : vector<16x512xf32>, i32 -> vector<16x512xf32>
    %cst_65 = arith.constant 0.000000e+00 : f32
    %397 = vector.broadcast %cst_65 : f32 to vector<16x512xf32>
    %398 = arith.subf %397, %395 : vector<16x512xf32>
    %399 = vector.shape_cast %67 : vector<1x512xi1> to vector<1x512xi1>
    %400 = vector.broadcast %399 : vector<1x512xi1> to vector<16x512xi1>
    %401 = arith.select %400, %396, %398 : vector<16x512xi1>, vector<16x512xf32>
    %402 = vector.broadcast %393 : vector<16x1xf32> to vector<16x512xf32>
    %403 = arith.mulf %402, %392 : vector<16x512xf32>
    %404 = vector.broadcast %394 : vector<16x1xf32> to vector<16x512xf32>
    %405 = arith.mulf %404, %401 : vector<16x512xf32>
    %406 = arith.addf %403, %405 : vector<16x512xf32>
    %407 = vector.extract_strided_slice %74 {offsets = [0, 26], sizes = [16, 1], strides = [1, 1]} : vector<16x54xf32> to vector<16x1xf32>
    %408 = vector.extract_strided_slice %75 {offsets = [0, 26], sizes = [16, 1], strides = [1, 1]} : vector<16x54xf32> to vector<16x1xf32>
    %c511_i32_66 = arith.constant 511 : i32
    %409 = tpu.dynamic_rotate %406 by %c511_i32_66 dim 1 : vector<16x512xf32>, i32 -> vector<16x512xf32>
    %c1_i32_67 = arith.constant 1 : i32
    %410 = tpu.dynamic_rotate %406 by %c1_i32_67 dim 1 : vector<16x512xf32>, i32 -> vector<16x512xf32>
    %cst_68 = arith.constant 0.000000e+00 : f32
    %411 = vector.broadcast %cst_68 : f32 to vector<16x512xf32>
    %412 = arith.subf %411, %409 : vector<16x512xf32>
    %413 = vector.shape_cast %73 : vector<1x512xi1> to vector<1x512xi1>
    %414 = vector.broadcast %413 : vector<1x512xi1> to vector<16x512xi1>
    %415 = arith.select %414, %410, %412 : vector<16x512xi1>, vector<16x512xf32>
    %416 = vector.broadcast %407 : vector<16x1xf32> to vector<16x512xf32>
    %417 = arith.mulf %416, %406 : vector<16x512xf32>
    %418 = vector.broadcast %408 : vector<16x1xf32> to vector<16x512xf32>
    %419 = arith.mulf %418, %415 : vector<16x512xf32>
    %420 = arith.addf %417, %419 : vector<16x512xf32>
    %421 = vector.broadcast %19 : vector<1x512xf32> to vector<16x512xf32>
    %422 = arith.mulf %420, %421 : vector<16x512xf32>
    %423 = vector.extract_strided_slice %74 {offsets = [0, 27], sizes = [16, 1], strides = [1, 1]} : vector<16x54xf32> to vector<16x1xf32>
    %424 = vector.extract_strided_slice %75 {offsets = [0, 27], sizes = [16, 1], strides = [1, 1]} : vector<16x54xf32> to vector<16x1xf32>
    %c256_i32_69 = arith.constant 256 : i32
    %425 = tpu.dynamic_rotate %422 by %c256_i32_69 dim 1 : vector<16x512xf32>, i32 -> vector<16x512xf32>
    %c256_i32_70 = arith.constant 256 : i32
    %426 = tpu.dynamic_rotate %422 by %c256_i32_70 dim 1 : vector<16x512xf32>, i32 -> vector<16x512xf32>
    %cst_71 = arith.constant 0.000000e+00 : f32
    %427 = vector.broadcast %cst_71 : f32 to vector<16x512xf32>
    %428 = arith.subf %427, %425 : vector<16x512xf32>
    %429 = vector.shape_cast %25 : vector<1x512xi1> to vector<1x512xi1>
    %430 = vector.broadcast %429 : vector<1x512xi1> to vector<16x512xi1>
    %431 = arith.select %430, %426, %428 : vector<16x512xi1>, vector<16x512xf32>
    %432 = vector.broadcast %423 : vector<16x1xf32> to vector<16x512xf32>
    %433 = arith.mulf %432, %422 : vector<16x512xf32>
    %434 = vector.broadcast %424 : vector<16x1xf32> to vector<16x512xf32>
    %435 = arith.mulf %434, %431 : vector<16x512xf32>
    %436 = arith.addf %433, %435 : vector<16x512xf32>
    %437 = vector.extract_strided_slice %74 {offsets = [0, 28], sizes = [16, 1], strides = [1, 1]} : vector<16x54xf32> to vector<16x1xf32>
    %438 = vector.extract_strided_slice %75 {offsets = [0, 28], sizes = [16, 1], strides = [1, 1]} : vector<16x54xf32> to vector<16x1xf32>
    %c384_i32_72 = arith.constant 384 : i32
    %439 = tpu.dynamic_rotate %436 by %c384_i32_72 dim 1 : vector<16x512xf32>, i32 -> vector<16x512xf32>
    %c128_i32_73 = arith.constant 128 : i32
    %440 = tpu.dynamic_rotate %436 by %c128_i32_73 dim 1 : vector<16x512xf32>, i32 -> vector<16x512xf32>
    %cst_74 = arith.constant 0.000000e+00 : f32
    %441 = vector.broadcast %cst_74 : f32 to vector<16x512xf32>
    %442 = arith.subf %441, %439 : vector<16x512xf32>
    %443 = vector.shape_cast %31 : vector<1x512xi1> to vector<1x512xi1>
    %444 = vector.broadcast %443 : vector<1x512xi1> to vector<16x512xi1>
    %445 = arith.select %444, %440, %442 : vector<16x512xi1>, vector<16x512xf32>
    %446 = vector.broadcast %437 : vector<16x1xf32> to vector<16x512xf32>
    %447 = arith.mulf %446, %436 : vector<16x512xf32>
    %448 = vector.broadcast %438 : vector<16x1xf32> to vector<16x512xf32>
    %449 = arith.mulf %448, %445 : vector<16x512xf32>
    %450 = arith.addf %447, %449 : vector<16x512xf32>
    %451 = vector.extract_strided_slice %74 {offsets = [0, 29], sizes = [16, 1], strides = [1, 1]} : vector<16x54xf32> to vector<16x1xf32>
    %452 = vector.extract_strided_slice %75 {offsets = [0, 29], sizes = [16, 1], strides = [1, 1]} : vector<16x54xf32> to vector<16x1xf32>
    %c448_i32_75 = arith.constant 448 : i32
    %453 = tpu.dynamic_rotate %450 by %c448_i32_75 dim 1 : vector<16x512xf32>, i32 -> vector<16x512xf32>
    %c64_i32_76 = arith.constant 64 : i32
    %454 = tpu.dynamic_rotate %450 by %c64_i32_76 dim 1 : vector<16x512xf32>, i32 -> vector<16x512xf32>
    %cst_77 = arith.constant 0.000000e+00 : f32
    %455 = vector.broadcast %cst_77 : f32 to vector<16x512xf32>
    %456 = arith.subf %455, %453 : vector<16x512xf32>
    %457 = vector.shape_cast %37 : vector<1x512xi1> to vector<1x512xi1>
    %458 = vector.broadcast %457 : vector<1x512xi1> to vector<16x512xi1>
    %459 = arith.select %458, %454, %456 : vector<16x512xi1>, vector<16x512xf32>
    %460 = vector.broadcast %451 : vector<16x1xf32> to vector<16x512xf32>
    %461 = arith.mulf %460, %450 : vector<16x512xf32>
    %462 = vector.broadcast %452 : vector<16x1xf32> to vector<16x512xf32>
    %463 = arith.mulf %462, %459 : vector<16x512xf32>
    %464 = arith.addf %461, %463 : vector<16x512xf32>
    %465 = vector.extract_strided_slice %74 {offsets = [0, 30], sizes = [16, 1], strides = [1, 1]} : vector<16x54xf32> to vector<16x1xf32>
    %466 = vector.extract_strided_slice %75 {offsets = [0, 30], sizes = [16, 1], strides = [1, 1]} : vector<16x54xf32> to vector<16x1xf32>
    %c480_i32_78 = arith.constant 480 : i32
    %467 = tpu.dynamic_rotate %464 by %c480_i32_78 dim 1 : vector<16x512xf32>, i32 -> vector<16x512xf32>
    %c32_i32_79 = arith.constant 32 : i32
    %468 = tpu.dynamic_rotate %464 by %c32_i32_79 dim 1 : vector<16x512xf32>, i32 -> vector<16x512xf32>
    %cst_80 = arith.constant 0.000000e+00 : f32
    %469 = vector.broadcast %cst_80 : f32 to vector<16x512xf32>
    %470 = arith.subf %469, %467 : vector<16x512xf32>
    %471 = vector.shape_cast %43 : vector<1x512xi1> to vector<1x512xi1>
    %472 = vector.broadcast %471 : vector<1x512xi1> to vector<16x512xi1>
    %473 = arith.select %472, %468, %470 : vector<16x512xi1>, vector<16x512xf32>
    %474 = vector.broadcast %465 : vector<16x1xf32> to vector<16x512xf32>
    %475 = arith.mulf %474, %464 : vector<16x512xf32>
    %476 = vector.broadcast %466 : vector<16x1xf32> to vector<16x512xf32>
    %477 = arith.mulf %476, %473 : vector<16x512xf32>
    %478 = arith.addf %475, %477 : vector<16x512xf32>
    %479 = vector.extract_strided_slice %74 {offsets = [0, 31], sizes = [16, 1], strides = [1, 1]} : vector<16x54xf32> to vector<16x1xf32>
    %480 = vector.extract_strided_slice %75 {offsets = [0, 31], sizes = [16, 1], strides = [1, 1]} : vector<16x54xf32> to vector<16x1xf32>
    %c496_i32_81 = arith.constant 496 : i32
    %481 = tpu.dynamic_rotate %478 by %c496_i32_81 dim 1 : vector<16x512xf32>, i32 -> vector<16x512xf32>
    %c16_i32_82 = arith.constant 16 : i32
    %482 = tpu.dynamic_rotate %478 by %c16_i32_82 dim 1 : vector<16x512xf32>, i32 -> vector<16x512xf32>
    %cst_83 = arith.constant 0.000000e+00 : f32
    %483 = vector.broadcast %cst_83 : f32 to vector<16x512xf32>
    %484 = arith.subf %483, %481 : vector<16x512xf32>
    %485 = vector.shape_cast %49 : vector<1x512xi1> to vector<1x512xi1>
    %486 = vector.broadcast %485 : vector<1x512xi1> to vector<16x512xi1>
    %487 = arith.select %486, %482, %484 : vector<16x512xi1>, vector<16x512xf32>
    %488 = vector.broadcast %479 : vector<16x1xf32> to vector<16x512xf32>
    %489 = arith.mulf %488, %478 : vector<16x512xf32>
    %490 = vector.broadcast %480 : vector<16x1xf32> to vector<16x512xf32>
    %491 = arith.mulf %490, %487 : vector<16x512xf32>
    %492 = arith.addf %489, %491 : vector<16x512xf32>
    %493 = vector.extract_strided_slice %74 {offsets = [0, 32], sizes = [16, 1], strides = [1, 1]} : vector<16x54xf32> to vector<16x1xf32>
    %494 = vector.extract_strided_slice %75 {offsets = [0, 32], sizes = [16, 1], strides = [1, 1]} : vector<16x54xf32> to vector<16x1xf32>
    %c504_i32_84 = arith.constant 504 : i32
    %495 = tpu.dynamic_rotate %492 by %c504_i32_84 dim 1 : vector<16x512xf32>, i32 -> vector<16x512xf32>
    %c8_i32_85 = arith.constant 8 : i32
    %496 = tpu.dynamic_rotate %492 by %c8_i32_85 dim 1 : vector<16x512xf32>, i32 -> vector<16x512xf32>
    %cst_86 = arith.constant 0.000000e+00 : f32
    %497 = vector.broadcast %cst_86 : f32 to vector<16x512xf32>
    %498 = arith.subf %497, %495 : vector<16x512xf32>
    %499 = vector.shape_cast %55 : vector<1x512xi1> to vector<1x512xi1>
    %500 = vector.broadcast %499 : vector<1x512xi1> to vector<16x512xi1>
    %501 = arith.select %500, %496, %498 : vector<16x512xi1>, vector<16x512xf32>
    %502 = vector.broadcast %493 : vector<16x1xf32> to vector<16x512xf32>
    %503 = arith.mulf %502, %492 : vector<16x512xf32>
    %504 = vector.broadcast %494 : vector<16x1xf32> to vector<16x512xf32>
    %505 = arith.mulf %504, %501 : vector<16x512xf32>
    %506 = arith.addf %503, %505 : vector<16x512xf32>
    %507 = vector.extract_strided_slice %74 {offsets = [0, 33], sizes = [16, 1], strides = [1, 1]} : vector<16x54xf32> to vector<16x1xf32>
    %508 = vector.extract_strided_slice %75 {offsets = [0, 33], sizes = [16, 1], strides = [1, 1]} : vector<16x54xf32> to vector<16x1xf32>
    %c508_i32_87 = arith.constant 508 : i32
    %509 = tpu.dynamic_rotate %506 by %c508_i32_87 dim 1 : vector<16x512xf32>, i32 -> vector<16x512xf32>
    %c4_i32_88 = arith.constant 4 : i32
    %510 = tpu.dynamic_rotate %506 by %c4_i32_88 dim 1 : vector<16x512xf32>, i32 -> vector<16x512xf32>
    %cst_89 = arith.constant 0.000000e+00 : f32
    %511 = vector.broadcast %cst_89 : f32 to vector<16x512xf32>
    %512 = arith.subf %511, %509 : vector<16x512xf32>
    %513 = vector.shape_cast %61 : vector<1x512xi1> to vector<1x512xi1>
    %514 = vector.broadcast %513 : vector<1x512xi1> to vector<16x512xi1>
    %515 = arith.select %514, %510, %512 : vector<16x512xi1>, vector<16x512xf32>
    %516 = vector.broadcast %507 : vector<16x1xf32> to vector<16x512xf32>
    %517 = arith.mulf %516, %506 : vector<16x512xf32>
    %518 = vector.broadcast %508 : vector<16x1xf32> to vector<16x512xf32>
    %519 = arith.mulf %518, %515 : vector<16x512xf32>
    %520 = arith.addf %517, %519 : vector<16x512xf32>
    %521 = vector.extract_strided_slice %74 {offsets = [0, 34], sizes = [16, 1], strides = [1, 1]} : vector<16x54xf32> to vector<16x1xf32>
    %522 = vector.extract_strided_slice %75 {offsets = [0, 34], sizes = [16, 1], strides = [1, 1]} : vector<16x54xf32> to vector<16x1xf32>
    %c510_i32_90 = arith.constant 510 : i32
    %523 = tpu.dynamic_rotate %520 by %c510_i32_90 dim 1 : vector<16x512xf32>, i32 -> vector<16x512xf32>
    %c2_i32_91 = arith.constant 2 : i32
    %524 = tpu.dynamic_rotate %520 by %c2_i32_91 dim 1 : vector<16x512xf32>, i32 -> vector<16x512xf32>
    %cst_92 = arith.constant 0.000000e+00 : f32
    %525 = vector.broadcast %cst_92 : f32 to vector<16x512xf32>
    %526 = arith.subf %525, %523 : vector<16x512xf32>
    %527 = vector.shape_cast %67 : vector<1x512xi1> to vector<1x512xi1>
    %528 = vector.broadcast %527 : vector<1x512xi1> to vector<16x512xi1>
    %529 = arith.select %528, %524, %526 : vector<16x512xi1>, vector<16x512xf32>
    %530 = vector.broadcast %521 : vector<16x1xf32> to vector<16x512xf32>
    %531 = arith.mulf %530, %520 : vector<16x512xf32>
    %532 = vector.broadcast %522 : vector<16x1xf32> to vector<16x512xf32>
    %533 = arith.mulf %532, %529 : vector<16x512xf32>
    %534 = arith.addf %531, %533 : vector<16x512xf32>
    %535 = vector.extract_strided_slice %74 {offsets = [0, 35], sizes = [16, 1], strides = [1, 1]} : vector<16x54xf32> to vector<16x1xf32>
    %536 = vector.extract_strided_slice %75 {offsets = [0, 35], sizes = [16, 1], strides = [1, 1]} : vector<16x54xf32> to vector<16x1xf32>
    %c511_i32_93 = arith.constant 511 : i32
    %537 = tpu.dynamic_rotate %534 by %c511_i32_93 dim 1 : vector<16x512xf32>, i32 -> vector<16x512xf32>
    %c1_i32_94 = arith.constant 1 : i32
    %538 = tpu.dynamic_rotate %534 by %c1_i32_94 dim 1 : vector<16x512xf32>, i32 -> vector<16x512xf32>
    %cst_95 = arith.constant 0.000000e+00 : f32
    %539 = vector.broadcast %cst_95 : f32 to vector<16x512xf32>
    %540 = arith.subf %539, %537 : vector<16x512xf32>
    %541 = vector.shape_cast %73 : vector<1x512xi1> to vector<1x512xi1>
    %542 = vector.broadcast %541 : vector<1x512xi1> to vector<16x512xi1>
    %543 = arith.select %542, %538, %540 : vector<16x512xi1>, vector<16x512xf32>
    %544 = vector.broadcast %535 : vector<16x1xf32> to vector<16x512xf32>
    %545 = arith.mulf %544, %534 : vector<16x512xf32>
    %546 = vector.broadcast %536 : vector<16x1xf32> to vector<16x512xf32>
    %547 = arith.mulf %546, %543 : vector<16x512xf32>
    %548 = arith.addf %545, %547 : vector<16x512xf32>
    %549 = vector.broadcast %19 : vector<1x512xf32> to vector<16x512xf32>
    %550 = arith.mulf %548, %549 : vector<16x512xf32>
    %551 = vector.extract_strided_slice %74 {offsets = [0, 36], sizes = [16, 1], strides = [1, 1]} : vector<16x54xf32> to vector<16x1xf32>
    %552 = vector.extract_strided_slice %75 {offsets = [0, 36], sizes = [16, 1], strides = [1, 1]} : vector<16x54xf32> to vector<16x1xf32>
    %c256_i32_96 = arith.constant 256 : i32
    %553 = tpu.dynamic_rotate %550 by %c256_i32_96 dim 1 : vector<16x512xf32>, i32 -> vector<16x512xf32>
    %c256_i32_97 = arith.constant 256 : i32
    %554 = tpu.dynamic_rotate %550 by %c256_i32_97 dim 1 : vector<16x512xf32>, i32 -> vector<16x512xf32>
    %cst_98 = arith.constant 0.000000e+00 : f32
    %555 = vector.broadcast %cst_98 : f32 to vector<16x512xf32>
    %556 = arith.subf %555, %553 : vector<16x512xf32>
    %557 = vector.shape_cast %25 : vector<1x512xi1> to vector<1x512xi1>
    %558 = vector.broadcast %557 : vector<1x512xi1> to vector<16x512xi1>
    %559 = arith.select %558, %554, %556 : vector<16x512xi1>, vector<16x512xf32>
    %560 = vector.broadcast %551 : vector<16x1xf32> to vector<16x512xf32>
    %561 = arith.mulf %560, %550 : vector<16x512xf32>
    %562 = vector.broadcast %552 : vector<16x1xf32> to vector<16x512xf32>
    %563 = arith.mulf %562, %559 : vector<16x512xf32>
    %564 = arith.addf %561, %563 : vector<16x512xf32>
    %565 = vector.extract_strided_slice %74 {offsets = [0, 37], sizes = [16, 1], strides = [1, 1]} : vector<16x54xf32> to vector<16x1xf32>
    %566 = vector.extract_strided_slice %75 {offsets = [0, 37], sizes = [16, 1], strides = [1, 1]} : vector<16x54xf32> to vector<16x1xf32>
    %c384_i32_99 = arith.constant 384 : i32
    %567 = tpu.dynamic_rotate %564 by %c384_i32_99 dim 1 : vector<16x512xf32>, i32 -> vector<16x512xf32>
    %c128_i32_100 = arith.constant 128 : i32
    %568 = tpu.dynamic_rotate %564 by %c128_i32_100 dim 1 : vector<16x512xf32>, i32 -> vector<16x512xf32>
    %cst_101 = arith.constant 0.000000e+00 : f32
    %569 = vector.broadcast %cst_101 : f32 to vector<16x512xf32>
    %570 = arith.subf %569, %567 : vector<16x512xf32>
    %571 = vector.shape_cast %31 : vector<1x512xi1> to vector<1x512xi1>
    %572 = vector.broadcast %571 : vector<1x512xi1> to vector<16x512xi1>
    %573 = arith.select %572, %568, %570 : vector<16x512xi1>, vector<16x512xf32>
    %574 = vector.broadcast %565 : vector<16x1xf32> to vector<16x512xf32>
    %575 = arith.mulf %574, %564 : vector<16x512xf32>
    %576 = vector.broadcast %566 : vector<16x1xf32> to vector<16x512xf32>
    %577 = arith.mulf %576, %573 : vector<16x512xf32>
    %578 = arith.addf %575, %577 : vector<16x512xf32>
    %579 = vector.extract_strided_slice %74 {offsets = [0, 38], sizes = [16, 1], strides = [1, 1]} : vector<16x54xf32> to vector<16x1xf32>
    %580 = vector.extract_strided_slice %75 {offsets = [0, 38], sizes = [16, 1], strides = [1, 1]} : vector<16x54xf32> to vector<16x1xf32>
    %c448_i32_102 = arith.constant 448 : i32
    %581 = tpu.dynamic_rotate %578 by %c448_i32_102 dim 1 : vector<16x512xf32>, i32 -> vector<16x512xf32>
    %c64_i32_103 = arith.constant 64 : i32
    %582 = tpu.dynamic_rotate %578 by %c64_i32_103 dim 1 : vector<16x512xf32>, i32 -> vector<16x512xf32>
    %cst_104 = arith.constant 0.000000e+00 : f32
    %583 = vector.broadcast %cst_104 : f32 to vector<16x512xf32>
    %584 = arith.subf %583, %581 : vector<16x512xf32>
    %585 = vector.shape_cast %37 : vector<1x512xi1> to vector<1x512xi1>
    %586 = vector.broadcast %585 : vector<1x512xi1> to vector<16x512xi1>
    %587 = arith.select %586, %582, %584 : vector<16x512xi1>, vector<16x512xf32>
    %588 = vector.broadcast %579 : vector<16x1xf32> to vector<16x512xf32>
    %589 = arith.mulf %588, %578 : vector<16x512xf32>
    %590 = vector.broadcast %580 : vector<16x1xf32> to vector<16x512xf32>
    %591 = arith.mulf %590, %587 : vector<16x512xf32>
    %592 = arith.addf %589, %591 : vector<16x512xf32>
    %593 = vector.extract_strided_slice %74 {offsets = [0, 39], sizes = [16, 1], strides = [1, 1]} : vector<16x54xf32> to vector<16x1xf32>
    %594 = vector.extract_strided_slice %75 {offsets = [0, 39], sizes = [16, 1], strides = [1, 1]} : vector<16x54xf32> to vector<16x1xf32>
    %c480_i32_105 = arith.constant 480 : i32
    %595 = tpu.dynamic_rotate %592 by %c480_i32_105 dim 1 : vector<16x512xf32>, i32 -> vector<16x512xf32>
    %c32_i32_106 = arith.constant 32 : i32
    %596 = tpu.dynamic_rotate %592 by %c32_i32_106 dim 1 : vector<16x512xf32>, i32 -> vector<16x512xf32>
    %cst_107 = arith.constant 0.000000e+00 : f32
    %597 = vector.broadcast %cst_107 : f32 to vector<16x512xf32>
    %598 = arith.subf %597, %595 : vector<16x512xf32>
    %599 = vector.shape_cast %43 : vector<1x512xi1> to vector<1x512xi1>
    %600 = vector.broadcast %599 : vector<1x512xi1> to vector<16x512xi1>
    %601 = arith.select %600, %596, %598 : vector<16x512xi1>, vector<16x512xf32>
    %602 = vector.broadcast %593 : vector<16x1xf32> to vector<16x512xf32>
    %603 = arith.mulf %602, %592 : vector<16x512xf32>
    %604 = vector.broadcast %594 : vector<16x1xf32> to vector<16x512xf32>
    %605 = arith.mulf %604, %601 : vector<16x512xf32>
    %606 = arith.addf %603, %605 : vector<16x512xf32>
    %607 = vector.extract_strided_slice %74 {offsets = [0, 40], sizes = [16, 1], strides = [1, 1]} : vector<16x54xf32> to vector<16x1xf32>
    %608 = vector.extract_strided_slice %75 {offsets = [0, 40], sizes = [16, 1], strides = [1, 1]} : vector<16x54xf32> to vector<16x1xf32>
    %c496_i32_108 = arith.constant 496 : i32
    %609 = tpu.dynamic_rotate %606 by %c496_i32_108 dim 1 : vector<16x512xf32>, i32 -> vector<16x512xf32>
    %c16_i32_109 = arith.constant 16 : i32
    %610 = tpu.dynamic_rotate %606 by %c16_i32_109 dim 1 : vector<16x512xf32>, i32 -> vector<16x512xf32>
    %cst_110 = arith.constant 0.000000e+00 : f32
    %611 = vector.broadcast %cst_110 : f32 to vector<16x512xf32>
    %612 = arith.subf %611, %609 : vector<16x512xf32>
    %613 = vector.shape_cast %49 : vector<1x512xi1> to vector<1x512xi1>
    %614 = vector.broadcast %613 : vector<1x512xi1> to vector<16x512xi1>
    %615 = arith.select %614, %610, %612 : vector<16x512xi1>, vector<16x512xf32>
    %616 = vector.broadcast %607 : vector<16x1xf32> to vector<16x512xf32>
    %617 = arith.mulf %616, %606 : vector<16x512xf32>
    %618 = vector.broadcast %608 : vector<16x1xf32> to vector<16x512xf32>
    %619 = arith.mulf %618, %615 : vector<16x512xf32>
    %620 = arith.addf %617, %619 : vector<16x512xf32>
    %621 = vector.extract_strided_slice %74 {offsets = [0, 41], sizes = [16, 1], strides = [1, 1]} : vector<16x54xf32> to vector<16x1xf32>
    %622 = vector.extract_strided_slice %75 {offsets = [0, 41], sizes = [16, 1], strides = [1, 1]} : vector<16x54xf32> to vector<16x1xf32>
    %c504_i32_111 = arith.constant 504 : i32
    %623 = tpu.dynamic_rotate %620 by %c504_i32_111 dim 1 : vector<16x512xf32>, i32 -> vector<16x512xf32>
    %c8_i32_112 = arith.constant 8 : i32
    %624 = tpu.dynamic_rotate %620 by %c8_i32_112 dim 1 : vector<16x512xf32>, i32 -> vector<16x512xf32>
    %cst_113 = arith.constant 0.000000e+00 : f32
    %625 = vector.broadcast %cst_113 : f32 to vector<16x512xf32>
    %626 = arith.subf %625, %623 : vector<16x512xf32>
    %627 = vector.shape_cast %55 : vector<1x512xi1> to vector<1x512xi1>
    %628 = vector.broadcast %627 : vector<1x512xi1> to vector<16x512xi1>
    %629 = arith.select %628, %624, %626 : vector<16x512xi1>, vector<16x512xf32>
    %630 = vector.broadcast %621 : vector<16x1xf32> to vector<16x512xf32>
    %631 = arith.mulf %630, %620 : vector<16x512xf32>
    %632 = vector.broadcast %622 : vector<16x1xf32> to vector<16x512xf32>
    %633 = arith.mulf %632, %629 : vector<16x512xf32>
    %634 = arith.addf %631, %633 : vector<16x512xf32>
    %635 = vector.extract_strided_slice %74 {offsets = [0, 42], sizes = [16, 1], strides = [1, 1]} : vector<16x54xf32> to vector<16x1xf32>
    %636 = vector.extract_strided_slice %75 {offsets = [0, 42], sizes = [16, 1], strides = [1, 1]} : vector<16x54xf32> to vector<16x1xf32>
    %c508_i32_114 = arith.constant 508 : i32
    %637 = tpu.dynamic_rotate %634 by %c508_i32_114 dim 1 : vector<16x512xf32>, i32 -> vector<16x512xf32>
    %c4_i32_115 = arith.constant 4 : i32
    %638 = tpu.dynamic_rotate %634 by %c4_i32_115 dim 1 : vector<16x512xf32>, i32 -> vector<16x512xf32>
    %cst_116 = arith.constant 0.000000e+00 : f32
    %639 = vector.broadcast %cst_116 : f32 to vector<16x512xf32>
    %640 = arith.subf %639, %637 : vector<16x512xf32>
    %641 = vector.shape_cast %61 : vector<1x512xi1> to vector<1x512xi1>
    %642 = vector.broadcast %641 : vector<1x512xi1> to vector<16x512xi1>
    %643 = arith.select %642, %638, %640 : vector<16x512xi1>, vector<16x512xf32>
    %644 = vector.broadcast %635 : vector<16x1xf32> to vector<16x512xf32>
    %645 = arith.mulf %644, %634 : vector<16x512xf32>
    %646 = vector.broadcast %636 : vector<16x1xf32> to vector<16x512xf32>
    %647 = arith.mulf %646, %643 : vector<16x512xf32>
    %648 = arith.addf %645, %647 : vector<16x512xf32>
    %649 = vector.extract_strided_slice %74 {offsets = [0, 43], sizes = [16, 1], strides = [1, 1]} : vector<16x54xf32> to vector<16x1xf32>
    %650 = vector.extract_strided_slice %75 {offsets = [0, 43], sizes = [16, 1], strides = [1, 1]} : vector<16x54xf32> to vector<16x1xf32>
    %c510_i32_117 = arith.constant 510 : i32
    %651 = tpu.dynamic_rotate %648 by %c510_i32_117 dim 1 : vector<16x512xf32>, i32 -> vector<16x512xf32>
    %c2_i32_118 = arith.constant 2 : i32
    %652 = tpu.dynamic_rotate %648 by %c2_i32_118 dim 1 : vector<16x512xf32>, i32 -> vector<16x512xf32>
    %cst_119 = arith.constant 0.000000e+00 : f32
    %653 = vector.broadcast %cst_119 : f32 to vector<16x512xf32>
    %654 = arith.subf %653, %651 : vector<16x512xf32>
    %655 = vector.shape_cast %67 : vector<1x512xi1> to vector<1x512xi1>
    %656 = vector.broadcast %655 : vector<1x512xi1> to vector<16x512xi1>
    %657 = arith.select %656, %652, %654 : vector<16x512xi1>, vector<16x512xf32>
    %658 = vector.broadcast %649 : vector<16x1xf32> to vector<16x512xf32>
    %659 = arith.mulf %658, %648 : vector<16x512xf32>
    %660 = vector.broadcast %650 : vector<16x1xf32> to vector<16x512xf32>
    %661 = arith.mulf %660, %657 : vector<16x512xf32>
    %662 = arith.addf %659, %661 : vector<16x512xf32>
    %663 = vector.extract_strided_slice %74 {offsets = [0, 44], sizes = [16, 1], strides = [1, 1]} : vector<16x54xf32> to vector<16x1xf32>
    %664 = vector.extract_strided_slice %75 {offsets = [0, 44], sizes = [16, 1], strides = [1, 1]} : vector<16x54xf32> to vector<16x1xf32>
    %c511_i32_120 = arith.constant 511 : i32
    %665 = tpu.dynamic_rotate %662 by %c511_i32_120 dim 1 : vector<16x512xf32>, i32 -> vector<16x512xf32>
    %c1_i32_121 = arith.constant 1 : i32
    %666 = tpu.dynamic_rotate %662 by %c1_i32_121 dim 1 : vector<16x512xf32>, i32 -> vector<16x512xf32>
    %cst_122 = arith.constant 0.000000e+00 : f32
    %667 = vector.broadcast %cst_122 : f32 to vector<16x512xf32>
    %668 = arith.subf %667, %665 : vector<16x512xf32>
    %669 = vector.shape_cast %73 : vector<1x512xi1> to vector<1x512xi1>
    %670 = vector.broadcast %669 : vector<1x512xi1> to vector<16x512xi1>
    %671 = arith.select %670, %666, %668 : vector<16x512xi1>, vector<16x512xf32>
    %672 = vector.broadcast %663 : vector<16x1xf32> to vector<16x512xf32>
    %673 = arith.mulf %672, %662 : vector<16x512xf32>
    %674 = vector.broadcast %664 : vector<16x1xf32> to vector<16x512xf32>
    %675 = arith.mulf %674, %671 : vector<16x512xf32>
    %676 = arith.addf %673, %675 : vector<16x512xf32>
    %677 = vector.broadcast %19 : vector<1x512xf32> to vector<16x512xf32>
    %678 = arith.mulf %676, %677 : vector<16x512xf32>
    %679 = vector.extract_strided_slice %74 {offsets = [0, 45], sizes = [16, 1], strides = [1, 1]} : vector<16x54xf32> to vector<16x1xf32>
    %680 = vector.extract_strided_slice %75 {offsets = [0, 45], sizes = [16, 1], strides = [1, 1]} : vector<16x54xf32> to vector<16x1xf32>
    %c256_i32_123 = arith.constant 256 : i32
    %681 = tpu.dynamic_rotate %678 by %c256_i32_123 dim 1 : vector<16x512xf32>, i32 -> vector<16x512xf32>
    %c256_i32_124 = arith.constant 256 : i32
    %682 = tpu.dynamic_rotate %678 by %c256_i32_124 dim 1 : vector<16x512xf32>, i32 -> vector<16x512xf32>
    %cst_125 = arith.constant 0.000000e+00 : f32
    %683 = vector.broadcast %cst_125 : f32 to vector<16x512xf32>
    %684 = arith.subf %683, %681 : vector<16x512xf32>
    %685 = vector.shape_cast %25 : vector<1x512xi1> to vector<1x512xi1>
    %686 = vector.broadcast %685 : vector<1x512xi1> to vector<16x512xi1>
    %687 = arith.select %686, %682, %684 : vector<16x512xi1>, vector<16x512xf32>
    %688 = vector.broadcast %679 : vector<16x1xf32> to vector<16x512xf32>
    %689 = arith.mulf %688, %678 : vector<16x512xf32>
    %690 = vector.broadcast %680 : vector<16x1xf32> to vector<16x512xf32>
    %691 = arith.mulf %690, %687 : vector<16x512xf32>
    %692 = arith.addf %689, %691 : vector<16x512xf32>
    %693 = vector.extract_strided_slice %74 {offsets = [0, 46], sizes = [16, 1], strides = [1, 1]} : vector<16x54xf32> to vector<16x1xf32>
    %694 = vector.extract_strided_slice %75 {offsets = [0, 46], sizes = [16, 1], strides = [1, 1]} : vector<16x54xf32> to vector<16x1xf32>
    %c384_i32_126 = arith.constant 384 : i32
    %695 = tpu.dynamic_rotate %692 by %c384_i32_126 dim 1 : vector<16x512xf32>, i32 -> vector<16x512xf32>
    %c128_i32_127 = arith.constant 128 : i32
    %696 = tpu.dynamic_rotate %692 by %c128_i32_127 dim 1 : vector<16x512xf32>, i32 -> vector<16x512xf32>
    %cst_128 = arith.constant 0.000000e+00 : f32
    %697 = vector.broadcast %cst_128 : f32 to vector<16x512xf32>
    %698 = arith.subf %697, %695 : vector<16x512xf32>
    %699 = vector.shape_cast %31 : vector<1x512xi1> to vector<1x512xi1>
    %700 = vector.broadcast %699 : vector<1x512xi1> to vector<16x512xi1>
    %701 = arith.select %700, %696, %698 : vector<16x512xi1>, vector<16x512xf32>
    %702 = vector.broadcast %693 : vector<16x1xf32> to vector<16x512xf32>
    %703 = arith.mulf %702, %692 : vector<16x512xf32>
    %704 = vector.broadcast %694 : vector<16x1xf32> to vector<16x512xf32>
    %705 = arith.mulf %704, %701 : vector<16x512xf32>
    %706 = arith.addf %703, %705 : vector<16x512xf32>
    %707 = vector.extract_strided_slice %74 {offsets = [0, 47], sizes = [16, 1], strides = [1, 1]} : vector<16x54xf32> to vector<16x1xf32>
    %708 = vector.extract_strided_slice %75 {offsets = [0, 47], sizes = [16, 1], strides = [1, 1]} : vector<16x54xf32> to vector<16x1xf32>
    %c448_i32_129 = arith.constant 448 : i32
    %709 = tpu.dynamic_rotate %706 by %c448_i32_129 dim 1 : vector<16x512xf32>, i32 -> vector<16x512xf32>
    %c64_i32_130 = arith.constant 64 : i32
    %710 = tpu.dynamic_rotate %706 by %c64_i32_130 dim 1 : vector<16x512xf32>, i32 -> vector<16x512xf32>
    %cst_131 = arith.constant 0.000000e+00 : f32
    %711 = vector.broadcast %cst_131 : f32 to vector<16x512xf32>
    %712 = arith.subf %711, %709 : vector<16x512xf32>
    %713 = vector.shape_cast %37 : vector<1x512xi1> to vector<1x512xi1>
    %714 = vector.broadcast %713 : vector<1x512xi1> to vector<16x512xi1>
    %715 = arith.select %714, %710, %712 : vector<16x512xi1>, vector<16x512xf32>
    %716 = vector.broadcast %707 : vector<16x1xf32> to vector<16x512xf32>
    %717 = arith.mulf %716, %706 : vector<16x512xf32>
    %718 = vector.broadcast %708 : vector<16x1xf32> to vector<16x512xf32>
    %719 = arith.mulf %718, %715 : vector<16x512xf32>
    %720 = arith.addf %717, %719 : vector<16x512xf32>
    %721 = vector.extract_strided_slice %74 {offsets = [0, 48], sizes = [16, 1], strides = [1, 1]} : vector<16x54xf32> to vector<16x1xf32>
    %722 = vector.extract_strided_slice %75 {offsets = [0, 48], sizes = [16, 1], strides = [1, 1]} : vector<16x54xf32> to vector<16x1xf32>
    %c480_i32_132 = arith.constant 480 : i32
    %723 = tpu.dynamic_rotate %720 by %c480_i32_132 dim 1 : vector<16x512xf32>, i32 -> vector<16x512xf32>
    %c32_i32_133 = arith.constant 32 : i32
    %724 = tpu.dynamic_rotate %720 by %c32_i32_133 dim 1 : vector<16x512xf32>, i32 -> vector<16x512xf32>
    %cst_134 = arith.constant 0.000000e+00 : f32
    %725 = vector.broadcast %cst_134 : f32 to vector<16x512xf32>
    %726 = arith.subf %725, %723 : vector<16x512xf32>
    %727 = vector.shape_cast %43 : vector<1x512xi1> to vector<1x512xi1>
    %728 = vector.broadcast %727 : vector<1x512xi1> to vector<16x512xi1>
    %729 = arith.select %728, %724, %726 : vector<16x512xi1>, vector<16x512xf32>
    %730 = vector.broadcast %721 : vector<16x1xf32> to vector<16x512xf32>
    %731 = arith.mulf %730, %720 : vector<16x512xf32>
    %732 = vector.broadcast %722 : vector<16x1xf32> to vector<16x512xf32>
    %733 = arith.mulf %732, %729 : vector<16x512xf32>
    %734 = arith.addf %731, %733 : vector<16x512xf32>
    %735 = vector.extract_strided_slice %74 {offsets = [0, 49], sizes = [16, 1], strides = [1, 1]} : vector<16x54xf32> to vector<16x1xf32>
    %736 = vector.extract_strided_slice %75 {offsets = [0, 49], sizes = [16, 1], strides = [1, 1]} : vector<16x54xf32> to vector<16x1xf32>
    %c496_i32_135 = arith.constant 496 : i32
    %737 = tpu.dynamic_rotate %734 by %c496_i32_135 dim 1 : vector<16x512xf32>, i32 -> vector<16x512xf32>
    %c16_i32_136 = arith.constant 16 : i32
    %738 = tpu.dynamic_rotate %734 by %c16_i32_136 dim 1 : vector<16x512xf32>, i32 -> vector<16x512xf32>
    %cst_137 = arith.constant 0.000000e+00 : f32
    %739 = vector.broadcast %cst_137 : f32 to vector<16x512xf32>
    %740 = arith.subf %739, %737 : vector<16x512xf32>
    %741 = vector.shape_cast %49 : vector<1x512xi1> to vector<1x512xi1>
    %742 = vector.broadcast %741 : vector<1x512xi1> to vector<16x512xi1>
    %743 = arith.select %742, %738, %740 : vector<16x512xi1>, vector<16x512xf32>
    %744 = vector.broadcast %735 : vector<16x1xf32> to vector<16x512xf32>
    %745 = arith.mulf %744, %734 : vector<16x512xf32>
    %746 = vector.broadcast %736 : vector<16x1xf32> to vector<16x512xf32>
    %747 = arith.mulf %746, %743 : vector<16x512xf32>
    %748 = arith.addf %745, %747 : vector<16x512xf32>
    %749 = vector.extract_strided_slice %74 {offsets = [0, 50], sizes = [16, 1], strides = [1, 1]} : vector<16x54xf32> to vector<16x1xf32>
    %750 = vector.extract_strided_slice %75 {offsets = [0, 50], sizes = [16, 1], strides = [1, 1]} : vector<16x54xf32> to vector<16x1xf32>
    %c504_i32_138 = arith.constant 504 : i32
    %751 = tpu.dynamic_rotate %748 by %c504_i32_138 dim 1 : vector<16x512xf32>, i32 -> vector<16x512xf32>
    %c8_i32_139 = arith.constant 8 : i32
    %752 = tpu.dynamic_rotate %748 by %c8_i32_139 dim 1 : vector<16x512xf32>, i32 -> vector<16x512xf32>
    %cst_140 = arith.constant 0.000000e+00 : f32
    %753 = vector.broadcast %cst_140 : f32 to vector<16x512xf32>
    %754 = arith.subf %753, %751 : vector<16x512xf32>
    %755 = vector.shape_cast %55 : vector<1x512xi1> to vector<1x512xi1>
    %756 = vector.broadcast %755 : vector<1x512xi1> to vector<16x512xi1>
    %757 = arith.select %756, %752, %754 : vector<16x512xi1>, vector<16x512xf32>
    %758 = vector.broadcast %749 : vector<16x1xf32> to vector<16x512xf32>
    %759 = arith.mulf %758, %748 : vector<16x512xf32>
    %760 = vector.broadcast %750 : vector<16x1xf32> to vector<16x512xf32>
    %761 = arith.mulf %760, %757 : vector<16x512xf32>
    %762 = arith.addf %759, %761 : vector<16x512xf32>
    %763 = vector.extract_strided_slice %74 {offsets = [0, 51], sizes = [16, 1], strides = [1, 1]} : vector<16x54xf32> to vector<16x1xf32>
    %764 = vector.extract_strided_slice %75 {offsets = [0, 51], sizes = [16, 1], strides = [1, 1]} : vector<16x54xf32> to vector<16x1xf32>
    %c508_i32_141 = arith.constant 508 : i32
    %765 = tpu.dynamic_rotate %762 by %c508_i32_141 dim 1 : vector<16x512xf32>, i32 -> vector<16x512xf32>
    %c4_i32_142 = arith.constant 4 : i32
    %766 = tpu.dynamic_rotate %762 by %c4_i32_142 dim 1 : vector<16x512xf32>, i32 -> vector<16x512xf32>
    %cst_143 = arith.constant 0.000000e+00 : f32
    %767 = vector.broadcast %cst_143 : f32 to vector<16x512xf32>
    %768 = arith.subf %767, %765 : vector<16x512xf32>
    %769 = vector.shape_cast %61 : vector<1x512xi1> to vector<1x512xi1>
    %770 = vector.broadcast %769 : vector<1x512xi1> to vector<16x512xi1>
    %771 = arith.select %770, %766, %768 : vector<16x512xi1>, vector<16x512xf32>
    %772 = vector.broadcast %763 : vector<16x1xf32> to vector<16x512xf32>
    %773 = arith.mulf %772, %762 : vector<16x512xf32>
    %774 = vector.broadcast %764 : vector<16x1xf32> to vector<16x512xf32>
    %775 = arith.mulf %774, %771 : vector<16x512xf32>
    %776 = arith.addf %773, %775 : vector<16x512xf32>
    %777 = vector.extract_strided_slice %74 {offsets = [0, 52], sizes = [16, 1], strides = [1, 1]} : vector<16x54xf32> to vector<16x1xf32>
    %778 = vector.extract_strided_slice %75 {offsets = [0, 52], sizes = [16, 1], strides = [1, 1]} : vector<16x54xf32> to vector<16x1xf32>
    %c510_i32_144 = arith.constant 510 : i32
    %779 = tpu.dynamic_rotate %776 by %c510_i32_144 dim 1 : vector<16x512xf32>, i32 -> vector<16x512xf32>
    %c2_i32_145 = arith.constant 2 : i32
    %780 = tpu.dynamic_rotate %776 by %c2_i32_145 dim 1 : vector<16x512xf32>, i32 -> vector<16x512xf32>
    %cst_146 = arith.constant 0.000000e+00 : f32
    %781 = vector.broadcast %cst_146 : f32 to vector<16x512xf32>
    %782 = arith.subf %781, %779 : vector<16x512xf32>
    %783 = vector.shape_cast %67 : vector<1x512xi1> to vector<1x512xi1>
    %784 = vector.broadcast %783 : vector<1x512xi1> to vector<16x512xi1>
    %785 = arith.select %784, %780, %782 : vector<16x512xi1>, vector<16x512xf32>
    %786 = vector.broadcast %777 : vector<16x1xf32> to vector<16x512xf32>
    %787 = arith.mulf %786, %776 : vector<16x512xf32>
    %788 = vector.broadcast %778 : vector<16x1xf32> to vector<16x512xf32>
    %789 = arith.mulf %788, %785 : vector<16x512xf32>
    %790 = arith.addf %787, %789 : vector<16x512xf32>
    %791 = vector.extract_strided_slice %74 {offsets = [0, 53], sizes = [16, 1], strides = [1, 1]} : vector<16x54xf32> to vector<16x1xf32>
    %792 = vector.extract_strided_slice %75 {offsets = [0, 53], sizes = [16, 1], strides = [1, 1]} : vector<16x54xf32> to vector<16x1xf32>
    %c511_i32_147 = arith.constant 511 : i32
    %793 = tpu.dynamic_rotate %790 by %c511_i32_147 dim 1 : vector<16x512xf32>, i32 -> vector<16x512xf32>
    %c1_i32_148 = arith.constant 1 : i32
    %794 = tpu.dynamic_rotate %790 by %c1_i32_148 dim 1 : vector<16x512xf32>, i32 -> vector<16x512xf32>
    %cst_149 = arith.constant 0.000000e+00 : f32
    %795 = vector.broadcast %cst_149 : f32 to vector<16x512xf32>
    %796 = arith.subf %795, %793 : vector<16x512xf32>
    %797 = vector.shape_cast %73 : vector<1x512xi1> to vector<1x512xi1>
    %798 = vector.broadcast %797 : vector<1x512xi1> to vector<16x512xi1>
    %799 = arith.select %798, %794, %796 : vector<16x512xi1>, vector<16x512xf32>
    %800 = vector.broadcast %791 : vector<16x1xf32> to vector<16x512xf32>
    %801 = arith.mulf %800, %790 : vector<16x512xf32>
    %802 = vector.broadcast %792 : vector<16x1xf32> to vector<16x512xf32>
    %803 = arith.mulf %802, %799 : vector<16x512xf32>
    %804 = arith.addf %801, %803 : vector<16x512xf32>
    %805 = arith.mulf %804, %804 : vector<16x512xf32>
    %806 = vector.extract_strided_slice %805 {offsets = [0, 0], sizes = [16, 256], strides = [1, 1]} : vector<16x512xf32> to vector<16x256xf32>
    %cst_150 = arith.constant dense<0xFF800000> : vector<16xf32>
    %807 = vector.multi_reduction <maximumf>, %806, %cst_150 [1] : vector<16x256xf32> to vector<16xf32>
    %808 = vector.shape_cast %807 : vector<16xf32> to vector<16x1xf32>
    %809 = tpu.reciprocal %808 : vector<16x1xf32> -> vector<16x1xf32>
    %810 = vector.broadcast %809 : vector<16x1xf32> to vector<16x256xf32>
    %811 = arith.mulf %806, %810 : vector<16x256xf32>
    %c0_151 = arith.constant 0 : index
    %c0_152 = arith.constant 0 : index
    %812 = vector.load %arg3[%c0_151, %c0_152] : memref<16x256xf32, #tpu.memory_space<vmem>>, vector<16x256xf32>
    tpu.vector_store %arg3[%c0_151, %c0_152], %811 {strides = array<i32>} : memref<16x256xf32, #tpu.memory_space<vmem>>, vector<16x256xf32>,
    return
  }
  func.func @transform_0(%arg0: i32) -> (i32, i32) {
    %c0_i32 = arith.constant 0 : i32
    %c0_i32_0 = arith.constant 0 : i32
    return %arg0, %c0_i32 : i32, i32
  }
  func.func @transform_1(%arg0: i32) -> (i32, i32) {
    %c0_i32 = arith.constant 0 : i32
    %c0_i32_0 = arith.constant 0 : i32
    return %arg0, %c0_i32 : i32, i32
  }
  func.func @transform_2(%arg0: i32) -> (i32, i32) {
    %c0_i32 = arith.constant 0 : i32
    %c0_i32_0 = arith.constant 0 : i32
    return %arg0, %c0_i32 : i32, i32
  }
}

</mosaic_0001>

<llo_original>
// kernel: patch_quantum_generator.1
$region0: #{patch_quantum_generator.1}
  #allocation0 [shape = 'u32[]', space=smem, size = 0x4, offset = 0x4, fixed_abs, tag = 'smem constant byte address 0x4 - core index']
  #allocation1 [shape = 'u32[144,128]{1,0:T(1,128)}', space=vmem, size = 0x12000, scoped, tag = 'internal scratch']
  %s0 = inlined_call_operand.vmem [shape: f32[96,54], index: 0, kind: input, shape index: {}]
  %s1 = inlined_call_operand.vmem [shape: f32[96,54], index: 1, kind: input, shape index: {}]
  %s2 = inlined_call_operand.vmem [shape: f32[96,256], index: 2, kind: output, shape index: {}]
  %s3 = sld [smem:[#allocation0]]
  $region41: #{patch_quantum_generator.1} parent=0
    _
  %s5 = ssub.s32 1, %s3
  %s6 = scalar_select 0, %s5, %s3
  loop: start=0, step=1, limit=8
  $region2: #{patch_quantum_generator.1} parent=0 // loop_pre_header
    _
  $region3: #{patch_quantum_generator.1} parent=0 // loop_header
    %s8 = sphi 0, %s12
    %p9 = scmp.ge.s32.totalorder %s8, 8
    %s18 = sphi 0, %s20
    %s21 = sphi 0, %s18
    %s22 = sphi 0, %s21
    %s38 = sphi 0, %s22
    %s44 = sphi 0, %s46
    %s47 = sphi 0, %s44
    %s48 = sphi 0, %s47
    %s64 = sphi 0, %s48
    %s70 = sphi 0, %s72
    %s73 = sphi 0, %s70
    %s74 = sphi 0, %s73
    %s90 = sphi 0, %s74
  $region4: #{patch_quantum_generator.1} parent=0 // loop_header_branch
    %11 = sbr.rel (%p9) target = $region8
  $region5: #{patch_quantum_generator.1} parent=0 // loop_body
    %s13 = ssub.s32 %s8, 1
    %s14 = ssub.s32 %s8, 2
    %s15 = sadd.s32 %s8, 1
    %s16 = ssub.s32 %s8, %s15
    %p17 = scmp.eq.s32.totalorder %s16, 0
    %s19 = sadd.s32 %s18, 1
    %s20 = scalar_select %p17, %s18, %s19
    %p23 = pneg %p17
    %p24 = scmp.eq.s32.totalorder %s8, 5
    %p25 = por %p23, %p24
    %p26 = scmp.ne.s32.totalorder %s18, %s21
    %p27 = scmp.eq.s32.totalorder %s8, 0
    %p28 = por %p26, %p27
    %p29 = scmp.ne.s32.totalorder %s18, %s21
    %p30 = scmp.eq.s32.totalorder %s13, 5
    %p31 = por %p29, %p30
    %p32 = scmp.ne.s32.totalorder %s21, %s22
    %p33 = scmp.eq.s32.totalorder %s13, 0
    %p34 = por %p32, %p33
    %p35 = scmp.ne.s32.totalorder %s21, %s22
    %p36 = scmp.eq.s32.totalorder %s14, 5
    %p37 = por %p35, %p36
    %p39 = scmp.ne.s32.totalorder %s22, %s38
    %p40 = scmp.eq.s32.totalorder %s14, 0
    %p41 = por %p39, %p40
    %s42 = ssub.s32 %s8, %s15
    %p43 = scmp.eq.s32.totalorder %s42, 0
    %s45 = sadd.s32 %s44, 1
    %s46 = scalar_select %p43, %s44, %s45
    %p49 = pneg %p43
    %p50 = scmp.eq.s32.totalorder %s8, 5
    %p51 = por %p49, %p50
    %p52 = scmp.ne.s32.totalorder %s44, %s47
    %p53 = scmp.eq.s32.totalorder %s8, 0
    %p54 = por %p52, %p53
    %p55 = scmp.ne.s32.totalorder %s44, %s47
    %p56 = scmp.eq.s32.totalorder %s13, 5
    %p57 = por %p55, %p56
    %p58 = scmp.ne.s32.totalorder %s47, %s48
    %p59 = scmp.eq.s32.totalorder %s13, 0
    %p60 = por %p58, %p59
    %p61 = scmp.ne.s32.totalorder %s47, %s48
    %p62 = scmp.eq.s32.totalorder %s14, 5
    %p63 = por %p61, %p62
    %p65 = scmp.ne.s32.totalorder %s48, %s64
    %p66 = scmp.eq.s32.totalorder %s14, 0
    %p67 = por %p65, %p66
    %s68 = ssub.s32 %s8, %s15
    %p69 = scmp.eq.s32.totalorder %s68, 0
    %s71 = sadd.s32 %s70, 1
    %s72 = scalar_select %p69, %s70, %s71
    %p75 = pneg %p69
    %p76 = scmp.eq.s32.totalorder %s8, 5
    %p77 = por %p75, %p76
    %p78 = scmp.ne.s32.totalorder %s70, %s73
    %p79 = scmp.eq.s32.totalorder %s8, 0
    %p80 = por %p78, %p79
    %p81 = scmp.ne.s32.totalorder %s70, %s73
    %p82 = scmp.eq.s32.totalorder %s13, 5
    %p83 = por %p81, %p82
    %p84 = scmp.ne.s32.totalorder %s73, %s74
    %p85 = scmp.eq.s32.totalorder %s13, 0
    %p86 = por %p84, %p85
    %p87 = scmp.ne.s32.totalorder %s73, %s74
    %p88 = scmp.eq.s32.totalorder %s14, 5
    %p89 = por %p87, %p88
    %p91 = scmp.ne.s32.totalorder %s74, %s90
    %p92 = scmp.eq.s32.totalorder %s14, 0
    %p93 = por %p91, %p92
    %p94 = scmp.le.s32.totalorder 1, %s8
    %p95 = scmp.lt.s32.totalorder %s8, 7
    %p96 = pnand %p94, %p95
    %p97 = pneg %p96
    // Predicated region
    $region9: #{patch_quantum_generator.1} parent=5 // pred_check
      _
    $region10: #{patch_quantum_generator.1} parent=5 // pred_check_branch
      %99 = sbr.rel (%p96) target = $region12
    $region11: #{patch_quantum_generator.1} parent=5 // pred_region
      %s100 = ssub.s32 %s8, 1
    $region12: #{patch_quantum_generator.1} parent=5 // pred_fallthru
      _
    %p101 = scmp.lt.s32.totalorder %s8, 6
    // Predicated region
    $region13: #{patch_quantum_generator.1} parent=5 // pred_check
      %p102 = pneg %p101
    $region14: #{patch_quantum_generator.1} parent=5 // pred_check_branch
      %104 = sbr.rel (%p102) target = $region16
    $region15: #{patch_quantum_generator.1} parent=5 // pred_region
      // Predicated region
      $region17: #{patch_quantum_generator.1} parent=15 // pred_check
        %p105 = pneg %p28
      $region18: #{patch_quantum_generator.1} parent=15 // pred_check_branch
        %107 = sbr.rel (%p105) target = $region20
      $region19: #{patch_quantum_generator.1} parent=15 // pred_region
        %s108 = smul.u32 2, %s8
        %p109 = scmp.lt.s32.totalorder %s108, 11
        %s110 = scalar_select %p109, %s108, 11
        %s111 = smul.addr %s110, 8
        %s112 = scalar_lea.vmem %s0, %s111
        %s113 = smul.u32 2, %s8
      $region20: #{patch_quantum_generator.1} parent=15 // pred_fallthru
        _
      // Predicated region
      $region21: #{patch_quantum_generator.1} parent=15 // pred_check
        %p114 = pneg %p54
      $region22: #{patch_quantum_generator.1} parent=15 // pred_check_branch
        %116 = sbr.rel (%p114) target = $region24
      $region23: #{patch_quantum_generator.1} parent=15 // pred_region
        %s117 = smul.u32 2, %s8
        %p118 = scmp.lt.s32.totalorder %s117, 11
        %s119 = scalar_select %p118, %s117, 11
        %s120 = smul.addr %s119, 8
        %s121 = scalar_lea.vmem %s1, %s120
        %s122 = smul.u32 2, %s8
      $region24: #{patch_quantum_generator.1} parent=15 // pred_fallthru
        _
    $region16: #{patch_quantum_generator.1} parent=5 // pred_fallthru
      _
    %p123 = scmp.le.s32.totalorder 1, %s8
    %p124 = scmp.lt.s32.totalorder %s8, 7
    %p125 = pnand %p123, %p124
    %p126 = pneg %p125
    // Predicated region
    $region25: #{patch_quantum_generator.1} parent=5 // pred_check
      _
    $region26: #{patch_quantum_generator.1} parent=5 // pred_check_branch
      %128 = sbr.rel (%p125) target = $region28
    $region27: #{patch_quantum_generator.1} parent=5 // pred_region
      %s129 = ssub.s32 %s8, 1
      %s130 = smul.u32 2, %s13
      %p131 = scmp.lt.s32.totalorder %s130, 11
      %s132 = scalar_select %p131, %s130, 11
      %s133 = smul.addr %s132, 8
      %s134 = scalar_lea.vmem %s0, %s133
      %p135 = pneg %p34
      %p136 = pneg %p31
      %s137 = smul.u32 2, %s13
      %p138 = scmp.lt.s32.totalorder %s137, 11
      %s139 = scalar_select %p138, %s137, 11
      %s140 = smul.addr %s139, 8
      %s141 = scalar_lea.vmem %s1, %s140
      %p142 = pneg %p60
      %p143 = pneg %p57
      %p144 = pneg %p86
      %p145 = pneg %p83
      %s146 = smul.u32 2, %s13
      %p147 = scmp.lt.s32.totalorder %s146, 11
      %s148 = scalar_select %p147, %s146, 11
      %s149 = smul.addr %s148, 2
      %s150 = smul.addr %s149, 8
      %s151 = scalar_lea.vmem %s2, %s150
      %s152 = smul.u32 2, %s13
      %p153 = scmp.lt.s32.totalorder %s152, 11
      %s154 = scalar_select %p153, %s152, 11
      %s155 = smul.addr %s154, 8
      %s156 = scalar_lea.vmem %s0, %s155
      %s157 = smul.u32 2, %s13
      %s158 = smul.u32 2, %s13
      %p159 = scmp.lt.s32.totalorder %s158, 11
      %s160 = scalar_select %p159, %s158, 11
      %s161 = smul.addr %s160, 8
      %s162 = scalar_lea.vmem %s1, %s161
      %s163 = smul.u32 2, %s13
      %s164 = smul.u32 2, %s13
      %p165 = scmp.lt.s32.totalorder %s164, 11
      %s166 = scalar_select %p165, %s164, 11
      %s167 = smul.addr %s166, 2
      %s168 = smul.addr %s167, 8
      %s169 = scalar_lea.vmem %s2, %s168
      %s170 = smul.u32 2, %s13
      %v171 = vlaneseq
      %v172 = vand.u32 %v171, 127
      %v173 = vadd.s32 %v172, 128
      %v174 = vadd.s32 %v172, 256
      %v175 = vadd.s32 %v172, 384
      %v176 = vshra.s32 %v172, 1
      %v177 = vshra.s32 %v173, 1
      %v178 = vshra.s32 %v174, 1
      %v179 = vshra.s32 %v175, 1
      %v180 = vand.u32 %v172, %v176
      %v181 = vand.u32 %v173, %v177
      %v182 = vand.u32 %v174, %v178
      %v183 = vand.u32 %v175, %v179
      %v184 = vshra.s32 %v180, 4
      %v185 = vshra.s32 %v181, 4
      %v186 = vshra.s32 %v182, 4
      %v187 = vshra.s32 %v183, 4
      %v188 = vxor.u32 %v180, %v184
      %v189 = vxor.u32 %v181, %v185
      %v190 = vxor.u32 %v182, %v186
      %v191 = vxor.u32 %v183, %v187
      %v192 = vshra.s32 %v188, 2
      %v193 = vshra.s32 %v189, 2
      %v194 = vshra.s32 %v190, 2
      %v195 = vshra.s32 %v191, 2
      %v196 = vxor.u32 %v188, %v192
      %v197 = vxor.u32 %v189, %v193
      %v198 = vxor.u32 %v190, %v194
      %v199 = vxor.u32 %v191, %v195
      %v200 = vshra.s32 %v196, 1
      %v201 = vshra.s32 %v197, 1
      %v202 = vshra.s32 %v198, 1
      %v203 = vshra.s32 %v199, 1
      %v204 = vxor.u32 %v196, %v200
      %v205 = vxor.u32 %v197, %v201
      %v206 = vxor.u32 %v198, %v202
      %v207 = vxor.u32 %v199, %v203
      %v208 = vand.u32 %v204, 1
      %v209 = vand.u32 %v205, 1
      %v210 = vand.u32 %v206, 1
      %v211 = vand.u32 %v207, 1
      %vm212 = vcmp.eq.s32.totalorder %v208, 1
      %vm213 = vcmp.eq.s32.totalorder %v209, 1
      %vm214 = vcmp.eq.s32.totalorder %v210, 1
      %vm215 = vcmp.eq.s32.totalorder %v211, 1
      %v216 = vsel %vm212, -1.0, 1.0
      %v217 = vsel %vm213, -1.0, 1.0
      %v218 = vsel %vm214, -1.0, 1.0
      %v219 = vsel %vm215, -1.0, 1.0
      %v220 = vshra.s32 %v172, 8
      %v221 = vshra.s32 %v173, 8
      %v222 = vshra.s32 %v174, 8
      %v223 = vshra.s32 %v175, 8
      %v224 = vand.u32 %v220, 1
      %v225 = vand.u32 %v221, 1
      %v226 = vand.u32 %v222, 1
      %v227 = vand.u32 %v223, 1
      %vm228 = vcmp.eq.s32.totalorder %v224, 1
      %vm229 = vcmp.eq.s32.totalorder %v225, 1
      %vm230 = vcmp.eq.s32.totalorder %v226, 1
      %vm231 = vcmp.eq.s32.totalorder %v227, 1
      %v232 = vshra.s32 %v172, 7
      %v233 = vshra.s32 %v173, 7
      %v234 = vshra.s32 %v174, 7
      %v235 = vshra.s32 %v175, 7
      %v236 = vand.u32 %v232, 1
      %v237 = vand.u32 %v233, 1
      %v238 = vand.u32 %v234, 1
      %v239 = vand.u32 %v235, 1
      %vm240 = vcmp.eq.s32.totalorder %v236, 1
      %vm241 = vcmp.eq.s32.totalorder %v237, 1
      %vm242 = vcmp.eq.s32.totalorder %v238, 1
      %vm243 = vcmp.eq.s32.totalorder %v239, 1
      %v244 = vshra.s32 %v172, 6
      %v245 = vshra.s32 %v173, 6
      %v246 = vshra.s32 %v174, 6
      %v247 = vshra.s32 %v175, 6
      %v248 = vand.u32 %v244, 1
      %v249 = vand.u32 %v245, 1
      %v250 = vand.u32 %v246, 1
      %v251 = vand.u32 %v247, 1
      %vm252 = vcmp.eq.s32.totalorder %v248, 1
      %vm253 = vcmp.eq.s32.totalorder %v249, 1
      %vm254 = vcmp.eq.s32.totalorder %v250, 1
      %vm255 = vcmp.eq.s32.totalorder %v251, 1
      %v256 = vshra.s32 %v172, 5
      %v257 = vshra.s32 %v173, 5
      %v258 = vshra.s32 %v174, 5
      %v259 = vshra.s32 %v175, 5
      %v260 = vand.u32 %v256, 1
      %v261 = vand.u32 %v257, 1
      %v262 = vand.u32 %v258, 1
      %v263 = vand.u32 %v259, 1
      %vm264 = vcmp.eq.s32.totalorder %v260, 1
      %vm265 = vcmp.eq.s32.totalorder %v261, 1
      %vm266 = vcmp.eq.s32.totalorder %v262, 1
      %vm267 = vcmp.eq.s32.totalorder %v263, 1
      %v268 = vshra.s32 %v172, 4
      %v269 = vshra.s32 %v173, 4
      %v270 = vshra.s32 %v174, 4
      %v271 = vshra.s32 %v175, 4
      %v272 = vand.u32 %v268, 1
      %v273 = vand.u32 %v269, 1
      %v274 = vand.u32 %v270, 1
      %v275 = vand.u32 %v271, 1
      %vm276 = vcmp.eq.s32.totalorder %v272, 1
      %vm277 = vcmp.eq.s32.totalorder %v273, 1
      %vm278 = vcmp.eq.s32.totalorder %v274, 1
      %vm279 = vcmp.eq.s32.totalorder %v275, 1
      %v280 = vshra.s32 %v172, 3
      %v281 = vshra.s32 %v173, 3
      %v282 = vshra.s32 %v174, 3
      %v283 = vshra.s32 %v175, 3
      %v284 = vand.u32 %v280, 1
      %v285 = vand.u32 %v281, 1
      %v286 = vand.u32 %v282, 1
      %v287 = vand.u32 %v283, 1
      %vm288 = vcmp.eq.s32.totalorder %v284, 1
      %vm289 = vcmp.eq.s32.totalorder %v285, 1
      %vm290 = vcmp.eq.s32.totalorder %v286, 1
      %vm291 = vcmp.eq.s32.totalorder %v287, 1
      %v292 = vshra.s32 %v172, 2
      %v293 = vshra.s32 %v173, 2
      %v294 = vshra.s32 %v174, 2
      %v295 = vshra.s32 %v175, 2
      %v296 = vand.u32 %v292, 1
      %v297 = vand.u32 %v293, 1
      %v298 = vand.u32 %v294, 1
      %v299 = vand.u32 %v295, 1
      %vm300 = vcmp.eq.s32.totalorder %v296, 1
      %vm301 = vcmp.eq.s32.totalorder %v297, 1
      %vm302 = vcmp.eq.s32.totalorder %v298, 1
      %vm303 = vcmp.eq.s32.totalorder %v299, 1
      %v304 = vand.u32 %v176, 1
      %v305 = vand.u32 %v177, 1
      %v306 = vand.u32 %v178, 1
      %v307 = vand.u32 %v179, 1
      %vm308 = vcmp.eq.s32.totalorder %v304, 1
      %vm309 = vcmp.eq.s32.totalorder %v305, 1
      %vm310 = vcmp.eq.s32.totalorder %v306, 1
      %vm311 = vcmp.eq.s32.totalorder %v307, 1
      %v312 = vand.u32 %v172, 1
      %v313 = vand.u32 %v173, 1
      %v314 = vand.u32 %v174, 1
      %v315 = vand.u32 %v175, 1
      %vm316 = vcmp.eq.s32.totalorder %v312, 1
      %vm317 = vcmp.eq.s32.totalorder %v313, 1
      %vm318 = vcmp.eq.s32.totalorder %v314, 1
      %vm319 = vcmp.eq.s32.totalorder %v315, 1
      %v320 = vld [vmem:[%s156] sm:$0xff]
      %v321 = vld [vmem:[%s156 + $0x8] sm:$0xff]
      %v322 = vld [vmem:[%s162] sm:$0xff]
      %v323 = vld [vmem:[%s162 + $0x8] sm:$0xff]
      %v324 = vsel %vm228, 1, 0
      %v325 = vsel %vm229, 1, 0
      %v326 = vsel %vm230, 1, 0
      %v327 = vsel %vm231, 1, 0
      %vm328 = vcmp.eq.s32.totalorder %v324, 1
      %vm329 = vcmp.eq.s32.totalorder %v325, 1
      %vm330 = vcmp.eq.s32.totalorder %v326, 1
      %vm331 = vcmp.eq.s32.totalorder %v327, 1
      %333 = vset.pattern.permute.xlu0 0
      %334 = vperm.xlu0 %333, %v322
      %v335 = vpop.permute.xlu0 %334
      %338 = vset.pattern.permute.xlu0 0
      %339 = vperm.xlu0 %338, %v323
      %v340 = vpop.permute.xlu0 %339
      %343 = vset.pattern.permute.xlu0 0
      %344 = vperm.xlu0 %343, %v320
      %v345 = vpop.permute.xlu0 %344
      %348 = vset.pattern.permute.xlu0 0
      %349 = vperm.xlu0 %348, %v321
      %v350 = vpop.permute.xlu0 %349
      %v352 = vsel %vm328, %v335, %v345
      %v353 = vsel %vm329, %v335, %v345
      %v354 = vsel %vm330, %v335, %v345
      %v355 = vsel %vm331, %v335, %v345
      %v356 = vsel %vm328, %v340, %v350
      %v357 = vsel %vm329, %v340, %v350
      %v358 = vsel %vm330, %v340, %v350
      %v359 = vsel %vm331, %v340, %v350
      %v360 = vsel %vm240, 1, 0
      %v361 = vsel %vm241, 1, 0
      %v362 = vsel %vm242, 1, 0
      %v363 = vsel %vm243, 1, 0
      %vm364 = vcmp.eq.s32.totalorder %v360, 1
      %vm365 = vcmp.eq.s32.totalorder %v361, 1
      %vm366 = vcmp.eq.s32.totalorder %v362, 1
      %vm367 = vcmp.eq.s32.totalorder %v363, 1
      %368 = vset.pattern.permute.xlu0 1
      %369 = vperm.xlu0 %368, %v322
      %v370 = vpop.permute.xlu0 %369
      %372 = vset.pattern.permute.xlu0 1
      %373 = vperm.xlu0 %372, %v323
      %v374 = vpop.permute.xlu0 %373
      %376 = vset.pattern.permute.xlu0 1
      %377 = vperm.xlu0 %376, %v320
      %v378 = vpop.permute.xlu0 %377
      %380 = vset.pattern.permute.xlu0 1
      %381 = vperm.xlu0 %380, %v321
      %v382 = vpop.permute.xlu0 %381
      %v384 = vsel %vm364, %v370, %v378
      %v385 = vsel %vm365, %v370, %v378
      %v386 = vsel %vm366, %v370, %v378
      %v387 = vsel %vm367, %v370, %v378
      %v388 = vsel %vm364, %v374, %v382
      %v389 = vsel %vm365, %v374, %v382
      %v390 = vsel %vm366, %v374, %v382
      %v391 = vsel %vm367, %v374, %v382
      %v392 = vmul.f32 %v352, %v384
      %v393 = vmul.f32 %v353, %v385
      %v394 = vmul.f32 %v354, %v386
      %v395 = vmul.f32 %v355, %v387
      %v396 = vmul.f32 %v356, %v388
      %v397 = vmul.f32 %v357, %v389
      %v398 = vmul.f32 %v358, %v390
      %v399 = vmul.f32 %v359, %v391
      %v400 = vsel %vm252, 1, 0
      %v401 = vsel %vm253, 1, 0
      %v402 = vsel %vm254, 1, 0
      %v403 = vsel %vm255, 1, 0
      %vm404 = vcmp.eq.s32.totalorder %v400, 1
      %vm405 = vcmp.eq.s32.totalorder %v401, 1
      %vm406 = vcmp.eq.s32.totalorder %v402, 1
      %vm407 = vcmp.eq.s32.totalorder %v403, 1
      %408 = vset.pattern.permute.xlu0 2
      %409 = vperm.xlu0 %408, %v322
      %v410 = vpop.permute.xlu0 %409
      %412 = vset.pattern.permute.xlu0 2
      %413 = vperm.xlu0 %412, %v323
      %v414 = vpop.permute.xlu0 %413
      %416 = vset.pattern.permute.xlu0 2
      %417 = vperm.xlu0 %416, %v320
      %v418 = vpop.permute.xlu0 %417
      %420 = vset.pattern.permute.xlu0 2
      %421 = vperm.xlu0 %420, %v321
      %v422 = vpop.permute.xlu0 %421
      %v424 = vsel %vm404, %v410, %v418
      %v425 = vsel %vm405, %v410, %v418
      %v426 = vsel %vm406, %v410, %v418
      %v427 = vsel %vm407, %v410, %v418
      %v428 = vsel %vm404, %v414, %v422
      %v429 = vsel %vm405, %v414, %v422
      %v430 = vsel %vm406, %v414, %v422
      %v431 = vsel %vm407, %v414, %v422
      %v432 = vmul.f32 %v392, %v424
      %v433 = vmul.f32 %v393, %v425
      %v434 = vmul.f32 %v394, %v426
      %v435 = vmul.f32 %v395, %v427
      %v436 = vmul.f32 %v396, %v428
      %v437 = vmul.f32 %v397, %v429
      %v438 = vmul.f32 %v398, %v430
      %v439 = vmul.f32 %v399, %v431
      %v440 = vsel %vm264, 1, 0
      %v441 = vsel %vm265, 1, 0
      %v442 = vsel %vm266, 1, 0
      %v443 = vsel %vm267, 1, 0
      %vm444 = vcmp.eq.s32.totalorder %v440, 1
      %vm445 = vcmp.eq.s32.totalorder %v441, 1
      %vm446 = vcmp.eq.s32.totalorder %v442, 1
      %vm447 = vcmp.eq.s32.totalorder %v443, 1
      %448 = vset.pattern.permute.xlu0 3
      %449 = vperm.xlu0 %448, %v322
      %v450 = vpop.permute.xlu0 %449
      %452 = vset.pattern.permute.xlu0 3
      %453 = vperm.xlu0 %452, %v323
      %v454 = vpop.permute.xlu0 %453
      %456 = vset.pattern.permute.xlu0 3
      %457 = vperm.xlu0 %456, %v320
      %v458 = vpop.permute.xlu0 %457
      %460 = vset.pattern.permute.xlu0 3
      %461 = vperm.xlu0 %460, %v321
      %v462 = vpop.permute.xlu0 %461
      %v464 = vsel %vm444, %v450, %v458
      %v465 = vsel %vm445, %v450, %v458
      %v466 = vsel %vm446, %v450, %v458
      %v467 = vsel %vm447, %v450, %v458
      %v468 = vsel %vm444, %v454, %v462
      %v469 = vsel %vm445, %v454, %v462
      %v470 = vsel %vm446, %v454, %v462
      %v471 = vsel %vm447, %v454, %v462
      %v472 = vmul.f32 %v432, %v464
      %v473 = vmul.f32 %v433, %v465
      %v474 = vmul.f32 %v434, %v466
      %v475 = vmul.f32 %v435, %v467
      %v476 = vmul.f32 %v436, %v468
      %v477 = vmul.f32 %v437, %v469
      %v478 = vmul.f32 %v438, %v470
      %v479 = vmul.f32 %v439, %v471
      %v480 = vsel %vm276, 1, 0
      %v481 = vsel %vm277, 1, 0
      %v482 = vsel %vm278, 1, 0
      %v483 = vsel %vm279, 1, 0
      %vm484 = vcmp.eq.s32.totalorder %v480, 1
      %vm485 = vcmp.eq.s32.totalorder %v481, 1
      %vm486 = vcmp.eq.s32.totalorder %v482, 1
      %vm487 = vcmp.eq.s32.totalorder %v483, 1
      %488 = vset.pattern.permute.xlu0 4
      %489 = vperm.xlu0 %488, %v322
      %v490 = vpop.permute.xlu0 %489
      %492 = vset.pattern.permute.xlu0 4
      %493 = vperm.xlu0 %492, %v323
      %v494 = vpop.permute.xlu0 %493
      %496 = vset.pattern.permute.xlu0 4
      %497 = vperm.xlu0 %496, %v320
      %v498 = vpop.permute.xlu0 %497
      %500 = vset.pattern.permute.xlu0 4
      %501 = vperm.xlu0 %500, %v321
      %v502 = vpop.permute.xlu0 %501
      %v504 = vsel %vm484, %v490, %v498
      %v505 = vsel %vm485, %v490, %v498
      %v506 = vsel %vm486, %v490, %v498
      %v507 = vsel %vm487, %v490, %v498
      %v508 = vsel %vm484, %v494, %v502
      %v509 = vsel %vm485, %v494, %v502
      %v510 = vsel %vm486, %v494, %v502
      %v511 = vsel %vm487, %v494, %v502
      %v512 = vmul.f32 %v472, %v504
      %v513 = vmul.f32 %v473, %v505
      %v514 = vmul.f32 %v474, %v506
      %v515 = vmul.f32 %v475, %v507
      %v516 = vmul.f32 %v476, %v508
      %v517 = vmul.f32 %v477, %v509
      %v518 = vmul.f32 %v478, %v510
      %v519 = vmul.f32 %v479, %v511
      %v520 = vsel %vm288, 1, 0
      %v521 = vsel %vm289, 1, 0
      %v522 = vsel %vm290, 1, 0
      %v523 = vsel %vm291, 1, 0
      %vm524 = vcmp.eq.s32.totalorder %v520, 1
      %vm525 = vcmp.eq.s32.totalorder %v521, 1
      %vm526 = vcmp.eq.s32.totalorder %v522, 1
      %vm527 = vcmp.eq.s32.totalorder %v523, 1
      %528 = vset.pattern.permute.xlu0 5
      %529 = vperm.xlu0 %528, %v322
      %v530 = vpop.permute.xlu0 %529
      %532 = vset.pattern.permute.xlu0 5
      %533 = vperm.xlu0 %532, %v323
      %v534 = vpop.permute.xlu0 %533
      %536 = vset.pattern.permute.xlu0 5
      %537 = vperm.xlu0 %536, %v320
      %v538 = vpop.permute.xlu0 %537
      %540 = vset.pattern.permute.xlu0 5
      %541 = vperm.xlu0 %540, %v321
      %v542 = vpop.permute.xlu0 %541
      %v544 = vsel %vm524, %v530, %v538
      %v545 = vsel %vm525, %v530, %v538
      %v546 = vsel %vm526, %v530, %v538
      %v547 = vsel %vm527, %v530, %v538
      %v548 = vsel %vm524, %v534, %v542
      %v549 = vsel %vm525, %v534, %v542
      %v550 = vsel %vm526, %v534, %v542
      %v551 = vsel %vm527, %v534, %v542
      %v552 = vmul.f32 %v512, %v544
      %v553 = vmul.f32 %v513, %v545
      %v554 = vmul.f32 %v514, %v546
      %v555 = vmul.f32 %v515, %v547
      %v556 = vmul.f32 %v516, %v548
      %v557 = vmul.f32 %v517, %v549
      %v558 = vmul.f32 %v518, %v550
      %v559 = vmul.f32 %v519, %v551
      %v560 = vsel %vm300, 1, 0
      %v561 = vsel %vm301, 1, 0
      %v562 = vsel %vm302, 1, 0
      %v563 = vsel %vm303, 1, 0
      %vm564 = vcmp.eq.s32.totalorder %v560, 1
      %vm565 = vcmp.eq.s32.totalorder %v561, 1
      %vm566 = vcmp.eq.s32.totalorder %v562, 1
      %vm567 = vcmp.eq.s32.totalorder %v563, 1
      %568 = vset.pattern.permute.xlu0 6
      %569 = vperm.xlu0 %568, %v322
      %v570 = vpop.permute.xlu0 %569
      %572 = vset.pattern.permute.xlu0 6
      %573 = vperm.xlu0 %572, %v323
      %v574 = vpop.permute.xlu0 %573
      %576 = vset.pattern.permute.xlu0 6
      %577 = vperm.xlu0 %576, %v320
      %v578 = vpop.permute.xlu0 %577
      %580 = vset.pattern.permute.xlu0 6
      %581 = vperm.xlu0 %580, %v321
      %v582 = vpop.permute.xlu0 %581
      %v584 = vsel %vm564, %v570, %v578
      %v585 = vsel %vm565, %v570, %v578
      %v586 = vsel %vm566, %v570, %v578
      %v587 = vsel %vm567, %v570, %v578
      %v588 = vsel %vm564, %v574, %v582
      %v589 = vsel %vm565, %v574, %v582
      %v590 = vsel %vm566, %v574, %v582
      %v591 = vsel %vm567, %v574, %v582
      %v592 = vmul.f32 %v552, %v584
      %v593 = vmul.f32 %v553, %v585
      %v594 = vmul.f32 %v554, %v586
      %v595 = vmul.f32 %v555, %v587
      %v596 = vmul.f32 %v556, %v588
      %v597 = vmul.f32 %v557, %v589
      %v598 = vmul.f32 %v558, %v590
      %v599 = vmul.f32 %v559, %v591
      %v600 = vsel %vm308, 1, 0
      %v601 = vsel %vm309, 1, 0
      %v602 = vsel %vm310, 1, 0
      %v603 = vsel %vm311, 1, 0
      %vm604 = vcmp.eq.s32.totalorder %v600, 1
      %vm605 = vcmp.eq.s32.totalorder %v601, 1
      %vm606 = vcmp.eq.s32.totalorder %v602, 1
      %vm607 = vcmp.eq.s32.totalorder %v603, 1
      %608 = vset.pattern.permute.xlu0 7
      %609 = vperm.xlu0 %608, %v322
      %v610 = vpop.permute.xlu0 %609
      %612 = vset.pattern.permute.xlu0 7
      %613 = vperm.xlu0 %612, %v323
      %v614 = vpop.permute.xlu0 %613
      %616 = vset.pattern.permute.xlu0 7
      %617 = vperm.xlu0 %616, %v320
      %v618 = vpop.permute.xlu0 %617
      %620 = vset.pattern.permute.xlu0 7
      %621 = vperm.xlu0 %620, %v321
      %v622 = vpop.permute.xlu0 %621
      %v624 = vsel %vm604, %v610, %v618
      %v625 = vsel %vm605, %v610, %v618
      %v626 = vsel %vm606, %v610, %v618
      %v627 = vsel %vm607, %v610, %v618
      %v628 = vsel %vm604, %v614, %v622
      %v629 = vsel %vm605, %v614, %v622
      %v630 = vsel %vm606, %v614, %v622
      %v631 = vsel %vm607, %v614, %v622
      %v632 = vmul.f32 %v592, %v624
      %v633 = vmul.f32 %v593, %v625
      %v634 = vmul.f32 %v594, %v626
      %v635 = vmul.f32 %v595, %v627
      %v636 = vmul.f32 %v596, %v628
      %v637 = vmul.f32 %v597, %v629
      %v638 = vmul.f32 %v598, %v630
      %v639 = vmul.f32 %v599, %v631
      %v640 = vsel %vm316, 1, 0
      %v641 = vsel %vm317, 1, 0
      %v642 = vsel %vm318, 1, 0
      %v643 = vsel %vm319, 1, 0
      %vm644 = vcmp.eq.s32.totalorder %v640, 1
      %vm645 = vcmp.eq.s32.totalorder %v641, 1
      %vm646 = vcmp.eq.s32.totalorder %v642, 1
      %vm647 = vcmp.eq.s32.totalorder %v643, 1
      %648 = vset.pattern.permute.xlu0 8
      %649 = vperm.xlu0 %648, %v322
      %v650 = vpop.permute.xlu0 %649
      %652 = vset.pattern.permute.xlu0 8
      %653 = vperm.xlu0 %652, %v323
      %v654 = vpop.permute.xlu0 %653
      %656 = vset.pattern.permute.xlu0 8
      %657 = vperm.xlu0 %656, %v320
      %v658 = vpop.permute.xlu0 %657
      %660 = vset.pattern.permute.xlu0 8
      %661 = vperm.xlu0 %660, %v321
      %v662 = vpop.permute.xlu0 %661
      %v664 = vsel %vm644, %v650, %v658
      %v665 = vsel %vm645, %v650, %v658
      %v666 = vsel %vm646, %v650, %v658
      %v667 = vsel %vm647, %v650, %v658
      %v668 = vsel %vm644, %v654, %v662
      %v669 = vsel %vm645, %v654, %v662
      %v670 = vsel %vm646, %v654, %v662
      %v671 = vsel %vm647, %v654, %v662
      %v672 = vmul.f32 %v632, %v664
      %v673 = vmul.f32 %v633, %v665
      %v674 = vmul.f32 %v634, %v666
      %v675 = vmul.f32 %v635, %v667
      %v676 = vmul.f32 %v636, %v668
      %v677 = vmul.f32 %v637, %v669
      %v678 = vmul.f32 %v638, %v670
      %v679 = vmul.f32 %v639, %v671
      %v680 = vmul.f32 %v672, %v216
      %v681 = vmul.f32 %v673, %v217
      %v682 = vmul.f32 %v674, %v218
      %v683 = vmul.f32 %v675, %v219
      %v684 = vmul.f32 %v676, %v216
      %v685 = vmul.f32 %v677, %v217
      %v686 = vmul.f32 %v678, %v218
      %v687 = vmul.f32 %v679, %v219
      %v688 = vsub.f32 0.0, %v682
      %v689 = vsub.f32 0.0, %v683
      %v690 = vsub.f32 0.0, %v680
      %v691 = vsub.f32 0.0, %v681
      %v692 = vsub.f32 0.0, %v686
      %v693 = vsub.f32 0.0, %v687
      %v694 = vsub.f32 0.0, %v684
      %v695 = vsub.f32 0.0, %v685
      %v696 = vsel %vm328, %v682, %v688
      %v697 = vsel %vm329, %v683, %v689
      %v698 = vsel %vm330, %v680, %v690
      %v699 = vsel %vm331, %v681, %v691
      %v700 = vsel %vm328, %v686, %v692
      %v701 = vsel %vm329, %v687, %v693
      %v702 = vsel %vm330, %v684, %v694
      %v703 = vsel %vm331, %v685, %v695
      %704 = vset.pattern.permute.xlu0 9
      %705 = vperm.xlu0 %704, %v320
      %v706 = vpop.permute.xlu0 %705
      %708 = vset.pattern.permute.xlu0 9
      %709 = vperm.xlu0 %708, %v321
      %v710 = vpop.permute.xlu0 %709
      %v712 = vmul.f32 %v706, %v680
      %v713 = vmul.f32 %v706, %v681
      %v714 = vmul.f32 %v706, %v682
      %v715 = vmul.f32 %v706, %v683
      %v716 = vmul.f32 %v710, %v684
      %v717 = vmul.f32 %v710, %v685
      %v718 = vmul.f32 %v710, %v686
      %v719 = vmul.f32 %v710, %v687
      %720 = vset.pattern.permute.xlu0 9
      %721 = vperm.xlu0 %720, %v322
      %v722 = vpop.permute.xlu0 %721
      %724 = vset.pattern.permute.xlu0 9
      %725 = vperm.xlu0 %724, %v323
      %v726 = vpop.permute.xlu0 %725
      %v728 = vmul.f32 %v722, %v696
      %v729 = vmul.f32 %v722, %v697
      %v730 = vmul.f32 %v722, %v698
      %v731 = vmul.f32 %v722, %v699
      %v732 = vmul.f32 %v726, %v700
      %v733 = vmul.f32 %v726, %v701
      %v734 = vmul.f32 %v726, %v702
      %v735 = vmul.f32 %v726, %v703
      %v736 = vadd.f32 %v712, %v728
      %v737 = vadd.f32 %v713, %v729
      %v738 = vadd.f32 %v714, %v730
      %v739 = vadd.f32 %v715, %v731
      %v740 = vadd.f32 %v716, %v732
      %v741 = vadd.f32 %v717, %v733
      %v742 = vadd.f32 %v718, %v734
      %v743 = vadd.f32 %v719, %v735
      %v744 = vsub.f32 0.0, %v737
      %v745 = vsub.f32 0.0, %v738
      %v746 = vsub.f32 0.0, %v739
      %v747 = vsub.f32 0.0, %v736
      %v748 = vsub.f32 0.0, %v741
      %v749 = vsub.f32 0.0, %v742
      %v750 = vsub.f32 0.0, %v743
      %v751 = vsub.f32 0.0, %v740
      %v752 = vsel %vm364, %v739, %v744
      %v753 = vsel %vm365, %v736, %v745
      %v754 = vsel %vm366, %v737, %v746
      %v755 = vsel %vm367, %v738, %v747
      %v756 = vsel %vm364, %v743, %v748
      %v757 = vsel %vm365, %v740, %v749
      %v758 = vsel %vm366, %v741, %v750
      %v759 = vsel %vm367, %v742, %v751
      %760 = vset.pattern.permute.xlu0 10
      %761 = vperm.xlu0 %760, %v320
      %v762 = vpop.permute.xlu0 %761
      %764 = vset.pattern.permute.xlu0 10
      %765 = vperm.xlu0 %764, %v321
      %v766 = vpop.permute.xlu0 %765
      %v768 = vmul.f32 %v762, %v736
      %v769 = vmul.f32 %v762, %v737
      %v770 = vmul.f32 %v762, %v738
      %v771 = vmul.f32 %v762, %v739
      %v772 = vmul.f32 %v766, %v740
      %v773 = vmul.f32 %v766, %v741
      %v774 = vmul.f32 %v766, %v742
      %v775 = vmul.f32 %v766, %v743
      %776 = vset.pattern.permute.xlu0 10
      %777 = vperm.xlu0 %776, %v322
      %v778 = vpop.permute.xlu0 %777
      %780 = vset.pattern.permute.xlu0 10
      %781 = vperm.xlu0 %780, %v323
      %v782 = vpop.permute.xlu0 %781
      %v784 = vmul.f32 %v778, %v752
      %v785 = vmul.f32 %v778, %v753
      %v786 = vmul.f32 %v778, %v754
      %v787 = vmul.f32 %v778, %v755
      %v788 = vmul.f32 %v782, %v756
      %v789 = vmul.f32 %v782, %v757
      %v790 = vmul.f32 %v782, %v758
      %v791 = vmul.f32 %v782, %v759
      %v792 = vadd.f32 %v768, %v784
      %v793 = vadd.f32 %v769, %v785
      %v794 = vadd.f32 %v770, %v786
      %v795 = vadd.f32 %v771, %v787
      %v796 = vadd.f32 %v772, %v788
      %v797 = vadd.f32 %v773, %v789
      %v798 = vadd.f32 %v774, %v790
      %v799 = vadd.f32 %v775, %v791
      %800 = vrot.lane.b32.xlu0 %v792, 64
      %v801 = vpop.permute.xlu0 %800
      %802 = vrot.lane.b32.xlu0 %v796, 64
      %v803 = vpop.permute.xlu0 %802
      %804 = vrot.lane.b32.xlu0 %v793, 64
      %v805 = vpop.permute.xlu0 %804
      %806 = vrot.lane.b32.xlu0 %v797, 64
      %v807 = vpop.permute.xlu0 %806
      %808 = vrot.lane.b32.xlu0 %v794, 64
      %v809 = vpop.permute.xlu0 %808
      %810 = vrot.lane.b32.xlu0 %v798, 64
      %v811 = vpop.permute.xlu0 %810
      %812 = vrot.lane.b32.xlu0 %v795, 64
      %v813 = vpop.permute.xlu0 %812
      %814 = vrot.lane.b32.xlu0 %v799, 64
      %v815 = vpop.permute.xlu0 %814
      %vm816 = vcmp.lt.s32.totalorder %v172, 64
      %v817 = vsel %vm816, %v809, %v813
      %v818 = vsel %vm816, %v811, %v815
      %v819 = vsel %vm816, %v805, %v809
      %v820 = vsel %vm816, %v807, %v811
      %v821 = vsel %vm816, %v801, %v805
      %v822 = vsel %vm816, %v803, %v807
      %v823 = vsel %vm816, %v813, %v801
      %v824 = vsel %vm816, %v815, %v803
      %v825 = vsub.f32 0.0, %v821
      %v826 = vsub.f32 0.0, %v819
      %v827 = vsub.f32 0.0, %v817
      %v828 = vsub.f32 0.0, %v823
      %v829 = vsub.f32 0.0, %v822
      %v830 = vsub.f32 0.0, %v820
      %v831 = vsub.f32 0.0, %v818
      %v832 = vsub.f32 0.0, %v824
      %v833 = vsel %vm404, %v823, %v825
      %v834 = vsel %vm405, %v821, %v826
      %v835 = vsel %vm406, %v819, %v827
      %v836 = vsel %vm407, %v817, %v828
      %v837 = vsel %vm404, %v824, %v829
      %v838 = vsel %vm405, %v822, %v830
      %v839 = vsel %vm406, %v820, %v831
      %v840 = vsel %vm407, %v818, %v832
      %841 = vset.pattern.permute.xlu0 11
      %842 = vperm.xlu0 %841, %v320
      %v843 = vpop.permute.xlu0 %842
      %845 = vset.pattern.permute.xlu0 11
      %846 = vperm.xlu0 %845, %v321
      %v847 = vpop.permute.xlu0 %846
      %v849 = vmul.f32 %v843, %v792
      %v850 = vmul.f32 %v843, %v793
      %v851 = vmul.f32 %v843, %v794
      %v852 = vmul.f32 %v843, %v795
      %v853 = vmul.f32 %v847, %v796
      %v854 = vmul.f32 %v847, %v797
      %v855 = vmul.f32 %v847, %v798
      %v856 = vmul.f32 %v847, %v799
      %857 = vset.pattern.permute.xlu0 11
      %858 = vperm.xlu0 %857, %v322
      %v859 = vpop.permute.xlu0 %858
      %861 = vset.pattern.permute.xlu0 11
      %862 = vperm.xlu0 %861, %v323
      %v863 = vpop.permute.xlu0 %862
      %v865 = vmul.f32 %v859, %v833
      %v866 = vmul.f32 %v859, %v834
      %v867 = vmul.f32 %v859, %v835
      %v868 = vmul.f32 %v859, %v836
      %v869 = vmul.f32 %v863, %v837
      %v870 = vmul.f32 %v863, %v838
      %v871 = vmul.f32 %v863, %v839
      %v872 = vmul.f32 %v863, %v840
      %v873 = vadd.f32 %v849, %v865
      %v874 = vadd.f32 %v850, %v866
      %v875 = vadd.f32 %v851, %v867
      %v876 = vadd.f32 %v852, %v868
      %v877 = vadd.f32 %v853, %v869
      %v878 = vadd.f32 %v854, %v870
      %v879 = vadd.f32 %v855, %v871
      %v880 = vadd.f32 %v856, %v872
      %881 = vrot.lane.b32.xlu0 %v873, 96
      %v882 = vpop.permute.xlu0 %881
      %883 = vrot.lane.b32.xlu0 %v877, 96
      %v884 = vpop.permute.xlu0 %883
      %885 = vrot.lane.b32.xlu0 %v874, 96
      %v886 = vpop.permute.xlu0 %885
      %887 = vrot.lane.b32.xlu0 %v878, 96
      %v888 = vpop.permute.xlu0 %887
      %889 = vrot.lane.b32.xlu0 %v875, 96
      %v890 = vpop.permute.xlu0 %889
      %891 = vrot.lane.b32.xlu0 %v879, 96
      %v892 = vpop.permute.xlu0 %891
      %893 = vrot.lane.b32.xlu0 %v876, 96
      %v894 = vpop.permute.xlu0 %893
      %895 = vrot.lane.b32.xlu0 %v880, 96
      %v896 = vpop.permute.xlu0 %895
      %vm897 = vcmp.lt.s32.totalorder %v172, 96
      %v898 = vsel %vm897, %v890, %v894
      %v899 = vsel %vm897, %v892, %v896
      %v900 = vsel %vm897, %v886, %v890
      %v901 = vsel %vm897, %v888, %v892
      %v902 = vsel %vm897, %v882, %v886
      %v903 = vsel %vm897, %v884, %v888
      %v904 = vsel %vm897, %v894, %v882
      %v905 = vsel %vm897, %v896, %v884
      %906 = vrot.lane.b32.xlu0 %v873, 32
      %v907 = vpop.permute.xlu0 %906
      %908 = vrot.lane.b32.xlu0 %v877, 32
      %v909 = vpop.permute.xlu0 %908
      %910 = vrot.lane.b32.xlu0 %v874, 32
      %v911 = vpop.permute.xlu0 %910
      %912 = vrot.lane.b32.xlu0 %v878, 32
      %v913 = vpop.permute.xlu0 %912
      %914 = vrot.lane.b32.xlu0 %v875, 32
      %v915 = vpop.permute.xlu0 %914
      %916 = vrot.lane.b32.xlu0 %v879, 32
      %v917 = vpop.permute.xlu0 %916
      %918 = vrot.lane.b32.xlu0 %v876, 32
      %v919 = vpop.permute.xlu0 %918
      %920 = vrot.lane.b32.xlu0 %v880, 32
      %v921 = vpop.permute.xlu0 %920
      %vm922 = vcmp.lt.s32.totalorder %v172, 32
      %v923 = vsel %vm922, %v915, %v919
      %v924 = vsel %vm922, %v917, %v921
      %v925 = vsel %vm922, %v911, %v915
      %v926 = vsel %vm922, %v913, %v917
      %v927 = vsel %vm922, %v907, %v911
      %v928 = vsel %vm922, %v909, %v913
      %v929 = vsel %vm922, %v919, %v907
      %v930 = vsel %vm922, %v921, %v909
      %v931 = vsub.f32 0.0, %v902
      %v932 = vsub.f32 0.0, %v900
      %v933 = vsub.f32 0.0, %v898
      %v934 = vsub.f32 0.0, %v904
      %v935 = vsub.f32 0.0, %v903
      %v936 = vsub.f32 0.0, %v901
      %v937 = vsub.f32 0.0, %v899
      %v938 = vsub.f32 0.0, %v905
      %v939 = vsel %vm444, %v929, %v931
      %v940 = vsel %vm445, %v927, %v932
      %v941 = vsel %vm446, %v925, %v933
      %v942 = vsel %vm447, %v923, %v934
      %v943 = vsel %vm444, %v930, %v935
      %v944 = vsel %vm445, %v928, %v936
      %v945 = vsel %vm446, %v926, %v937
      %v946 = vsel %vm447, %v924, %v938
      %947 = vset.pattern.permute.xlu0 12
      %948 = vperm.xlu0 %947, %v320
      %v949 = vpop.permute.xlu0 %948
      %951 = vset.pattern.permute.xlu0 12
      %952 = vperm.xlu0 %951, %v321
      %v953 = vpop.permute.xlu0 %952
      %v955 = vmul.f32 %v949, %v873
      %v956 = vmul.f32 %v949, %v874
      %v957 = vmul.f32 %v949, %v875
      %v958 = vmul.f32 %v949, %v876
      %v959 = vmul.f32 %v953, %v877
      %v960 = vmul.f32 %v953, %v878
      %v961 = vmul.f32 %v953, %v879
      %v962 = vmul.f32 %v953, %v880
      %963 = vset.pattern.permute.xlu0 12
      %964 = vperm.xlu0 %963, %v322
      %v965 = vpop.permute.xlu0 %964
      %967 = vset.pattern.permute.xlu0 12
      %968 = vperm.xlu0 %967, %v323
      %v969 = vpop.permute.xlu0 %968
      %v971 = vmul.f32 %v965, %v939
      %v972 = vmul.f32 %v965, %v940
      %v973 = vmul.f32 %v965, %v941
      %v974 = vmul.f32 %v965, %v942
      %v975 = vmul.f32 %v969, %v943
      %v976 = vmul.f32 %v969, %v944
      %v977 = vmul.f32 %v969, %v945
      %v978 = vmul.f32 %v969, %v946
      %v979 = vadd.f32 %v955, %v971
      %v980 = vadd.f32 %v956, %v972
      %v981 = vadd.f32 %v957, %v973
      %v982 = vadd.f32 %v958, %v974
      %v983 = vadd.f32 %v959, %v975
      %v984 = vadd.f32 %v960, %v976
      %v985 = vadd.f32 %v961, %v977
      %v986 = vadd.f32 %v962, %v978
      %987 = vrot.lane.b32.xlu0 %v979, 112
      %v988 = vpop.permute.xlu0 %987
      %989 = vrot.lane.b32.xlu0 %v983, 112
      %v990 = vpop.permute.xlu0 %989
      %991 = vrot.lane.b32.xlu0 %v980, 112
      %v992 = vpop.permute.xlu0 %991
      %993 = vrot.lane.b32.xlu0 %v984, 112
      %v994 = vpop.permute.xlu0 %993
      %995 = vrot.lane.b32.xlu0 %v981, 112
      %v996 = vpop.permute.xlu0 %995
      %997 = vrot.lane.b32.xlu0 %v985, 112
      %v998 = vpop.permute.xlu0 %997
      %999 = vrot.lane.b32.xlu0 %v982, 112
      %v1000 = vpop.permute.xlu0 %999
      %1001 = vrot.lane.b32.xlu0 %v986, 112
      %v1002 = vpop.permute.xlu0 %1001
      %vm1003 = vcmp.lt.s32.totalorder %v172, 112
      %v1004 = vsel %vm1003, %v996, %v1000
      %v1005 = vsel %vm1003, %v998, %v1002
      %v1006 = vsel %vm1003, %v992, %v996
      %v1007 = vsel %vm1003, %v994, %v998
      %v1008 = vsel %vm1003, %v988, %v992
      %v1009 = vsel %vm1003, %v990, %v994
      %v1010 = vsel %vm1003, %v1000, %v988
      %v1011 = vsel %vm1003, %v1002, %v990
      %1012 = vrot.lane.b32.xlu0 %v979, 16
      %v1013 = vpop.permute.xlu0 %1012
      %1014 = vrot.lane.b32.xlu0 %v983, 16
      %v1015 = vpop.permute.xlu0 %1014
      %1016 = vrot.lane.b32.xlu0 %v980, 16
      %v1017 = vpop.permute.xlu0 %1016
      %1018 = vrot.lane.b32.xlu0 %v984, 16
      %v1019 = vpop.permute.xlu0 %1018
      %1020 = vrot.lane.b32.xlu0 %v981, 16
      %v1021 = vpop.permute.xlu0 %1020
      %1022 = vrot.lane.b32.xlu0 %v985, 16
      %v1023 = vpop.permute.xlu0 %1022
      %1024 = vrot.lane.b32.xlu0 %v982, 16
      %v1025 = vpop.permute.xlu0 %1024
      %1026 = vrot.lane.b32.xlu0 %v986, 16
      %v1027 = vpop.permute.xlu0 %1026
      %vm1028 = vcmp.lt.s32.totalorder %v172, 16
      %v1029 = vsel %vm1028, %v1021, %v1025
      %v1030 = vsel %vm1028, %v1023, %v1027
      %v1031 = vsel %vm1028, %v1017, %v1021
      %v1032 = vsel %vm1028, %v1019, %v1023
      %v1033 = vsel %vm1028, %v1013, %v1017
      %v1034 = vsel %vm1028, %v1015, %v1019
      %v1035 = vsel %vm1028, %v1025, %v1013
      %v1036 = vsel %vm1028, %v1027, %v1015
      %v1037 = vsub.f32 0.0, %v1008
      %v1038 = vsub.f32 0.0, %v1006
      %v1039 = vsub.f32 0.0, %v1004
      %v1040 = vsub.f32 0.0, %v1010
      %v1041 = vsub.f32 0.0, %v1009
      %v1042 = vsub.f32 0.0, %v1007
      %v1043 = vsub.f32 0.0, %v1005
      %v1044 = vsub.f32 0.0, %v1011
      %v1045 = vsel %vm484, %v1035, %v1037
      %v1046 = vsel %vm485, %v1033, %v1038
      %v1047 = vsel %vm486, %v1031, %v1039
      %v1048 = vsel %vm487, %v1029, %v1040
      %v1049 = vsel %vm484, %v1036, %v1041
      %v1050 = vsel %vm485, %v1034, %v1042
      %v1051 = vsel %vm486, %v1032, %v1043
      %v1052 = vsel %vm487, %v1030, %v1044
      %1053 = vset.pattern.permute.xlu0 13
      %1054 = vperm.xlu0 %1053, %v320
      %v1055 = vpop.permute.xlu0 %1054
      %1057 = vset.pattern.permute.xlu0 13
      %1058 = vperm.xlu0 %1057, %v321
      %v1059 = vpop.permute.xlu0 %1058
      %v1061 = vmul.f32 %v1055, %v979
      %v1062 = vmul.f32 %v1055, %v980
      %v1063 = vmul.f32 %v1055, %v981
      %v1064 = vmul.f32 %v1055, %v982
      %v1065 = vmul.f32 %v1059, %v983
      %v1066 = vmul.f32 %v1059, %v984
      %v1067 = vmul.f32 %v1059, %v985
      %v1068 = vmul.f32 %v1059, %v986
      %1069 = vset.pattern.permute.xlu0 13
      %1070 = vperm.xlu0 %1069, %v322
      %v1071 = vpop.permute.xlu0 %1070
      %1073 = vset.pattern.permute.xlu0 13
      %1074 = vperm.xlu0 %1073, %v323
      %v1075 = vpop.permute.xlu0 %1074
      %v1077 = vmul.f32 %v1071, %v1045
      %v1078 = vmul.f32 %v1071, %v1046
      %v1079 = vmul.f32 %v1071, %v1047
      %v1080 = vmul.f32 %v1071, %v1048
      %v1081 = vmul.f32 %v1075, %v1049
      %v1082 = vmul.f32 %v1075, %v1050
      %v1083 = vmul.f32 %v1075, %v1051
      %v1084 = vmul.f32 %v1075, %v1052
      %v1085 = vadd.f32 %v1061, %v1077
      %v1086 = vadd.f32 %v1062, %v1078
      %v1087 = vadd.f32 %v1063, %v1079
      %v1088 = vadd.f32 %v1064, %v1080
      %v1089 = vadd.f32 %v1065, %v1081
      %v1090 = vadd.f32 %v1066, %v1082
      %v1091 = vadd.f32 %v1067, %v1083
      %v1092 = vadd.f32 %v1068, %v1084
      %1093 = vrot.lane.b32.xlu0 %v1085, 120
      %v1094 = vpop.permute.xlu0 %1093
      %1095 = vrot.lane.b32.xlu0 %v1089, 120
      %v1096 = vpop.permute.xlu0 %1095
      %1097 = vrot.lane.b32.xlu0 %v1086, 120
      %v1098 = vpop.permute.xlu0 %1097
      %1099 = vrot.lane.b32.xlu0 %v1090, 120
      %v1100 = vpop.permute.xlu0 %1099
      %1101 = vrot.lane.b32.xlu0 %v1087, 120
      %v1102 = vpop.permute.xlu0 %1101
      %1103 = vrot.lane.b32.xlu0 %v1091, 120
      %v1104 = vpop.permute.xlu0 %1103
      %1105 = vrot.lane.b32.xlu0 %v1088, 120
      %v1106 = vpop.permute.xlu0 %1105
      %1107 = vrot.lane.b32.xlu0 %v1092, 120
      %v1108 = vpop.permute.xlu0 %1107
      %vm1109 = vcmp.lt.s32.totalorder %v172, 120
      %v1110 = vsel %vm1109, %v1102, %v1106
      %v1111 = vsel %vm1109, %v1104, %v1108
      %v1112 = vsel %vm1109, %v1098, %v1102
      %v1113 = vsel %vm1109, %v1100, %v1104
      %v1114 = vsel %vm1109, %v1094, %v1098
      %v1115 = vsel %vm1109, %v1096, %v1100
      %v1116 = vsel %vm1109, %v1106, %v1094
      %v1117 = vsel %vm1109, %v1108, %v1096
      %1118 = vrot.lane.b32.xlu0 %v1085, 8
      %v1119 = vpop.permute.xlu0 %1118
      %1120 = vrot.lane.b32.xlu0 %v1089, 8
      %v1121 = vpop.permute.xlu0 %1120
      %1122 = vrot.lane.b32.xlu0 %v1086, 8
      %v1123 = vpop.permute.xlu0 %1122
      %1124 = vrot.lane.b32.xlu0 %v1090, 8
      %v1125 = vpop.permute.xlu0 %1124
      %1126 = vrot.lane.b32.xlu0 %v1087, 8
      %v1127 = vpop.permute.xlu0 %1126
      %1128 = vrot.lane.b32.xlu0 %v1091, 8
      %v1129 = vpop.permute.xlu0 %1128
      %1130 = vrot.lane.b32.xlu0 %v1088, 8
      %v1131 = vpop.permute.xlu0 %1130
      %1132 = vrot.lane.b32.xlu0 %v1092, 8
      %v1133 = vpop.permute.xlu0 %1132
      %vm1134 = vcmp.lt.s32.totalorder %v172, 8
      %v1135 = vsel %vm1134, %v1127, %v1131
      %v1136 = vsel %vm1134, %v1129, %v1133
      %v1137 = vsel %vm1134, %v1123, %v1127
      %v1138 = vsel %vm1134, %v1125, %v1129
      %v1139 = vsel %vm1134, %v1119, %v1123
      %v1140 = vsel %vm1134, %v1121, %v1125
      %v1141 = vsel %vm1134, %v1131, %v1119
      %v1142 = vsel %vm1134, %v1133, %v1121
      %v1143 = vsub.f32 0.0, %v1114
      %v1144 = vsub.f32 0.0, %v1112
      %v1145 = vsub.f32 0.0, %v1110
      %v1146 = vsub.f32 0.0, %v1116
      %v1147 = vsub.f32 0.0, %v1115
      %v1148 = vsub.f32 0.0, %v1113
      %v1149 = vsub.f32 0.0, %v1111
      %v1150 = vsub.f32 0.0, %v1117
      %v1151 = vsel %vm524, %v1141, %v1143
      %v1152 = vsel %vm525, %v1139, %v1144
      %v1153 = vsel %vm526, %v1137, %v1145
      %v1154 = vsel %vm527, %v1135, %v1146
      %v1155 = vsel %vm524, %v1142, %v1147
      %v1156 = vsel %vm525, %v1140, %v1148
      %v1157 = vsel %vm526, %v1138, %v1149
      %v1158 = vsel %vm527, %v1136, %v1150
      %1159 = vset.pattern.permute.xlu0 14
      %1160 = vperm.xlu0 %1159, %v320
      %v1161 = vpop.permute.xlu0 %1160
      %1163 = vset.pattern.permute.xlu0 14
      %1164 = vperm.xlu0 %1163, %v321
      %v1165 = vpop.permute.xlu0 %1164
      %v1167 = vmul.f32 %v1161, %v1085
      %v1168 = vmul.f32 %v1161, %v1086
      %v1169 = vmul.f32 %v1161, %v1087
      %v1170 = vmul.f32 %v1161, %v1088
      %v1171 = vmul.f32 %v1165, %v1089
      %v1172 = vmul.f32 %v1165, %v1090
      %v1173 = vmul.f32 %v1165, %v1091
      %v1174 = vmul.f32 %v1165, %v1092
      %1175 = vset.pattern.permute.xlu0 14
      %1176 = vperm.xlu0 %1175, %v322
      %v1177 = vpop.permute.xlu0 %1176
      %1179 = vset.pattern.permute.xlu0 14
      %1180 = vperm.xlu0 %1179, %v323
      %v1181 = vpop.permute.xlu0 %1180
      %v1183 = vmul.f32 %v1177, %v1151
      %v1184 = vmul.f32 %v1177, %v1152
      %v1185 = vmul.f32 %v1177, %v1153
      %v1186 = vmul.f32 %v1177, %v1154
      %v1187 = vmul.f32 %v1181, %v1155
      %v1188 = vmul.f32 %v1181, %v1156
      %v1189 = vmul.f32 %v1181, %v1157
      %v1190 = vmul.f32 %v1181, %v1158
      %v1191 = vadd.f32 %v1167, %v1183
      %v1192 = vadd.f32 %v1168, %v1184
      %v1193 = vadd.f32 %v1169, %v1185
      %v1194 = vadd.f32 %v1170, %v1186
      %v1195 = vadd.f32 %v1171, %v1187
      %v1196 = vadd.f32 %v1172, %v1188
      %v1197 = vadd.f32 %v1173, %v1189
      %v1198 = vadd.f32 %v1174, %v1190
      %1199 = vrot.lane.b32.xlu0 %v1191, 124
      %v1200 = vpop.permute.xlu0 %1199
      %1201 = vrot.lane.b32.xlu0 %v1195, 124
      %v1202 = vpop.permute.xlu0 %1201
      %1203 = vrot.lane.b32.xlu0 %v1192, 124
      %v1204 = vpop.permute.xlu0 %1203
      %1205 = vrot.lane.b32.xlu0 %v1196, 124
      %v1206 = vpop.permute.xlu0 %1205
      %1207 = vrot.lane.b32.xlu0 %v1193, 124
      %v1208 = vpop.permute.xlu0 %1207
      %1209 = vrot.lane.b32.xlu0 %v1197, 124
      %v1210 = vpop.permute.xlu0 %1209
      %1211 = vrot.lane.b32.xlu0 %v1194, 124
      %v1212 = vpop.permute.xlu0 %1211
      %1213 = vrot.lane.b32.xlu0 %v1198, 124
      %v1214 = vpop.permute.xlu0 %1213
      %vm1215 = vcmp.lt.s32.totalorder %v172, 124
      %v1216 = vsel %vm1215, %v1208, %v1212
      %v1217 = vsel %vm1215, %v1210, %v1214
      %v1218 = vsel %vm1215, %v1204, %v1208
      %v1219 = vsel %vm1215, %v1206, %v1210
      %v1220 = vsel %vm1215, %v1200, %v1204
      %v1221 = vsel %vm1215, %v1202, %v1206
      %v1222 = vsel %vm1215, %v1212, %v1200
      %v1223 = vsel %vm1215, %v1214, %v1202
      %1224 = vrot.lane.b32.xlu0 %v1191, 4
      %v1225 = vpop.permute.xlu0 %1224
      %1226 = vrot.lane.b32.xlu0 %v1195, 4
      %v1227 = vpop.permute.xlu0 %1226
      %1228 = vrot.lane.b32.xlu0 %v1192, 4
      %v1229 = vpop.permute.xlu0 %1228
      %1230 = vrot.lane.b32.xlu0 %v1196, 4
      %v1231 = vpop.permute.xlu0 %1230
      %1232 = vrot.lane.b32.xlu0 %v1193, 4
      %v1233 = vpop.permute.xlu0 %1232
      %1234 = vrot.lane.b32.xlu0 %v1197, 4
      %v1235 = vpop.permute.xlu0 %1234
      %1236 = vrot.lane.b32.xlu0 %v1194, 4
      %v1237 = vpop.permute.xlu0 %1236
      %1238 = vrot.lane.b32.xlu0 %v1198, 4
      %v1239 = vpop.permute.xlu0 %1238
      %vm1240 = vcmp.lt.s32.totalorder %v172, 4
      %v1241 = vsel %vm1240, %v1233, %v1237
      %v1242 = vsel %vm1240, %v1235, %v1239
      %v1243 = vsel %vm1240, %v1229, %v1233
      %v1244 = vsel %vm1240, %v1231, %v1235
      %v1245 = vsel %vm1240, %v1225, %v1229
      %v1246 = vsel %vm1240, %v1227, %v1231
      %v1247 = vsel %vm1240, %v1237, %v1225
      %v1248 = vsel %vm1240, %v1239, %v1227
      %v1249 = vsub.f32 0.0, %v1220
      %v1250 = vsub.f32 0.0, %v1218
      %v1251 = vsub.f32 0.0, %v1216
      %v1252 = vsub.f32 0.0, %v1222
      %v1253 = vsub.f32 0.0, %v1221
      %v1254 = vsub.f32 0.0, %v1219
      %v1255 = vsub.f32 0.0, %v1217
      %v1256 = vsub.f32 0.0, %v1223
      %v1257 = vsel %vm564, %v1247, %v1249
      %v1258 = vsel %vm565, %v1245, %v1250
      %v1259 = vsel %vm566, %v1243, %v1251
      %v1260 = vsel %vm567, %v1241, %v1252
      %v1261 = vsel %vm564, %v1248, %v1253
      %v1262 = vsel %vm565, %v1246, %v1254
      %v1263 = vsel %vm566, %v1244, %v1255
      %v1264 = vsel %vm567, %v1242, %v1256
      %1265 = vset.pattern.permute.xlu0 15
      %1266 = vperm.xlu0 %1265, %v320
      %v1267 = vpop.permute.xlu0 %1266
      %1269 = vset.pattern.permute.xlu0 15
      %1270 = vperm.xlu0 %1269, %v321
      %v1271 = vpop.permute.xlu0 %1270
      %v1273 = vmul.f32 %v1267, %v1191
      %v1274 = vmul.f32 %v1267, %v1192
      %v1275 = vmul.f32 %v1267, %v1193
      %v1276 = vmul.f32 %v1267, %v1194
      %v1277 = vmul.f32 %v1271, %v1195
      %v1278 = vmul.f32 %v1271, %v1196
      %v1279 = vmul.f32 %v1271, %v1197
      %v1280 = vmul.f32 %v1271, %v1198
      %1281 = vset.pattern.permute.xlu0 15
      %1282 = vperm.xlu0 %1281, %v322
      %v1283 = vpop.permute.xlu0 %1282
      %1285 = vset.pattern.permute.xlu0 15
      %1286 = vperm.xlu0 %1285, %v323
      %v1287 = vpop.permute.xlu0 %1286
      %v1289 = vmul.f32 %v1283, %v1257
      %v1290 = vmul.f32 %v1283, %v1258
      %v1291 = vmul.f32 %v1283, %v1259
      %v1292 = vmul.f32 %v1283, %v1260
      %v1293 = vmul.f32 %v1287, %v1261
      %v1294 = vmul.f32 %v1287, %v1262
      %v1295 = vmul.f32 %v1287, %v1263
      %v1296 = vmul.f32 %v1287, %v1264
      %v1297 = vadd.f32 %v1273, %v1289
      %v1298 = vadd.f32 %v1274, %v1290
      %v1299 = vadd.f32 %v1275, %v1291
      %v1300 = vadd.f32 %v1276, %v1292
      %v1301 = vadd.f32 %v1277, %v1293
      %v1302 = vadd.f32 %v1278, %v1294
      %v1303 = vadd.f32 %v1279, %v1295
      %v1304 = vadd.f32 %v1280, %v1296
      %1305 = vrot.lane.b32.xlu0 %v1297, 126
      %v1306 = vpop.permute.xlu0 %1305
      %1307 = vrot.lane.b32.xlu0 %v1301, 126
      %v1308 = vpop.permute.xlu0 %1307
      %1309 = vrot.lane.b32.xlu0 %v1298, 126
      %v1310 = vpop.permute.xlu0 %1309
      %1311 = vrot.lane.b32.xlu0 %v1302, 126
      %v1312 = vpop.permute.xlu0 %1311
      %1313 = vrot.lane.b32.xlu0 %v1299, 126
      %v1314 = vpop.permute.xlu0 %1313
      %1315 = vrot.lane.b32.xlu0 %v1303, 126
      %v1316 = vpop.permute.xlu0 %1315
      %1317 = vrot.lane.b32.xlu0 %v1300, 126
      %v1318 = vpop.permute.xlu0 %1317
      %1319 = vrot.lane.b32.xlu0 %v1304, 126
      %v1320 = vpop.permute.xlu0 %1319
      %vm1321 = vcmp.lt.s32.totalorder %v172, 126
      %v1322 = vsel %vm1321, %v1314, %v1318
      %v1323 = vsel %vm1321, %v1316, %v1320
      %v1324 = vsel %vm1321, %v1310, %v1314
      %v1325 = vsel %vm1321, %v1312, %v1316
      %v1326 = vsel %vm1321, %v1306, %v1310
      %v1327 = vsel %vm1321, %v1308, %v1312
      %v1328 = vsel %vm1321, %v1318, %v1306
      %v1329 = vsel %vm1321, %v1320, %v1308
      %1330 = vrot.lane.b32.xlu0 %v1297, 2
      %v1331 = vpop.permute.xlu0 %1330
      %1332 = vrot.lane.b32.xlu0 %v1301, 2
      %v1333 = vpop.permute.xlu0 %1332
      %1334 = vrot.lane.b32.xlu0 %v1298, 2
      %v1335 = vpop.permute.xlu0 %1334
      %1336 = vrot.lane.b32.xlu0 %v1302, 2
      %v1337 = vpop.permute.xlu0 %1336
      %1338 = vrot.lane.b32.xlu0 %v1299, 2
      %v1339 = vpop.permute.xlu0 %1338
      %1340 = vrot.lane.b32.xlu0 %v1303, 2
      %v1341 = vpop.permute.xlu0 %1340
      %1342 = vrot.lane.b32.xlu0 %v1300, 2
      %v1343 = vpop.permute.xlu0 %1342
      %1344 = vrot.lane.b32.xlu0 %v1304, 2
      %v1345 = vpop.permute.xlu0 %1344
      %vm1346 = vcmp.lt.s32.totalorder %v172, 2
      %v1347 = vsel %vm1346, %v1339, %v1343
      %v1348 = vsel %vm1346, %v1341, %v1345
      %v1349 = vsel %vm1346, %v1335, %v1339
      %v1350 = vsel %vm1346, %v1337, %v1341
      %v1351 = vsel %vm1346, %v1331, %v1335
      %v1352 = vsel %vm1346, %v1333, %v1337
      %v1353 = vsel %vm1346, %v1343, %v1331
      %v1354 = vsel %vm1346, %v1345, %v1333
      %v1355 = vsub.f32 0.0, %v1326
      %v1356 = vsub.f32 0.0, %v1324
      %v1357 = vsub.f32 0.0, %v1322
      %v1358 = vsub.f32 0.0, %v1328
      %v1359 = vsub.f32 0.0, %v1327
      %v1360 = vsub.f32 0.0, %v1325
      %v1361 = vsub.f32 0.0, %v1323
      %v1362 = vsub.f32 0.0, %v1329
      %v1363 = vsel %vm604, %v1353, %v1355
      %v1364 = vsel %vm605, %v1351, %v1356
      %v1365 = vsel %vm606, %v1349, %v1357
      %v1366 = vsel %vm607, %v1347, %v1358
      %v1367 = vsel %vm604, %v1354, %v1359
      %v1368 = vsel %vm605, %v1352, %v1360
      %v1369 = vsel %vm606, %v1350, %v1361
      %v1370 = vsel %vm607, %v1348, %v1362
      %1371 = vset.pattern.permute.xlu0 16
      %1372 = vperm.xlu0 %1371, %v320
      %v1373 = vpop.permute.xlu0 %1372
      %1375 = vset.pattern.permute.xlu0 16
      %1376 = vperm.xlu0 %1375, %v321
      %v1377 = vpop.permute.xlu0 %1376
      %v1379 = vmul.f32 %v1373, %v1297
      %v1380 = vmul.f32 %v1373, %v1298
      %v1381 = vmul.f32 %v1373, %v1299
      %v1382 = vmul.f32 %v1373, %v1300
      %v1383 = vmul.f32 %v1377, %v1301
      %v1384 = vmul.f32 %v1377, %v1302
      %v1385 = vmul.f32 %v1377, %v1303
      %v1386 = vmul.f32 %v1377, %v1304
      %1387 = vset.pattern.permute.xlu0 16
      %1388 = vperm.xlu0 %1387, %v322
      %v1389 = vpop.permute.xlu0 %1388
      %1391 = vset.pattern.permute.xlu0 16
      %1392 = vperm.xlu0 %1391, %v323
      %v1393 = vpop.permute.xlu0 %1392
      %v1395 = vmul.f32 %v1389, %v1363
      %v1396 = vmul.f32 %v1389, %v1364
      %v1397 = vmul.f32 %v1389, %v1365
      %v1398 = vmul.f32 %v1389, %v1366
      %v1399 = vmul.f32 %v1393, %v1367
      %v1400 = vmul.f32 %v1393, %v1368
      %v1401 = vmul.f32 %v1393, %v1369
      %v1402 = vmul.f32 %v1393, %v1370
      %v1403 = vadd.f32 %v1379, %v1395
      %v1404 = vadd.f32 %v1380, %v1396
      %v1405 = vadd.f32 %v1381, %v1397
      %v1406 = vadd.f32 %v1382, %v1398
      %v1407 = vadd.f32 %v1383, %v1399
      %v1408 = vadd.f32 %v1384, %v1400
      %v1409 = vadd.f32 %v1385, %v1401
      %v1410 = vadd.f32 %v1386, %v1402
      %1411 = vrot.lane.b32.xlu0 %v1403, 127
      %v1412 = vpop.permute.xlu0 %1411
      %1413 = vrot.lane.b32.xlu0 %v1407, 127
      %v1414 = vpop.permute.xlu0 %1413
      %1415 = vrot.lane.b32.xlu0 %v1404, 127
      %v1416 = vpop.permute.xlu0 %1415
      %1417 = vrot.lane.b32.xlu0 %v1408, 127
      %v1418 = vpop.permute.xlu0 %1417
      %1419 = vrot.lane.b32.xlu0 %v1405, 127
      %v1420 = vpop.permute.xlu0 %1419
      %1421 = vrot.lane.b32.xlu0 %v1409, 127
      %v1422 = vpop.permute.xlu0 %1421
      %1423 = vrot.lane.b32.xlu0 %v1406, 127
      %v1424 = vpop.permute.xlu0 %1423
      %1425 = vrot.lane.b32.xlu0 %v1410, 127
      %v1426 = vpop.permute.xlu0 %1425
      %vm1427 = vcmp.lt.s32.totalorder %v172, 127
      %v1428 = vsel %vm1427, %v1420, %v1424
      %v1429 = vsel %vm1427, %v1422, %v1426
      %v1430 = vsel %vm1427, %v1416, %v1420
      %v1431 = vsel %vm1427, %v1418, %v1422
      %v1432 = vsel %vm1427, %v1412, %v1416
      %v1433 = vsel %vm1427, %v1414, %v1418
      %v1434 = vsel %vm1427, %v1424, %v1412
      %v1435 = vsel %vm1427, %v1426, %v1414
      %1436 = vrot.lane.b32.xlu0 %v1403, 1
      %v1437 = vpop.permute.xlu0 %1436
      %1438 = vrot.lane.b32.xlu0 %v1407, 1
      %v1439 = vpop.permute.xlu0 %1438
      %1440 = vrot.lane.b32.xlu0 %v1404, 1
      %v1441 = vpop.permute.xlu0 %1440
      %1442 = vrot.lane.b32.xlu0 %v1408, 1
      %v1443 = vpop.permute.xlu0 %1442
      %1444 = vrot.lane.b32.xlu0 %v1405, 1
      %v1445 = vpop.permute.xlu0 %1444
      %1446 = vrot.lane.b32.xlu0 %v1409, 1
      %v1447 = vpop.permute.xlu0 %1446
      %1448 = vrot.lane.b32.xlu0 %v1406, 1
      %v1449 = vpop.permute.xlu0 %1448
      %1450 = vrot.lane.b32.xlu0 %v1410, 1
      %v1451 = vpop.permute.xlu0 %1450
      %vm1452 = vcmp.lt.s32.totalorder %v172, 1
      %v1453 = vsel %vm1452, %v1445, %v1449
      %v1454 = vsel %vm1452, %v1447, %v1451
      %v1455 = vsel %vm1452, %v1441, %v1445
      %v1456 = vsel %vm1452, %v1443, %v1447
      %v1457 = vsel %vm1452, %v1437, %v1441
      %v1458 = vsel %vm1452, %v1439, %v1443
      %v1459 = vsel %vm1452, %v1449, %v1437
      %v1460 = vsel %vm1452, %v1451, %v1439
      %v1461 = vsub.f32 0.0, %v1432
      %v1462 = vsub.f32 0.0, %v1430
      %v1463 = vsub.f32 0.0, %v1428
      %v1464 = vsub.f32 0.0, %v1434
      %v1465 = vsub.f32 0.0, %v1433
      %v1466 = vsub.f32 0.0, %v1431
      %v1467 = vsub.f32 0.0, %v1429
      %v1468 = vsub.f32 0.0, %v1435
      %v1469 = vsel %vm644, %v1459, %v1461
      %v1470 = vsel %vm645, %v1457, %v1462
      %v1471 = vsel %vm646, %v1455, %v1463
      %v1472 = vsel %vm647, %v1453, %v1464
      %v1473 = vsel %vm644, %v1460, %v1465
      %v1474 = vsel %vm645, %v1458, %v1466
      %v1475 = vsel %vm646, %v1456, %v1467
      %v1476 = vsel %vm647, %v1454, %v1468
      %1477 = vset.pattern.permute.xlu0 17
      %1478 = vperm.xlu0 %1477, %v320
      %v1479 = vpop.permute.xlu0 %1478
      %1481 = vset.pattern.permute.xlu0 17
      %1482 = vperm.xlu0 %1481, %v321
      %v1483 = vpop.permute.xlu0 %1482
      %v1485 = vmul.f32 %v1479, %v1403
      %v1486 = vmul.f32 %v1479, %v1404
      %v1487 = vmul.f32 %v1479, %v1405
      %v1488 = vmul.f32 %v1479, %v1406
      %v1489 = vmul.f32 %v1483, %v1407
      %v1490 = vmul.f32 %v1483, %v1408
      %v1491 = vmul.f32 %v1483, %v1409
      %v1492 = vmul.f32 %v1483, %v1410
      %1493 = vset.pattern.permute.xlu0 17
      %1494 = vperm.xlu0 %1493, %v322
      %v1495 = vpop.permute.xlu0 %1494
      %1497 = vset.pattern.permute.xlu0 17
      %1498 = vperm.xlu0 %1497, %v323
      %v1499 = vpop.permute.xlu0 %1498
      %v1501 = vmul.f32 %v1495, %v1469
      %v1502 = vmul.f32 %v1495, %v1470
      %v1503 = vmul.f32 %v1495, %v1471
      %v1504 = vmul.f32 %v1495, %v1472
      %v1505 = vmul.f32 %v1499, %v1473
      %v1506 = vmul.f32 %v1499, %v1474
      %v1507 = vmul.f32 %v1499, %v1475
      %v1508 = vmul.f32 %v1499, %v1476
      %v1509 = vadd.f32 %v1485, %v1501
      %v1510 = vadd.f32 %v1486, %v1502
      %v1511 = vadd.f32 %v1487, %v1503
      %v1512 = vadd.f32 %v1488, %v1504
      %v1513 = vadd.f32 %v1489, %v1505
      %v1514 = vadd.f32 %v1490, %v1506
      %v1515 = vadd.f32 %v1491, %v1507
      %v1516 = vadd.f32 %v1492, %v1508
      %v1517 = vmul.f32 %v1509, %v216
      %v1518 = vmul.f32 %v1510, %v217
      %v1519 = vmul.f32 %v1511, %v218
      %v1520 = vmul.f32 %v1512, %v219
      %v1521 = vmul.f32 %v1513, %v216
      %v1522 = vmul.f32 %v1514, %v217
      %v1523 = vmul.f32 %v1515, %v218
      %v1524 = vmul.f32 %v1516, %v219
      %v1525 = vsub.f32 0.0, %v1519
      %v1526 = vsub.f32 0.0, %v1520
      %v1527 = vsub.f32 0.0, %v1517
      %v1528 = vsub.f32 0.0, %v1518
      %v1529 = vsub.f32 0.0, %v1523
      %v1530 = vsub.f32 0.0, %v1524
      %v1531 = vsub.f32 0.0, %v1521
      %v1532 = vsub.f32 0.0, %v1522
      %v1533 = vsel %vm328, %v1519, %v1525
      %v1534 = vsel %vm329, %v1520, %v1526
      %v1535 = vsel %vm330, %v1517, %v1527
      %v1536 = vsel %vm331, %v1518, %v1528
      %v1537 = vsel %vm328, %v1523, %v1529
      %v1538 = vsel %vm329, %v1524, %v1530
      %v1539 = vsel %vm330, %v1521, %v1531
      %v1540 = vsel %vm331, %v1522, %v1532
      %1541 = vset.pattern.permute.xlu0 18
      %1542 = vperm.xlu0 %1541, %v320
      %v1543 = vpop.permute.xlu0 %1542
      %1545 = vset.pattern.permute.xlu0 18
      %1546 = vperm.xlu0 %1545, %v321
      %v1547 = vpop.permute.xlu0 %1546
      %v1549 = vmul.f32 %v1543, %v1517
      %v1550 = vmul.f32 %v1543, %v1518
      %v1551 = vmul.f32 %v1543, %v1519
      %v1552 = vmul.f32 %v1543, %v1520
      %v1553 = vmul.f32 %v1547, %v1521
      %v1554 = vmul.f32 %v1547, %v1522
      %v1555 = vmul.f32 %v1547, %v1523
      %v1556 = vmul.f32 %v1547, %v1524
      %1557 = vset.pattern.permute.xlu0 18
      %1558 = vperm.xlu0 %1557, %v322
      %v1559 = vpop.permute.xlu0 %1558
      %1561 = vset.pattern.permute.xlu0 18
      %1562 = vperm.xlu0 %1561, %v323
      %v1563 = vpop.permute.xlu0 %1562
      %v1565 = vmul.f32 %v1559, %v1533
      %v1566 = vmul.f32 %v1559, %v1534
      %v1567 = vmul.f32 %v1559, %v1535
      %v1568 = vmul.f32 %v1559, %v1536
      %v1569 = vmul.f32 %v1563, %v1537
      %v1570 = vmul.f32 %v1563, %v1538
      %v1571 = vmul.f32 %v1563, %v1539
      %v1572 = vmul.f32 %v1563, %v1540
      %v1573 = vadd.f32 %v1549, %v1565
      %v1574 = vadd.f32 %v1550, %v1566
      %v1575 = vadd.f32 %v1551, %v1567
      %v1576 = vadd.f32 %v1552, %v1568
      %v1577 = vadd.f32 %v1553, %v1569
      %v1578 = vadd.f32 %v1554, %v1570
      %v1579 = vadd.f32 %v1555, %v1571
      %v1580 = vadd.f32 %v1556, %v1572
      %v1581 = vsub.f32 0.0, %v1574
      %v1582 = vsub.f32 0.0, %v1575
      %v1583 = vsub.f32 0.0, %v1576
      %v1584 = vsub.f32 0.0, %v1573
      %v1585 = vsub.f32 0.0, %v1578
      %v1586 = vsub.f32 0.0, %v1579
      %v1587 = vsub.f32 0.0, %v1580
      %v1588 = vsub.f32 0.0, %v1577
      %v1589 = vsel %vm364, %v1576, %v1581
      %v1590 = vsel %vm365, %v1573, %v1582
      %v1591 = vsel %vm366, %v1574, %v1583
      %v1592 = vsel %vm367, %v1575, %v1584
      %v1593 = vsel %vm364, %v1580, %v1585
      %v1594 = vsel %vm365, %v1577, %v1586
      %v1595 = vsel %vm366, %v1578, %v1587
      %v1596 = vsel %vm367, %v1579, %v1588
      %1597 = vset.pattern.permute.xlu0 19
      %1598 = vperm.xlu0 %1597, %v320
      %v1599 = vpop.permute.xlu0 %1598
      %1601 = vset.pattern.permute.xlu0 19
      %1602 = vperm.xlu0 %1601, %v321
      %v1603 = vpop.permute.xlu0 %1602
      %v1605 = vmul.f32 %v1599, %v1573
      %v1606 = vmul.f32 %v1599, %v1574
      %v1607 = vmul.f32 %v1599, %v1575
      %v1608 = vmul.f32 %v1599, %v1576
      %v1609 = vmul.f32 %v1603, %v1577
      %v1610 = vmul.f32 %v1603, %v1578
      %v1611 = vmul.f32 %v1603, %v1579
      %v1612 = vmul.f32 %v1603, %v1580
      %1613 = vset.pattern.permute.xlu0 19
      %1614 = vperm.xlu0 %1613, %v322
      %v1615 = vpop.permute.xlu0 %1614
      %1617 = vset.pattern.permute.xlu0 19
      %1618 = vperm.xlu0 %1617, %v323
      %v1619 = vpop.permute.xlu0 %1618
      %v1621 = vmul.f32 %v1615, %v1589
      %v1622 = vmul.f32 %v1615, %v1590
      %v1623 = vmul.f32 %v1615, %v1591
      %v1624 = vmul.f32 %v1615, %v1592
      %v1625 = vmul.f32 %v1619, %v1593
      %v1626 = vmul.f32 %v1619, %v1594
      %v1627 = vmul.f32 %v1619, %v1595
      %v1628 = vmul.f32 %v1619, %v1596
      %v1629 = vadd.f32 %v1605, %v1621
      %v1630 = vadd.f32 %v1606, %v1622
      %v1631 = vadd.f32 %v1607, %v1623
      %v1632 = vadd.f32 %v1608, %v1624
      %v1633 = vadd.f32 %v1609, %v1625
      %v1634 = vadd.f32 %v1610, %v1626
      %v1635 = vadd.f32 %v1611, %v1627
      %v1636 = vadd.f32 %v1612, %v1628
      %1637 = vrot.lane.b32.xlu0 %v1629, 64
      %v1638 = vpop.permute.xlu0 %1637
      %1639 = vrot.lane.b32.xlu0 %v1633, 64
      %v1640 = vpop.permute.xlu0 %1639
      %1641 = vrot.lane.b32.xlu0 %v1630, 64
      %v1642 = vpop.permute.xlu0 %1641
      %1643 = vrot.lane.b32.xlu0 %v1634, 64
      %v1644 = vpop.permute.xlu0 %1643
      %1645 = vrot.lane.b32.xlu0 %v1631, 64
      %v1646 = vpop.permute.xlu0 %1645
      %1647 = vrot.lane.b32.xlu0 %v1635, 64
      %v1648 = vpop.permute.xlu0 %1647
      %1649 = vrot.lane.b32.xlu0 %v1632, 64
      %v1650 = vpop.permute.xlu0 %1649
      %1651 = vrot.lane.b32.xlu0 %v1636, 64
      %v1652 = vpop.permute.xlu0 %1651
      %v1653 = vsel %vm816, %v1646, %v1650
      %v1654 = vsel %vm816, %v1648, %v1652
      %v1655 = vsel %vm816, %v1642, %v1646
      %v1656 = vsel %vm816, %v1644, %v1648
      %v1657 = vsel %vm816, %v1638, %v1642
      %v1658 = vsel %vm816, %v1640, %v1644
      %v1659 = vsel %vm816, %v1650, %v1638
      %v1660 = vsel %vm816, %v1652, %v1640
      %v1661 = vsub.f32 0.0, %v1657
      %v1662 = vsub.f32 0.0, %v1655
      %v1663 = vsub.f32 0.0, %v1653
      %v1664 = vsub.f32 0.0, %v1659
      %v1665 = vsub.f32 0.0, %v1658
      %v1666 = vsub.f32 0.0, %v1656
      %v1667 = vsub.f32 0.0, %v1654
      %v1668 = vsub.f32 0.0, %v1660
      %v1669 = vsel %vm404, %v1659, %v1661
      %v1670 = vsel %vm405, %v1657, %v1662
      %v1671 = vsel %vm406, %v1655, %v1663
      %v1672 = vsel %vm407, %v1653, %v1664
      %v1673 = vsel %vm404, %v1660, %v1665
      %v1674 = vsel %vm405, %v1658, %v1666
      %v1675 = vsel %vm406, %v1656, %v1667
      %v1676 = vsel %vm407, %v1654, %v1668
      %1677 = vset.pattern.permute.xlu0 20
      %1678 = vperm.xlu0 %1677, %v320
      %v1679 = vpop.permute.xlu0 %1678
      %1681 = vset.pattern.permute.xlu0 20
      %1682 = vperm.xlu0 %1681, %v321
      %v1683 = vpop.permute.xlu0 %1682
      %v1685 = vmul.f32 %v1679, %v1629
      %v1686 = vmul.f32 %v1679, %v1630
      %v1687 = vmul.f32 %v1679, %v1631
      %v1688 = vmul.f32 %v1679, %v1632
      %v1689 = vmul.f32 %v1683, %v1633
      %v1690 = vmul.f32 %v1683, %v1634
      %v1691 = vmul.f32 %v1683, %v1635
      %v1692 = vmul.f32 %v1683, %v1636
      %1693 = vset.pattern.permute.xlu0 20
      %1694 = vperm.xlu0 %1693, %v322
      %v1695 = vpop.permute.xlu0 %1694
      %1697 = vset.pattern.permute.xlu0 20
      %1698 = vperm.xlu0 %1697, %v323
      %v1699 = vpop.permute.xlu0 %1698
      %v1701 = vmul.f32 %v1695, %v1669
      %v1702 = vmul.f32 %v1695, %v1670
      %v1703 = vmul.f32 %v1695, %v1671
      %v1704 = vmul.f32 %v1695, %v1672
      %v1705 = vmul.f32 %v1699, %v1673
      %v1706 = vmul.f32 %v1699, %v1674
      %v1707 = vmul.f32 %v1699, %v1675
      %v1708 = vmul.f32 %v1699, %v1676
      %v1709 = vadd.f32 %v1685, %v1701
      %v1710 = vadd.f32 %v1686, %v1702
      %v1711 = vadd.f32 %v1687, %v1703
      %v1712 = vadd.f32 %v1688, %v1704
      %v1713 = vadd.f32 %v1689, %v1705
      %v1714 = vadd.f32 %v1690, %v1706
      %v1715 = vadd.f32 %v1691, %v1707
      %v1716 = vadd.f32 %v1692, %v1708
      %1717 = vrot.lane.b32.xlu0 %v1709, 96
      %v1718 = vpop.permute.xlu0 %1717
      %1719 = vrot.lane.b32.xlu0 %v1713, 96
      %v1720 = vpop.permute.xlu0 %1719
      %1721 = vrot.lane.b32.xlu0 %v1710, 96
      %v1722 = vpop.permute.xlu0 %1721
      %1723 = vrot.lane.b32.xlu0 %v1714, 96
      %v1724 = vpop.permute.xlu0 %1723
      %1725 = vrot.lane.b32.xlu0 %v1711, 96
      %v1726 = vpop.permute.xlu0 %1725
      %1727 = vrot.lane.b32.xlu0 %v1715, 96
      %v1728 = vpop.permute.xlu0 %1727
      %1729 = vrot.lane.b32.xlu0 %v1712, 96
      %v1730 = vpop.permute.xlu0 %1729
      %1731 = vrot.lane.b32.xlu0 %v1716, 96
      %v1732 = vpop.permute.xlu0 %1731
      %v1733 = vsel %vm897, %v1726, %v1730
      %v1734 = vsel %vm897, %v1728, %v1732
      %v1735 = vsel %vm897, %v1722, %v1726
      %v1736 = vsel %vm897, %v1724, %v1728
      %v1737 = vsel %vm897, %v1718, %v1722
      %v1738 = vsel %vm897, %v1720, %v1724
      %v1739 = vsel %vm897, %v1730, %v1718
      %v1740 = vsel %vm897, %v1732, %v1720
      %1741 = vrot.lane.b32.xlu0 %v1709, 32
      %v1742 = vpop.permute.xlu0 %1741
      %1743 = vrot.lane.b32.xlu0 %v1713, 32
      %v1744 = vpop.permute.xlu0 %1743
      %1745 = vrot.lane.b32.xlu0 %v1710, 32
      %v1746 = vpop.permute.xlu0 %1745
      %1747 = vrot.lane.b32.xlu0 %v1714, 32
      %v1748 = vpop.permute.xlu0 %1747
      %1749 = vrot.lane.b32.xlu0 %v1711, 32
      %v1750 = vpop.permute.xlu0 %1749
      %1751 = vrot.lane.b32.xlu0 %v1715, 32
      %v1752 = vpop.permute.xlu0 %1751
      %1753 = vrot.lane.b32.xlu0 %v1712, 32
      %v1754 = vpop.permute.xlu0 %1753
      %1755 = vrot.lane.b32.xlu0 %v1716, 32
      %v1756 = vpop.permute.xlu0 %1755
      %v1757 = vsel %vm922, %v1750, %v1754
      %v1758 = vsel %vm922, %v1752, %v1756
      %v1759 = vsel %vm922, %v1746, %v1750
      %v1760 = vsel %vm922, %v1748, %v1752
      %v1761 = vsel %vm922, %v1742, %v1746
      %v1762 = vsel %vm922, %v1744, %v1748
      %v1763 = vsel %vm922, %v1754, %v1742
      %v1764 = vsel %vm922, %v1756, %v1744
      %v1765 = vsub.f32 0.0, %v1737
      %v1766 = vsub.f32 0.0, %v1735
      %v1767 = vsub.f32 0.0, %v1733
      %v1768 = vsub.f32 0.0, %v1739
      %v1769 = vsub.f32 0.0, %v1738
      %v1770 = vsub.f32 0.0, %v1736
      %v1771 = vsub.f32 0.0, %v1734
      %v1772 = vsub.f32 0.0, %v1740
      %v1773 = vsel %vm444, %v1763, %v1765
      %v1774 = vsel %vm445, %v1761, %v1766
      %v1775 = vsel %vm446, %v1759, %v1767
      %v1776 = vsel %vm447, %v1757, %v1768
      %v1777 = vsel %vm444, %v1764, %v1769
      %v1778 = vsel %vm445, %v1762, %v1770
      %v1779 = vsel %vm446, %v1760, %v1771
      %v1780 = vsel %vm447, %v1758, %v1772
      %1781 = vset.pattern.permute.xlu0 21
      %1782 = vperm.xlu0 %1781, %v320
      %v1783 = vpop.permute.xlu0 %1782
      %1785 = vset.pattern.permute.xlu0 21
      %1786 = vperm.xlu0 %1785, %v321
      %v1787 = vpop.permute.xlu0 %1786
      %v1789 = vmul.f32 %v1783, %v1709
      %v1790 = vmul.f32 %v1783, %v1710
      %v1791 = vmul.f32 %v1783, %v1711
      %v1792 = vmul.f32 %v1783, %v1712
      %v1793 = vmul.f32 %v1787, %v1713
      %v1794 = vmul.f32 %v1787, %v1714
      %v1795 = vmul.f32 %v1787, %v1715
      %v1796 = vmul.f32 %v1787, %v1716
      %1797 = vset.pattern.permute.xlu0 21
      %1798 = vperm.xlu0 %1797, %v322
      %v1799 = vpop.permute.xlu0 %1798
      %1801 = vset.pattern.permute.xlu0 21
      %1802 = vperm.xlu0 %1801, %v323
      %v1803 = vpop.permute.xlu0 %1802
      %v1805 = vmul.f32 %v1799, %v1773
      %v1806 = vmul.f32 %v1799, %v1774
      %v1807 = vmul.f32 %v1799, %v1775
      %v1808 = vmul.f32 %v1799, %v1776
      %v1809 = vmul.f32 %v1803, %v1777
      %v1810 = vmul.f32 %v1803, %v1778
      %v1811 = vmul.f32 %v1803, %v1779
      %v1812 = vmul.f32 %v1803, %v1780
      %v1813 = vadd.f32 %v1789, %v1805
      %v1814 = vadd.f32 %v1790, %v1806
      %v1815 = vadd.f32 %v1791, %v1807
      %v1816 = vadd.f32 %v1792, %v1808
      %v1817 = vadd.f32 %v1793, %v1809
      %v1818 = vadd.f32 %v1794, %v1810
      %v1819 = vadd.f32 %v1795, %v1811
      %v1820 = vadd.f32 %v1796, %v1812
      %1821 = vrot.lane.b32.xlu0 %v1813, 112
      %v1822 = vpop.permute.xlu0 %1821
      %1823 = vrot.lane.b32.xlu0 %v1817, 112
      %v1824 = vpop.permute.xlu0 %1823
      %1825 = vrot.lane.b32.xlu0 %v1814, 112
      %v1826 = vpop.permute.xlu0 %1825
      %1827 = vrot.lane.b32.xlu0 %v1818, 112
      %v1828 = vpop.permute.xlu0 %1827
      %1829 = vrot.lane.b32.xlu0 %v1815, 112
      %v1830 = vpop.permute.xlu0 %1829
      %1831 = vrot.lane.b32.xlu0 %v1819, 112
      %v1832 = vpop.permute.xlu0 %1831
      %1833 = vrot.lane.b32.xlu0 %v1816, 112
      %v1834 = vpop.permute.xlu0 %1833
      %1835 = vrot.lane.b32.xlu0 %v1820, 112
      %v1836 = vpop.permute.xlu0 %1835
      %v1837 = vsel %vm1003, %v1830, %v1834
      %v1838 = vsel %vm1003, %v1832, %v1836
      %v1839 = vsel %vm1003, %v1826, %v1830
      %v1840 = vsel %vm1003, %v1828, %v1832
      %v1841 = vsel %vm1003, %v1822, %v1826
      %v1842 = vsel %vm1003, %v1824, %v1828
      %v1843 = vsel %vm1003, %v1834, %v1822
      %v1844 = vsel %vm1003, %v1836, %v1824
      %1845 = vrot.lane.b32.xlu0 %v1813, 16
      %v1846 = vpop.permute.xlu0 %1845
      %1847 = vrot.lane.b32.xlu0 %v1817, 16
      %v1848 = vpop.permute.xlu0 %1847
      %1849 = vrot.lane.b32.xlu0 %v1814, 16
      %v1850 = vpop.permute.xlu0 %1849
      %1851 = vrot.lane.b32.xlu0 %v1818, 16
      %v1852 = vpop.permute.xlu0 %1851
      %1853 = vrot.lane.b32.xlu0 %v1815, 16
      %v1854 = vpop.permute.xlu0 %1853
      %1855 = vrot.lane.b32.xlu0 %v1819, 16
      %v1856 = vpop.permute.xlu0 %1855
      %1857 = vrot.lane.b32.xlu0 %v1816, 16
      %v1858 = vpop.permute.xlu0 %1857
      %1859 = vrot.lane.b32.xlu0 %v1820, 16
      %v1860 = vpop.permute.xlu0 %1859
      %v1861 = vsel %vm1028, %v1854, %v1858
      %v1862 = vsel %vm1028, %v1856, %v1860
      %v1863 = vsel %vm1028, %v1850, %v1854
      %v1864 = vsel %vm1028, %v1852, %v1856
      %v1865 = vsel %vm1028, %v1846, %v1850
      %v1866 = vsel %vm1028, %v1848, %v1852
      %v1867 = vsel %vm1028, %v1858, %v1846
      %v1868 = vsel %vm1028, %v1860, %v1848
      %v1869 = vsub.f32 0.0, %v1841
      %v1870 = vsub.f32 0.0, %v1839
      %v1871 = vsub.f32 0.0, %v1837
      %v1872 = vsub.f32 0.0, %v1843
      %v1873 = vsub.f32 0.0, %v1842
      %v1874 = vsub.f32 0.0, %v1840
      %v1875 = vsub.f32 0.0, %v1838
      %v1876 = vsub.f32 0.0, %v1844
      %v1877 = vsel %vm484, %v1867, %v1869
      %v1878 = vsel %vm485, %v1865, %v1870
      %v1879 = vsel %vm486, %v1863, %v1871
      %v1880 = vsel %vm487, %v1861, %v1872
      %v1881 = vsel %vm484, %v1868, %v1873
      %v1882 = vsel %vm485, %v1866, %v1874
      %v1883 = vsel %vm486, %v1864, %v1875
      %v1884 = vsel %vm487, %v1862, %v1876
      %1885 = vset.pattern.permute.xlu0 22
      %1886 = vperm.xlu0 %1885, %v320
      %v1887 = vpop.permute.xlu0 %1886
      %1889 = vset.pattern.permute.xlu0 22
      %1890 = vperm.xlu0 %1889, %v321
      %v1891 = vpop.permute.xlu0 %1890
      %v1893 = vmul.f32 %v1887, %v1813
      %v1894 = vmul.f32 %v1887, %v1814
      %v1895 = vmul.f32 %v1887, %v1815
      %v1896 = vmul.f32 %v1887, %v1816
      %v1897 = vmul.f32 %v1891, %v1817
      %v1898 = vmul.f32 %v1891, %v1818
      %v1899 = vmul.f32 %v1891, %v1819
      %v1900 = vmul.f32 %v1891, %v1820
      %1901 = vset.pattern.permute.xlu0 22
      %1902 = vperm.xlu0 %1901, %v322
      %v1903 = vpop.permute.xlu0 %1902
      %1905 = vset.pattern.permute.xlu0 22
      %1906 = vperm.xlu0 %1905, %v323
      %v1907 = vpop.permute.xlu0 %1906
      %v1909 = vmul.f32 %v1903, %v1877
      %v1910 = vmul.f32 %v1903, %v1878
      %v1911 = vmul.f32 %v1903, %v1879
      %v1912 = vmul.f32 %v1903, %v1880
      %v1913 = vmul.f32 %v1907, %v1881
      %v1914 = vmul.f32 %v1907, %v1882
      %v1915 = vmul.f32 %v1907, %v1883
      %v1916 = vmul.f32 %v1907, %v1884
      %v1917 = vadd.f32 %v1893, %v1909
      %v1918 = vadd.f32 %v1894, %v1910
      %v1919 = vadd.f32 %v1895, %v1911
      %v1920 = vadd.f32 %v1896, %v1912
      %v1921 = vadd.f32 %v1897, %v1913
      %v1922 = vadd.f32 %v1898, %v1914
      %v1923 = vadd.f32 %v1899, %v1915
      %v1924 = vadd.f32 %v1900, %v1916
      %1925 = vrot.lane.b32.xlu0 %v1917, 120
      %v1926 = vpop.permute.xlu0 %1925
      %1927 = vrot.lane.b32.xlu0 %v1921, 120
      %v1928 = vpop.permute.xlu0 %1927
      %1929 = vrot.lane.b32.xlu0 %v1918, 120
      %v1930 = vpop.permute.xlu0 %1929
      %1931 = vrot.lane.b32.xlu0 %v1922, 120
      %v1932 = vpop.permute.xlu0 %1931
      %1933 = vrot.lane.b32.xlu0 %v1919, 120
      %v1934 = vpop.permute.xlu0 %1933
      %1935 = vrot.lane.b32.xlu0 %v1923, 120
      %v1936 = vpop.permute.xlu0 %1935
      %1937 = vrot.lane.b32.xlu0 %v1920, 120
      %v1938 = vpop.permute.xlu0 %1937
      %1939 = vrot.lane.b32.xlu0 %v1924, 120
      %v1940 = vpop.permute.xlu0 %1939
      %v1941 = vsel %vm1109, %v1934, %v1938
      %v1942 = vsel %vm1109, %v1936, %v1940
      %v1943 = vsel %vm1109, %v1930, %v1934
      %v1944 = vsel %vm1109, %v1932, %v1936
      %v1945 = vsel %vm1109, %v1926, %v1930
      %v1946 = vsel %vm1109, %v1928, %v1932
      %v1947 = vsel %vm1109, %v1938, %v1926
      %v1948 = vsel %vm1109, %v1940, %v1928
      %1949 = vrot.lane.b32.xlu0 %v1917, 8
      %v1950 = vpop.permute.xlu0 %1949
      %1951 = vrot.lane.b32.xlu0 %v1921, 8
      %v1952 = vpop.permute.xlu0 %1951
      %1953 = vrot.lane.b32.xlu0 %v1918, 8
      %v1954 = vpop.permute.xlu0 %1953
      %1955 = vrot.lane.b32.xlu0 %v1922, 8
      %v1956 = vpop.permute.xlu0 %1955
      %1957 = vrot.lane.b32.xlu0 %v1919, 8
      %v1958 = vpop.permute.xlu0 %1957
      %1959 = vrot.lane.b32.xlu0 %v1923, 8
      %v1960 = vpop.permute.xlu0 %1959
      %1961 = vrot.lane.b32.xlu0 %v1920, 8
      %v1962 = vpop.permute.xlu0 %1961
      %1963 = vrot.lane.b32.xlu0 %v1924, 8
      %v1964 = vpop.permute.xlu0 %1963
      %v1965 = vsel %vm1134, %v1958, %v1962
      %v1966 = vsel %vm1134, %v1960, %v1964
      %v1967 = vsel %vm1134, %v1954, %v1958
      %v1968 = vsel %vm1134, %v1956, %v1960
      %v1969 = vsel %vm1134, %v1950, %v1954
      %v1970 = vsel %vm1134, %v1952, %v1956
      %v1971 = vsel %vm1134, %v1962, %v1950
      %v1972 = vsel %vm1134, %v1964, %v1952
      %v1973 = vsub.f32 0.0, %v1945
      %v1974 = vsub.f32 0.0, %v1943
      %v1975 = vsub.f32 0.0, %v1941
      %v1976 = vsub.f32 0.0, %v1947
      %v1977 = vsub.f32 0.0, %v1946
      %v1978 = vsub.f32 0.0, %v1944
      %v1979 = vsub.f32 0.0, %v1942
      %v1980 = vsub.f32 0.0, %v1948
      %v1981 = vsel %vm524, %v1971, %v1973
      %v1982 = vsel %vm525, %v1969, %v1974
      %v1983 = vsel %vm526, %v1967, %v1975
      %v1984 = vsel %vm527, %v1965, %v1976
      %v1985 = vsel %vm524, %v1972, %v1977
      %v1986 = vsel %vm525, %v1970, %v1978
      %v1987 = vsel %vm526, %v1968, %v1979
      %v1988 = vsel %vm527, %v1966, %v1980
      %1989 = vset.pattern.permute.xlu0 23
      %1990 = vperm.xlu0 %1989, %v320
      %v1991 = vpop.permute.xlu0 %1990
      %1993 = vset.pattern.permute.xlu0 23
      %1994 = vperm.xlu0 %1993, %v321
      %v1995 = vpop.permute.xlu0 %1994
      %v1997 = vmul.f32 %v1991, %v1917
      %v1998 = vmul.f32 %v1991, %v1918
      %v1999 = vmul.f32 %v1991, %v1919
      %v2000 = vmul.f32 %v1991, %v1920
      %v2001 = vmul.f32 %v1995, %v1921
      %v2002 = vmul.f32 %v1995, %v1922
      %v2003 = vmul.f32 %v1995, %v1923
      %v2004 = vmul.f32 %v1995, %v1924
      %2005 = vset.pattern.permute.xlu0 23
      %2006 = vperm.xlu0 %2005, %v322
      %v2007 = vpop.permute.xlu0 %2006
      %2009 = vset.pattern.permute.xlu0 23
      %2010 = vperm.xlu0 %2009, %v323
      %v2011 = vpop.permute.xlu0 %2010
      %v2013 = vmul.f32 %v2007, %v1981
      %v2014 = vmul.f32 %v2007, %v1982
      %v2015 = vmul.f32 %v2007, %v1983
      %v2016 = vmul.f32 %v2007, %v1984
      %v2017 = vmul.f32 %v2011, %v1985
      %v2018 = vmul.f32 %v2011, %v1986
      %v2019 = vmul.f32 %v2011, %v1987
      %v2020 = vmul.f32 %v2011, %v1988
      %v2021 = vadd.f32 %v1997, %v2013
      %v2022 = vadd.f32 %v1998, %v2014
      %v2023 = vadd.f32 %v1999, %v2015
      %v2024 = vadd.f32 %v2000, %v2016
      %v2025 = vadd.f32 %v2001, %v2017
      %v2026 = vadd.f32 %v2002, %v2018
      %v2027 = vadd.f32 %v2003, %v2019
      %v2028 = vadd.f32 %v2004, %v2020
      %2029 = vrot.lane.b32.xlu0 %v2021, 124
      %v2030 = vpop.permute.xlu0 %2029
      %2031 = vrot.lane.b32.xlu0 %v2025, 124
      %v2032 = vpop.permute.xlu0 %2031
      %2033 = vrot.lane.b32.xlu0 %v2022, 124
      %v2034 = vpop.permute.xlu0 %2033
      %2035 = vrot.lane.b32.xlu0 %v2026, 124
      %v2036 = vpop.permute.xlu0 %2035
      %2037 = vrot.lane.b32.xlu0 %v2023, 124
      %v2038 = vpop.permute.xlu0 %2037
      %2039 = vrot.lane.b32.xlu0 %v2027, 124
      %v2040 = vpop.permute.xlu0 %2039
      %2041 = vrot.lane.b32.xlu0 %v2024, 124
      %v2042 = vpop.permute.xlu0 %2041
      %2043 = vrot.lane.b32.xlu0 %v2028, 124
      %v2044 = vpop.permute.xlu0 %2043
      %v2045 = vsel %vm1215, %v2038, %v2042
      %v2046 = vsel %vm1215, %v2040, %v2044
      %v2047 = vsel %vm1215, %v2034, %v2038
      %v2048 = vsel %vm1215, %v2036, %v2040
      %v2049 = vsel %vm1215, %v2030, %v2034
      %v2050 = vsel %vm1215, %v2032, %v2036
      %v2051 = vsel %vm1215, %v2042, %v2030
      %v2052 = vsel %vm1215, %v2044, %v2032
      %2053 = vrot.lane.b32.xlu0 %v2021, 4
      %v2054 = vpop.permute.xlu0 %2053
      %2055 = vrot.lane.b32.xlu0 %v2025, 4
      %v2056 = vpop.permute.xlu0 %2055
      %2057 = vrot.lane.b32.xlu0 %v2022, 4
      %v2058 = vpop.permute.xlu0 %2057
      %2059 = vrot.lane.b32.xlu0 %v2026, 4
      %v2060 = vpop.permute.xlu0 %2059
      %2061 = vrot.lane.b32.xlu0 %v2023, 4
      %v2062 = vpop.permute.xlu0 %2061
      %2063 = vrot.lane.b32.xlu0 %v2027, 4
      %v2064 = vpop.permute.xlu0 %2063
      %2065 = vrot.lane.b32.xlu0 %v2024, 4
      %v2066 = vpop.permute.xlu0 %2065
      %2067 = vrot.lane.b32.xlu0 %v2028, 4
      %v2068 = vpop.permute.xlu0 %2067
      %v2069 = vsel %vm1240, %v2062, %v2066
      %v2070 = vsel %vm1240, %v2064, %v2068
      %v2071 = vsel %vm1240, %v2058, %v2062
      %v2072 = vsel %vm1240, %v2060, %v2064
      %v2073 = vsel %vm1240, %v2054, %v2058
      %v2074 = vsel %vm1240, %v2056, %v2060
      %v2075 = vsel %vm1240, %v2066, %v2054
      %v2076 = vsel %vm1240, %v2068, %v2056
      %v2077 = vsub.f32 0.0, %v2049
      %v2078 = vsub.f32 0.0, %v2047
      %v2079 = vsub.f32 0.0, %v2045
      %v2080 = vsub.f32 0.0, %v2051
      %v2081 = vsub.f32 0.0, %v2050
      %v2082 = vsub.f32 0.0, %v2048
      %v2083 = vsub.f32 0.0, %v2046
      %v2084 = vsub.f32 0.0, %v2052
      %v2085 = vsel %vm564, %v2075, %v2077
      %v2086 = vsel %vm565, %v2073, %v2078
      %v2087 = vsel %vm566, %v2071, %v2079
      %v2088 = vsel %vm567, %v2069, %v2080
      %v2089 = vsel %vm564, %v2076, %v2081
      %v2090 = vsel %vm565, %v2074, %v2082
      %v2091 = vsel %vm566, %v2072, %v2083
      %v2092 = vsel %vm567, %v2070, %v2084
      %2093 = vset.pattern.permute.xlu0 24
      %2094 = vperm.xlu0 %2093, %v320
      %v2095 = vpop.permute.xlu0 %2094
      %2097 = vset.pattern.permute.xlu0 24
      %2098 = vperm.xlu0 %2097, %v321
      %v2099 = vpop.permute.xlu0 %2098
      %v2101 = vmul.f32 %v2095, %v2021
      %v2102 = vmul.f32 %v2095, %v2022
      %v2103 = vmul.f32 %v2095, %v2023
      %v2104 = vmul.f32 %v2095, %v2024
      %v2105 = vmul.f32 %v2099, %v2025
      %v2106 = vmul.f32 %v2099, %v2026
      %v2107 = vmul.f32 %v2099, %v2027
      %v2108 = vmul.f32 %v2099, %v2028
      %2109 = vset.pattern.permute.xlu0 24
      %2110 = vperm.xlu0 %2109, %v322
      %v2111 = vpop.permute.xlu0 %2110
      %2113 = vset.pattern.permute.xlu0 24
      %2114 = vperm.xlu0 %2113, %v323
      %v2115 = vpop.permute.xlu0 %2114
      %v2117 = vmul.f32 %v2111, %v2085
      %v2118 = vmul.f32 %v2111, %v2086
      %v2119 = vmul.f32 %v2111, %v2087
      %v2120 = vmul.f32 %v2111, %v2088
      %v2121 = vmul.f32 %v2115, %v2089
      %v2122 = vmul.f32 %v2115, %v2090
      %v2123 = vmul.f32 %v2115, %v2091
      %v2124 = vmul.f32 %v2115, %v2092
      %v2125 = vadd.f32 %v2101, %v2117
      %v2126 = vadd.f32 %v2102, %v2118
      %v2127 = vadd.f32 %v2103, %v2119
      %v2128 = vadd.f32 %v2104, %v2120
      %v2129 = vadd.f32 %v2105, %v2121
      %v2130 = vadd.f32 %v2106, %v2122
      %v2131 = vadd.f32 %v2107, %v2123
      %v2132 = vadd.f32 %v2108, %v2124
      %2133 = vrot.lane.b32.xlu0 %v2125, 126
      %v2134 = vpop.permute.xlu0 %2133
      %2135 = vrot.lane.b32.xlu0 %v2129, 126
      %v2136 = vpop.permute.xlu0 %2135
      %2137 = vrot.lane.b32.xlu0 %v2126, 126
      %v2138 = vpop.permute.xlu0 %2137
      %2139 = vrot.lane.b32.xlu0 %v2130, 126
      %v2140 = vpop.permute.xlu0 %2139
      %2141 = vrot.lane.b32.xlu0 %v2127, 126
      %v2142 = vpop.permute.xlu0 %2141
      %2143 = vrot.lane.b32.xlu0 %v2131, 126
      %v2144 = vpop.permute.xlu0 %2143
      %2145 = vrot.lane.b32.xlu0 %v2128, 126
      %v2146 = vpop.permute.xlu0 %2145
      %2147 = vrot.lane.b32.xlu0 %v2132, 126
      %v2148 = vpop.permute.xlu0 %2147
      %v2149 = vsel %vm1321, %v2142, %v2146
      %v2150 = vsel %vm1321, %v2144, %v2148
      %v2151 = vsel %vm1321, %v2138, %v2142
      %v2152 = vsel %vm1321, %v2140, %v2144
      %v2153 = vsel %vm1321, %v2134, %v2138
      %v2154 = vsel %vm1321, %v2136, %v2140
      %v2155 = vsel %vm1321, %v2146, %v2134
      %v2156 = vsel %vm1321, %v2148, %v2136
      %2157 = vrot.lane.b32.xlu0 %v2125, 2
      %v2158 = vpop.permute.xlu0 %2157
      %2159 = vrot.lane.b32.xlu0 %v2129, 2
      %v2160 = vpop.permute.xlu0 %2159
      %2161 = vrot.lane.b32.xlu0 %v2126, 2
      %v2162 = vpop.permute.xlu0 %2161
      %2163 = vrot.lane.b32.xlu0 %v2130, 2
      %v2164 = vpop.permute.xlu0 %2163
      %2165 = vrot.lane.b32.xlu0 %v2127, 2
      %v2166 = vpop.permute.xlu0 %2165
      %2167 = vrot.lane.b32.xlu0 %v2131, 2
      %v2168 = vpop.permute.xlu0 %2167
      %2169 = vrot.lane.b32.xlu0 %v2128, 2
      %v2170 = vpop.permute.xlu0 %2169
      %2171 = vrot.lane.b32.xlu0 %v2132, 2
      %v2172 = vpop.permute.xlu0 %2171
      %v2173 = vsel %vm1346, %v2166, %v2170
      %v2174 = vsel %vm1346, %v2168, %v2172
      %v2175 = vsel %vm1346, %v2162, %v2166
      %v2176 = vsel %vm1346, %v2164, %v2168
      %v2177 = vsel %vm1346, %v2158, %v2162
      %v2178 = vsel %vm1346, %v2160, %v2164
      %v2179 = vsel %vm1346, %v2170, %v2158
      %v2180 = vsel %vm1346, %v2172, %v2160
      %v2181 = vsub.f32 0.0, %v2153
      %v2182 = vsub.f32 0.0, %v2151
      %v2183 = vsub.f32 0.0, %v2149
      %v2184 = vsub.f32 0.0, %v2155
      %v2185 = vsub.f32 0.0, %v2154
      %v2186 = vsub.f32 0.0, %v2152
      %v2187 = vsub.f32 0.0, %v2150
      %v2188 = vsub.f32 0.0, %v2156
      %v2189 = vsel %vm604, %v2179, %v2181
      %v2190 = vsel %vm605, %v2177, %v2182
      %v2191 = vsel %vm606, %v2175, %v2183
      %v2192 = vsel %vm607, %v2173, %v2184
      %v2193 = vsel %vm604, %v2180, %v2185
      %v2194 = vsel %vm605, %v2178, %v2186
      %v2195 = vsel %vm606, %v2176, %v2187
      %v2196 = vsel %vm607, %v2174, %v2188
      %2197 = vset.pattern.permute.xlu0 25
      %2198 = vperm.xlu0 %2197, %v320
      %v2199 = vpop.permute.xlu0 %2198
      %2201 = vset.pattern.permute.xlu0 25
      %2202 = vperm.xlu0 %2201, %v321
      %v2203 = vpop.permute.xlu0 %2202
      %v2205 = vmul.f32 %v2199, %v2125
      %v2206 = vmul.f32 %v2199, %v2126
      %v2207 = vmul.f32 %v2199, %v2127
      %v2208 = vmul.f32 %v2199, %v2128
      %v2209 = vmul.f32 %v2203, %v2129
      %v2210 = vmul.f32 %v2203, %v2130
      %v2211 = vmul.f32 %v2203, %v2131
      %v2212 = vmul.f32 %v2203, %v2132
      %2213 = vset.pattern.permute.xlu0 25
      %2214 = vperm.xlu0 %2213, %v322
      %v2215 = vpop.permute.xlu0 %2214
      %2217 = vset.pattern.permute.xlu0 25
      %2218 = vperm.xlu0 %2217, %v323
      %v2219 = vpop.permute.xlu0 %2218
      %v2221 = vmul.f32 %v2215, %v2189
      %v2222 = vmul.f32 %v2215, %v2190
      %v2223 = vmul.f32 %v2215, %v2191
      %v2224 = vmul.f32 %v2215, %v2192
      %v2225 = vmul.f32 %v2219, %v2193
      %v2226 = vmul.f32 %v2219, %v2194
      %v2227 = vmul.f32 %v2219, %v2195
      %v2228 = vmul.f32 %v2219, %v2196
      %v2229 = vadd.f32 %v2205, %v2221
      %v2230 = vadd.f32 %v2206, %v2222
      %v2231 = vadd.f32 %v2207, %v2223
      %v2232 = vadd.f32 %v2208, %v2224
      %v2233 = vadd.f32 %v2209, %v2225
      %v2234 = vadd.f32 %v2210, %v2226
      %v2235 = vadd.f32 %v2211, %v2227
      %v2236 = vadd.f32 %v2212, %v2228
      %2237 = vrot.lane.b32.xlu0 %v2229, 127
      %v2238 = vpop.permute.xlu0 %2237
      %2239 = vrot.lane.b32.xlu0 %v2233, 127
      %v2240 = vpop.permute.xlu0 %2239
      %2241 = vrot.lane.b32.xlu0 %v2230, 127
      %v2242 = vpop.permute.xlu0 %2241
      %2243 = vrot.lane.b32.xlu0 %v2234, 127
      %v2244 = vpop.permute.xlu0 %2243
      %2245 = vrot.lane.b32.xlu0 %v2231, 127
      %v2246 = vpop.permute.xlu0 %2245
      %2247 = vrot.lane.b32.xlu0 %v2235, 127
      %v2248 = vpop.permute.xlu0 %2247
      %2249 = vrot.lane.b32.xlu0 %v2232, 127
      %v2250 = vpop.permute.xlu0 %2249
      %2251 = vrot.lane.b32.xlu0 %v2236, 127
      %v2252 = vpop.permute.xlu0 %2251
      %v2253 = vsel %vm1427, %v2246, %v2250
      %v2254 = vsel %vm1427, %v2248, %v2252
      %v2255 = vsel %vm1427, %v2242, %v2246
      %v2256 = vsel %vm1427, %v2244, %v2248
      %v2257 = vsel %vm1427, %v2238, %v2242
      %v2258 = vsel %vm1427, %v2240, %v2244
      %v2259 = vsel %vm1427, %v2250, %v2238
      %v2260 = vsel %vm1427, %v2252, %v2240
      %2261 = vrot.lane.b32.xlu0 %v2229, 1
      %v2262 = vpop.permute.xlu0 %2261
      %2263 = vrot.lane.b32.xlu0 %v2233, 1
      %v2264 = vpop.permute.xlu0 %2263
      %2265 = vrot.lane.b32.xlu0 %v2230, 1
      %v2266 = vpop.permute.xlu0 %2265
      %2267 = vrot.lane.b32.xlu0 %v2234, 1
      %v2268 = vpop.permute.xlu0 %2267
      %2269 = vrot.lane.b32.xlu0 %v2231, 1
      %v2270 = vpop.permute.xlu0 %2269
      %2271 = vrot.lane.b32.xlu0 %v2235, 1
      %v2272 = vpop.permute.xlu0 %2271
      %2273 = vrot.lane.b32.xlu0 %v2232, 1
      %v2274 = vpop.permute.xlu0 %2273
      %2275 = vrot.lane.b32.xlu0 %v2236, 1
      %v2276 = vpop.permute.xlu0 %2275
      %v2277 = vsel %vm1452, %v2270, %v2274
      %v2278 = vsel %vm1452, %v2272, %v2276
      %v2279 = vsel %vm1452, %v2266, %v2270
      %v2280 = vsel %vm1452, %v2268, %v2272
      %v2281 = vsel %vm1452, %v2262, %v2266
      %v2282 = vsel %vm1452, %v2264, %v2268
      %v2283 = vsel %vm1452, %v2274, %v2262
      %v2284 = vsel %vm1452, %v2276, %v2264
      %v2285 = vsub.f32 0.0, %v2257
      %v2286 = vsub.f32 0.0, %v2255
      %v2287 = vsub.f32 0.0, %v2253
      %v2288 = vsub.f32 0.0, %v2259
      %v2289 = vsub.f32 0.0, %v2258
      %v2290 = vsub.f32 0.0, %v2256
      %v2291 = vsub.f32 0.0, %v2254
      %v2292 = vsub.f32 0.0, %v2260
      %v2293 = vsel %vm644, %v2283, %v2285
      %v2294 = vsel %vm645, %v2281, %v2286
      %v2295 = vsel %vm646, %v2279, %v2287
      %v2296 = vsel %vm647, %v2277, %v2288
      %v2297 = vsel %vm644, %v2284, %v2289
      %v2298 = vsel %vm645, %v2282, %v2290
      %v2299 = vsel %vm646, %v2280, %v2291
      %v2300 = vsel %vm647, %v2278, %v2292
      %2301 = vset.pattern.permute.xlu0 26
      %2302 = vperm.xlu0 %2301, %v320
      %v2303 = vpop.permute.xlu0 %2302
      %2305 = vset.pattern.permute.xlu0 26
      %2306 = vperm.xlu0 %2305, %v321
      %v2307 = vpop.permute.xlu0 %2306
      %v2309 = vmul.f32 %v2303, %v2229
      %v2310 = vmul.f32 %v2303, %v2230
      %v2311 = vmul.f32 %v2303, %v2231
      %v2312 = vmul.f32 %v2303, %v2232
      %v2313 = vmul.f32 %v2307, %v2233
      %v2314 = vmul.f32 %v2307, %v2234
      %v2315 = vmul.f32 %v2307, %v2235
      %v2316 = vmul.f32 %v2307, %v2236
      %2317 = vset.pattern.permute.xlu0 26
      %2318 = vperm.xlu0 %2317, %v322
      %v2319 = vpop.permute.xlu0 %2318
      %2321 = vset.pattern.permute.xlu0 26
      %2322 = vperm.xlu0 %2321, %v323
      %v2323 = vpop.permute.xlu0 %2322
      %v2325 = vmul.f32 %v2319, %v2293
      %v2326 = vmul.f32 %v2319, %v2294
      %v2327 = vmul.f32 %v2319, %v2295
      %v2328 = vmul.f32 %v2319, %v2296
      %v2329 = vmul.f32 %v2323, %v2297
      %v2330 = vmul.f32 %v2323, %v2298
      %v2331 = vmul.f32 %v2323, %v2299
      %v2332 = vmul.f32 %v2323, %v2300
      %v2333 = vadd.f32 %v2309, %v2325
      %v2334 = vadd.f32 %v2310, %v2326
      %v2335 = vadd.f32 %v2311, %v2327
      %v2336 = vadd.f32 %v2312, %v2328
      %v2337 = vadd.f32 %v2313, %v2329
      %v2338 = vadd.f32 %v2314, %v2330
      %v2339 = vadd.f32 %v2315, %v2331
      %v2340 = vadd.f32 %v2316, %v2332
      %v2341 = vmul.f32 %v2333, %v216
      %v2342 = vmul.f32 %v2334, %v217
      %v2343 = vmul.f32 %v2335, %v218
      %v2344 = vmul.f32 %v2336, %v219
      %v2345 = vmul.f32 %v2337, %v216
      %v2346 = vmul.f32 %v2338, %v217
      %v2347 = vmul.f32 %v2339, %v218
      %v2348 = vmul.f32 %v2340, %v219
      %v2349 = vsub.f32 0.0, %v2343
      %v2350 = vsub.f32 0.0, %v2344
      %v2351 = vsub.f32 0.0, %v2341
      %v2352 = vsub.f32 0.0, %v2342
      %v2353 = vsub.f32 0.0, %v2347
      %v2354 = vsub.f32 0.0, %v2348
      %v2355 = vsub.f32 0.0, %v2345
      %v2356 = vsub.f32 0.0, %v2346
      %v2357 = vsel %vm328, %v2343, %v2349
      %v2358 = vsel %vm329, %v2344, %v2350
      %v2359 = vsel %vm330, %v2341, %v2351
      %v2360 = vsel %vm331, %v2342, %v2352
      %v2361 = vsel %vm328, %v2347, %v2353
      %v2362 = vsel %vm329, %v2348, %v2354
      %v2363 = vsel %vm330, %v2345, %v2355
      %v2364 = vsel %vm331, %v2346, %v2356
      %2365 = vset.pattern.permute.xlu0 27
      %2366 = vperm.xlu0 %2365, %v320
      %v2367 = vpop.permute.xlu0 %2366
      %2369 = vset.pattern.permute.xlu0 27
      %2370 = vperm.xlu0 %2369, %v321
      %v2371 = vpop.permute.xlu0 %2370
      %v2373 = vmul.f32 %v2367, %v2341
      %v2374 = vmul.f32 %v2367, %v2342
      %v2375 = vmul.f32 %v2367, %v2343
      %v2376 = vmul.f32 %v2367, %v2344
      %v2377 = vmul.f32 %v2371, %v2345
      %v2378 = vmul.f32 %v2371, %v2346
      %v2379 = vmul.f32 %v2371, %v2347
      %v2380 = vmul.f32 %v2371, %v2348
      %2381 = vset.pattern.permute.xlu0 27
      %2382 = vperm.xlu0 %2381, %v322
      %v2383 = vpop.permute.xlu0 %2382
      %2385 = vset.pattern.permute.xlu0 27
      %2386 = vperm.xlu0 %2385, %v323
      %v2387 = vpop.permute.xlu0 %2386
      %v2389 = vmul.f32 %v2383, %v2357
      %v2390 = vmul.f32 %v2383, %v2358
      %v2391 = vmul.f32 %v2383, %v2359
      %v2392 = vmul.f32 %v2383, %v2360
      %v2393 = vmul.f32 %v2387, %v2361
      %v2394 = vmul.f32 %v2387, %v2362
      %v2395 = vmul.f32 %v2387, %v2363
      %v2396 = vmul.f32 %v2387, %v2364
      %v2397 = vadd.f32 %v2373, %v2389
      %v2398 = vadd.f32 %v2374, %v2390
      %v2399 = vadd.f32 %v2375, %v2391
      %v2400 = vadd.f32 %v2376, %v2392
      %v2401 = vadd.f32 %v2377, %v2393
      %v2402 = vadd.f32 %v2378, %v2394
      %v2403 = vadd.f32 %v2379, %v2395
      %v2404 = vadd.f32 %v2380, %v2396
      %v2405 = vsub.f32 0.0, %v2398
      %v2406 = vsub.f32 0.0, %v2399
      %v2407 = vsub.f32 0.0, %v2400
      %v2408 = vsub.f32 0.0, %v2397
      %v2409 = vsub.f32 0.0, %v2402
      %v2410 = vsub.f32 0.0, %v2403
      %v2411 = vsub.f32 0.0, %v2404
      %v2412 = vsub.f32 0.0, %v2401
      %v2413 = vsel %vm364, %v2400, %v2405
      %v2414 = vsel %vm365, %v2397, %v2406
      %v2415 = vsel %vm366, %v2398, %v2407
      %v2416 = vsel %vm367, %v2399, %v2408
      %v2417 = vsel %vm364, %v2404, %v2409
      %v2418 = vsel %vm365, %v2401, %v2410
      %v2419 = vsel %vm366, %v2402, %v2411
      %v2420 = vsel %vm367, %v2403, %v2412
      %2421 = vset.pattern.permute.xlu0 28
      %2422 = vperm.xlu0 %2421, %v320
      %v2423 = vpop.permute.xlu0 %2422
      %2425 = vset.pattern.permute.xlu0 28
      %2426 = vperm.xlu0 %2425, %v321
      %v2427 = vpop.permute.xlu0 %2426
      %v2429 = vmul.f32 %v2423, %v2397
      %v2430 = vmul.f32 %v2423, %v2398
      %v2431 = vmul.f32 %v2423, %v2399
      %v2432 = vmul.f32 %v2423, %v2400
      %v2433 = vmul.f32 %v2427, %v2401
      %v2434 = vmul.f32 %v2427, %v2402
      %v2435 = vmul.f32 %v2427, %v2403
      %v2436 = vmul.f32 %v2427, %v2404
      %2437 = vset.pattern.permute.xlu0 28
      %2438 = vperm.xlu0 %2437, %v322
      %v2439 = vpop.permute.xlu0 %2438
      %2441 = vset.pattern.permute.xlu0 28
      %2442 = vperm.xlu0 %2441, %v323
      %v2443 = vpop.permute.xlu0 %2442
      %v2445 = vmul.f32 %v2439, %v2413
      %v2446 = vmul.f32 %v2439, %v2414
      %v2447 = vmul.f32 %v2439, %v2415
      %v2448 = vmul.f32 %v2439, %v2416
      %v2449 = vmul.f32 %v2443, %v2417
      %v2450 = vmul.f32 %v2443, %v2418
      %v2451 = vmul.f32 %v2443, %v2419
      %v2452 = vmul.f32 %v2443, %v2420
      %v2453 = vadd.f32 %v2429, %v2445
      %v2454 = vadd.f32 %v2430, %v2446
      %v2455 = vadd.f32 %v2431, %v2447
      %v2456 = vadd.f32 %v2432, %v2448
      %v2457 = vadd.f32 %v2433, %v2449
      %v2458 = vadd.f32 %v2434, %v2450
      %v2459 = vadd.f32 %v2435, %v2451
      %v2460 = vadd.f32 %v2436, %v2452
      %2461 = vrot.lane.b32.xlu0 %v2453, 64
      %v2462 = vpop.permute.xlu0 %2461
      %2463 = vrot.lane.b32.xlu0 %v2457, 64
      %v2464 = vpop.permute.xlu0 %2463
      %2465 = vrot.lane.b32.xlu0 %v2454, 64
      %v2466 = vpop.permute.xlu0 %2465
      %2467 = vrot.lane.b32.xlu0 %v2458, 64
      %v2468 = vpop.permute.xlu0 %2467
      %2469 = vrot.lane.b32.xlu0 %v2455, 64
      %v2470 = vpop.permute.xlu0 %2469
      %2471 = vrot.lane.b32.xlu0 %v2459, 64
      %v2472 = vpop.permute.xlu0 %2471
      %2473 = vrot.lane.b32.xlu0 %v2456, 64
      %v2474 = vpop.permute.xlu0 %2473
      %2475 = vrot.lane.b32.xlu0 %v2460, 64
      %v2476 = vpop.permute.xlu0 %2475
      %v2477 = vsel %vm816, %v2470, %v2474
      %v2478 = vsel %vm816, %v2472, %v2476
      %v2479 = vsel %vm816, %v2466, %v2470
      %v2480 = vsel %vm816, %v2468, %v2472
      %v2481 = vsel %vm816, %v2462, %v2466
      %v2482 = vsel %vm816, %v2464, %v2468
      %v2483 = vsel %vm816, %v2474, %v2462
      %v2484 = vsel %vm816, %v2476, %v2464
      %v2485 = vsub.f32 0.0, %v2481
      %v2486 = vsub.f32 0.0, %v2479
      %v2487 = vsub.f32 0.0, %v2477
      %v2488 = vsub.f32 0.0, %v2483
      %v2489 = vsub.f32 0.0, %v2482
      %v2490 = vsub.f32 0.0, %v2480
      %v2491 = vsub.f32 0.0, %v2478
      %v2492 = vsub.f32 0.0, %v2484
      %v2493 = vsel %vm404, %v2483, %v2485
      %v2494 = vsel %vm405, %v2481, %v2486
      %v2495 = vsel %vm406, %v2479, %v2487
      %v2496 = vsel %vm407, %v2477, %v2488
      %v2497 = vsel %vm404, %v2484, %v2489
      %v2498 = vsel %vm405, %v2482, %v2490
      %v2499 = vsel %vm406, %v2480, %v2491
      %v2500 = vsel %vm407, %v2478, %v2492
      %2501 = vset.pattern.permute.xlu0 29
      %2502 = vperm.xlu0 %2501, %v320
      %v2503 = vpop.permute.xlu0 %2502
      %2505 = vset.pattern.permute.xlu0 29
      %2506 = vperm.xlu0 %2505, %v321
      %v2507 = vpop.permute.xlu0 %2506
      %v2509 = vmul.f32 %v2503, %v2453
      %v2510 = vmul.f32 %v2503, %v2454
      %v2511 = vmul.f32 %v2503, %v2455
      %v2512 = vmul.f32 %v2503, %v2456
      %v2513 = vmul.f32 %v2507, %v2457
      %v2514 = vmul.f32 %v2507, %v2458
      %v2515 = vmul.f32 %v2507, %v2459
      %v2516 = vmul.f32 %v2507, %v2460
      %2517 = vset.pattern.permute.xlu0 29
      %2518 = vperm.xlu0 %2517, %v322
      %v2519 = vpop.permute.xlu0 %2518
      %2521 = vset.pattern.permute.xlu0 29
      %2522 = vperm.xlu0 %2521, %v323
      %v2523 = vpop.permute.xlu0 %2522
      %v2525 = vmul.f32 %v2519, %v2493
      %v2526 = vmul.f32 %v2519, %v2494
      %v2527 = vmul.f32 %v2519, %v2495
      %v2528 = vmul.f32 %v2519, %v2496
      %v2529 = vmul.f32 %v2523, %v2497
      %v2530 = vmul.f32 %v2523, %v2498
      %v2531 = vmul.f32 %v2523, %v2499
      %v2532 = vmul.f32 %v2523, %v2500
      %v2533 = vadd.f32 %v2509, %v2525
      %v2534 = vadd.f32 %v2510, %v2526
      %v2535 = vadd.f32 %v2511, %v2527
      %v2536 = vadd.f32 %v2512, %v2528
      %v2537 = vadd.f32 %v2513, %v2529
      %v2538 = vadd.f32 %v2514, %v2530
      %v2539 = vadd.f32 %v2515, %v2531
      %v2540 = vadd.f32 %v2516, %v2532
      %2541 = vrot.lane.b32.xlu0 %v2533, 96
      %v2542 = vpop.permute.xlu0 %2541
      %2543 = vrot.lane.b32.xlu0 %v2537, 96
      %v2544 = vpop.permute.xlu0 %2543
      %2545 = vrot.lane.b32.xlu0 %v2534, 96
      %v2546 = vpop.permute.xlu0 %2545
      %2547 = vrot.lane.b32.xlu0 %v2538, 96
      %v2548 = vpop.permute.xlu0 %2547
      %2549 = vrot.lane.b32.xlu0 %v2535, 96
      %v2550 = vpop.permute.xlu0 %2549
      %2551 = vrot.lane.b32.xlu0 %v2539, 96
      %v2552 = vpop.permute.xlu0 %2551
      %2553 = vrot.lane.b32.xlu0 %v2536, 96
      %v2554 = vpop.permute.xlu0 %2553
      %2555 = vrot.lane.b32.xlu0 %v2540, 96
      %v2556 = vpop.permute.xlu0 %2555
      %v2557 = vsel %vm897, %v2550, %v2554
      %v2558 = vsel %vm897, %v2552, %v2556
      %v2559 = vsel %vm897, %v2546, %v2550
      %v2560 = vsel %vm897, %v2548, %v2552
      %v2561 = vsel %vm897, %v2542, %v2546
      %v2562 = vsel %vm897, %v2544, %v2548
      %v2563 = vsel %vm897, %v2554, %v2542
      %v2564 = vsel %vm897, %v2556, %v2544
      %2565 = vrot.lane.b32.xlu0 %v2533, 32
      %v2566 = vpop.permute.xlu0 %2565
      %2567 = vrot.lane.b32.xlu0 %v2537, 32
      %v2568 = vpop.permute.xlu0 %2567
      %2569 = vrot.lane.b32.xlu0 %v2534, 32
      %v2570 = vpop.permute.xlu0 %2569
      %2571 = vrot.lane.b32.xlu0 %v2538, 32
      %v2572 = vpop.permute.xlu0 %2571
      %2573 = vrot.lane.b32.xlu0 %v2535, 32
      %v2574 = vpop.permute.xlu0 %2573
      %2575 = vrot.lane.b32.xlu0 %v2539, 32
      %v2576 = vpop.permute.xlu0 %2575
      %2577 = vrot.lane.b32.xlu0 %v2536, 32
      %v2578 = vpop.permute.xlu0 %2577
      %2579 = vrot.lane.b32.xlu0 %v2540, 32
      %v2580 = vpop.permute.xlu0 %2579
      %v2581 = vsel %vm922, %v2574, %v2578
      %v2582 = vsel %vm922, %v2576, %v2580
      %v2583 = vsel %vm922, %v2570, %v2574
      %v2584 = vsel %vm922, %v2572, %v2576
      %v2585 = vsel %vm922, %v2566, %v2570
      %v2586 = vsel %vm922, %v2568, %v2572
      %v2587 = vsel %vm922, %v2578, %v2566
      %v2588 = vsel %vm922, %v2580, %v2568
      %v2589 = vsub.f32 0.0, %v2561
      %v2590 = vsub.f32 0.0, %v2559
      %v2591 = vsub.f32 0.0, %v2557
      %v2592 = vsub.f32 0.0, %v2563
      %v2593 = vsub.f32 0.0, %v2562
      %v2594 = vsub.f32 0.0, %v2560
      %v2595 = vsub.f32 0.0, %v2558
      %v2596 = vsub.f32 0.0, %v2564
      %v2597 = vsel %vm444, %v2587, %v2589
      %v2598 = vsel %vm445, %v2585, %v2590
      %v2599 = vsel %vm446, %v2583, %v2591
      %v2600 = vsel %vm447, %v2581, %v2592
      %v2601 = vsel %vm444, %v2588, %v2593
      %v2602 = vsel %vm445, %v2586, %v2594
      %v2603 = vsel %vm446, %v2584, %v2595
      %v2604 = vsel %vm447, %v2582, %v2596
      %2605 = vset.pattern.permute.xlu0 30
      %2606 = vperm.xlu0 %2605, %v320
      %v2607 = vpop.permute.xlu0 %2606
      %2609 = vset.pattern.permute.xlu0 30
      %2610 = vperm.xlu0 %2609, %v321
      %v2611 = vpop.permute.xlu0 %2610
      %v2613 = vmul.f32 %v2607, %v2533
      %v2614 = vmul.f32 %v2607, %v2534
      %v2615 = vmul.f32 %v2607, %v2535
      %v2616 = vmul.f32 %v2607, %v2536
      %v2617 = vmul.f32 %v2611, %v2537
      %v2618 = vmul.f32 %v2611, %v2538
      %v2619 = vmul.f32 %v2611, %v2539
      %v2620 = vmul.f32 %v2611, %v2540
      %2621 = vset.pattern.permute.xlu0 30
      %2622 = vperm.xlu0 %2621, %v322
      %v2623 = vpop.permute.xlu0 %2622
      %2625 = vset.pattern.permute.xlu0 30
      %2626 = vperm.xlu0 %2625, %v323
      %v2627 = vpop.permute.xlu0 %2626
      %v2629 = vmul.f32 %v2623, %v2597
      %v2630 = vmul.f32 %v2623, %v2598
      %v2631 = vmul.f32 %v2623, %v2599
      %v2632 = vmul.f32 %v2623, %v2600
      %v2633 = vmul.f32 %v2627, %v2601
      %v2634 = vmul.f32 %v2627, %v2602
      %v2635 = vmul.f32 %v2627, %v2603
      %v2636 = vmul.f32 %v2627, %v2604
      %v2637 = vadd.f32 %v2613, %v2629
      %v2638 = vadd.f32 %v2614, %v2630
      %v2639 = vadd.f32 %v2615, %v2631
      %v2640 = vadd.f32 %v2616, %v2632
      %v2641 = vadd.f32 %v2617, %v2633
      %v2642 = vadd.f32 %v2618, %v2634
      %v2643 = vadd.f32 %v2619, %v2635
      %v2644 = vadd.f32 %v2620, %v2636
      %2645 = vrot.lane.b32.xlu0 %v2637, 112
      %v2646 = vpop.permute.xlu0 %2645
      %2647 = vrot.lane.b32.xlu0 %v2641, 112
      %v2648 = vpop.permute.xlu0 %2647
      %2649 = vrot.lane.b32.xlu0 %v2638, 112
      %v2650 = vpop.permute.xlu0 %2649
      %2651 = vrot.lane.b32.xlu0 %v2642, 112
      %v2652 = vpop.permute.xlu0 %2651
      %2653 = vrot.lane.b32.xlu0 %v2639, 112
      %v2654 = vpop.permute.xlu0 %2653
      %2655 = vrot.lane.b32.xlu0 %v2643, 112
      %v2656 = vpop.permute.xlu0 %2655
      %2657 = vrot.lane.b32.xlu0 %v2640, 112
      %v2658 = vpop.permute.xlu0 %2657
      %2659 = vrot.lane.b32.xlu0 %v2644, 112
      %v2660 = vpop.permute.xlu0 %2659
      %v2661 = vsel %vm1003, %v2654, %v2658
      %v2662 = vsel %vm1003, %v2656, %v2660
      %v2663 = vsel %vm1003, %v2650, %v2654
      %v2664 = vsel %vm1003, %v2652, %v2656
      %v2665 = vsel %vm1003, %v2646, %v2650
      %v2666 = vsel %vm1003, %v2648, %v2652
      %v2667 = vsel %vm1003, %v2658, %v2646
      %v2668 = vsel %vm1003, %v2660, %v2648
      %2669 = vrot.lane.b32.xlu0 %v2637, 16
      %v2670 = vpop.permute.xlu0 %2669
      %2671 = vrot.lane.b32.xlu0 %v2641, 16
      %v2672 = vpop.permute.xlu0 %2671
      %2673 = vrot.lane.b32.xlu0 %v2638, 16
      %v2674 = vpop.permute.xlu0 %2673
      %2675 = vrot.lane.b32.xlu0 %v2642, 16
      %v2676 = vpop.permute.xlu0 %2675
      %2677 = vrot.lane.b32.xlu0 %v2639, 16
      %v2678 = vpop.permute.xlu0 %2677
      %2679 = vrot.lane.b32.xlu0 %v2643, 16
      %v2680 = vpop.permute.xlu0 %2679
      %2681 = vrot.lane.b32.xlu0 %v2640, 16
      %v2682 = vpop.permute.xlu0 %2681
      %2683 = vrot.lane.b32.xlu0 %v2644, 16
      %v2684 = vpop.permute.xlu0 %2683
      %v2685 = vsel %vm1028, %v2678, %v2682
      %v2686 = vsel %vm1028, %v2680, %v2684
      %v2687 = vsel %vm1028, %v2674, %v2678
      %v2688 = vsel %vm1028, %v2676, %v2680
      %v2689 = vsel %vm1028, %v2670, %v2674
      %v2690 = vsel %vm1028, %v2672, %v2676
      %v2691 = vsel %vm1028, %v2682, %v2670
      %v2692 = vsel %vm1028, %v2684, %v2672
      %v2693 = vsub.f32 0.0, %v2665
      %v2694 = vsub.f32 0.0, %v2663
      %v2695 = vsub.f32 0.0, %v2661
      %v2696 = vsub.f32 0.0, %v2667
      %v2697 = vsub.f32 0.0, %v2666
      %v2698 = vsub.f32 0.0, %v2664
      %v2699 = vsub.f32 0.0, %v2662
      %v2700 = vsub.f32 0.0, %v2668
      %v2701 = vsel %vm484, %v2691, %v2693
      %v2702 = vsel %vm485, %v2689, %v2694
      %v2703 = vsel %vm486, %v2687, %v2695
      %v2704 = vsel %vm487, %v2685, %v2696
      %v2705 = vsel %vm484, %v2692, %v2697
      %v2706 = vsel %vm485, %v2690, %v2698
      %v2707 = vsel %vm486, %v2688, %v2699
      %v2708 = vsel %vm487, %v2686, %v2700
      %2709 = vset.pattern.permute.xlu0 31
      %2710 = vperm.xlu0 %2709, %v320
      %v2711 = vpop.permute.xlu0 %2710
      %2713 = vset.pattern.permute.xlu0 31
      %2714 = vperm.xlu0 %2713, %v321
      %v2715 = vpop.permute.xlu0 %2714
      %v2717 = vmul.f32 %v2711, %v2637
      %v2718 = vmul.f32 %v2711, %v2638
      %v2719 = vmul.f32 %v2711, %v2639
      %v2720 = vmul.f32 %v2711, %v2640
      %v2721 = vmul.f32 %v2715, %v2641
      %v2722 = vmul.f32 %v2715, %v2642
      %v2723 = vmul.f32 %v2715, %v2643
      %v2724 = vmul.f32 %v2715, %v2644
      %2725 = vset.pattern.permute.xlu0 31
      %2726 = vperm.xlu0 %2725, %v322
      %v2727 = vpop.permute.xlu0 %2726
      %2729 = vset.pattern.permute.xlu0 31
      %2730 = vperm.xlu0 %2729, %v323
      %v2731 = vpop.permute.xlu0 %2730
      %v2733 = vmul.f32 %v2727, %v2701
      %v2734 = vmul.f32 %v2727, %v2702
      %v2735 = vmul.f32 %v2727, %v2703
      %v2736 = vmul.f32 %v2727, %v2704
      %v2737 = vmul.f32 %v2731, %v2705
      %v2738 = vmul.f32 %v2731, %v2706
      %v2739 = vmul.f32 %v2731, %v2707
      %v2740 = vmul.f32 %v2731, %v2708
      %v2741 = vadd.f32 %v2717, %v2733
      %v2742 = vadd.f32 %v2718, %v2734
      %v2743 = vadd.f32 %v2719, %v2735
      %v2744 = vadd.f32 %v2720, %v2736
      %v2745 = vadd.f32 %v2721, %v2737
      %v2746 = vadd.f32 %v2722, %v2738
      %v2747 = vadd.f32 %v2723, %v2739
      %v2748 = vadd.f32 %v2724, %v2740
      %2749 = vrot.lane.b32.xlu0 %v2741, 120
      %v2750 = vpop.permute.xlu0 %2749
      %2751 = vrot.lane.b32.xlu0 %v2745, 120
      %v2752 = vpop.permute.xlu0 %2751
      %2753 = vrot.lane.b32.xlu0 %v2742, 120
      %v2754 = vpop.permute.xlu0 %2753
      %2755 = vrot.lane.b32.xlu0 %v2746, 120
      %v2756 = vpop.permute.xlu0 %2755
      %2757 = vrot.lane.b32.xlu0 %v2743, 120
      %v2758 = vpop.permute.xlu0 %2757
      %2759 = vrot.lane.b32.xlu0 %v2747, 120
      %v2760 = vpop.permute.xlu0 %2759
      %2761 = vrot.lane.b32.xlu0 %v2744, 120
      %v2762 = vpop.permute.xlu0 %2761
      %2763 = vrot.lane.b32.xlu0 %v2748, 120
      %v2764 = vpop.permute.xlu0 %2763
      %v2765 = vsel %vm1109, %v2758, %v2762
      %v2766 = vsel %vm1109, %v2760, %v2764
      %v2767 = vsel %vm1109, %v2754, %v2758
      %v2768 = vsel %vm1109, %v2756, %v2760
      %v2769 = vsel %vm1109, %v2750, %v2754
      %v2770 = vsel %vm1109, %v2752, %v2756
      %v2771 = vsel %vm1109, %v2762, %v2750
      %v2772 = vsel %vm1109, %v2764, %v2752
      %2773 = vrot.lane.b32.xlu0 %v2741, 8
      %v2774 = vpop.permute.xlu0 %2773
      %2775 = vrot.lane.b32.xlu0 %v2745, 8
      %v2776 = vpop.permute.xlu0 %2775
      %2777 = vrot.lane.b32.xlu0 %v2742, 8
      %v2778 = vpop.permute.xlu0 %2777
      %2779 = vrot.lane.b32.xlu0 %v2746, 8
      %v2780 = vpop.permute.xlu0 %2779
      %2781 = vrot.lane.b32.xlu0 %v2743, 8
      %v2782 = vpop.permute.xlu0 %2781
      %2783 = vrot.lane.b32.xlu0 %v2747, 8
      %v2784 = vpop.permute.xlu0 %2783
      %2785 = vrot.lane.b32.xlu0 %v2744, 8
      %v2786 = vpop.permute.xlu0 %2785
      %2787 = vrot.lane.b32.xlu0 %v2748, 8
      %v2788 = vpop.permute.xlu0 %2787
      %v2789 = vsel %vm1134, %v2782, %v2786
      %v2790 = vsel %vm1134, %v2784, %v2788
      %v2791 = vsel %vm1134, %v2778, %v2782
      %v2792 = vsel %vm1134, %v2780, %v2784
      %v2793 = vsel %vm1134, %v2774, %v2778
      %v2794 = vsel %vm1134, %v2776, %v2780
      %v2795 = vsel %vm1134, %v2786, %v2774
      %v2796 = vsel %vm1134, %v2788, %v2776
      %v2797 = vsub.f32 0.0, %v2769
      %v2798 = vsub.f32 0.0, %v2767
      %v2799 = vsub.f32 0.0, %v2765
      %v2800 = vsub.f32 0.0, %v2771
      %v2801 = vsub.f32 0.0, %v2770
      %v2802 = vsub.f32 0.0, %v2768
      %v2803 = vsub.f32 0.0, %v2766
      %v2804 = vsub.f32 0.0, %v2772
      %v2805 = vsel %vm524, %v2795, %v2797
      %v2806 = vsel %vm525, %v2793, %v2798
      %v2807 = vsel %vm526, %v2791, %v2799
      %v2808 = vsel %vm527, %v2789, %v2800
      %v2809 = vsel %vm524, %v2796, %v2801
      %v2810 = vsel %vm525, %v2794, %v2802
      %v2811 = vsel %vm526, %v2792, %v2803
      %v2812 = vsel %vm527, %v2790, %v2804
      %2813 = vset.pattern.permute.xlu0 32
      %2814 = vperm.xlu0 %2813, %v320
      %v2815 = vpop.permute.xlu0 %2814
      %2817 = vset.pattern.permute.xlu0 32
      %2818 = vperm.xlu0 %2817, %v321
      %v2819 = vpop.permute.xlu0 %2818
      %v2821 = vmul.f32 %v2815, %v2741
      %v2822 = vmul.f32 %v2815, %v2742
      %v2823 = vmul.f32 %v2815, %v2743
      %v2824 = vmul.f32 %v2815, %v2744
      %v2825 = vmul.f32 %v2819, %v2745
      %v2826 = vmul.f32 %v2819, %v2746
      %v2827 = vmul.f32 %v2819, %v2747
      %v2828 = vmul.f32 %v2819, %v2748
      %2829 = vset.pattern.permute.xlu0 32
      %2830 = vperm.xlu0 %2829, %v322
      %v2831 = vpop.permute.xlu0 %2830
      %2833 = vset.pattern.permute.xlu0 32
      %2834 = vperm.xlu0 %2833, %v323
      %v2835 = vpop.permute.xlu0 %2834
      %v2837 = vmul.f32 %v2831, %v2805
      %v2838 = vmul.f32 %v2831, %v2806
      %v2839 = vmul.f32 %v2831, %v2807
      %v2840 = vmul.f32 %v2831, %v2808
      %v2841 = vmul.f32 %v2835, %v2809
      %v2842 = vmul.f32 %v2835, %v2810
      %v2843 = vmul.f32 %v2835, %v2811
      %v2844 = vmul.f32 %v2835, %v2812
      %v2845 = vadd.f32 %v2821, %v2837
      %v2846 = vadd.f32 %v2822, %v2838
      %v2847 = vadd.f32 %v2823, %v2839
      %v2848 = vadd.f32 %v2824, %v2840
      %v2849 = vadd.f32 %v2825, %v2841
      %v2850 = vadd.f32 %v2826, %v2842
      %v2851 = vadd.f32 %v2827, %v2843
      %v2852 = vadd.f32 %v2828, %v2844
      %2853 = vrot.lane.b32.xlu0 %v2845, 124
      %v2854 = vpop.permute.xlu0 %2853
      %2855 = vrot.lane.b32.xlu0 %v2849, 124
      %v2856 = vpop.permute.xlu0 %2855
      %2857 = vrot.lane.b32.xlu0 %v2846, 124
      %v2858 = vpop.permute.xlu0 %2857
      %2859 = vrot.lane.b32.xlu0 %v2850, 124
      %v2860 = vpop.permute.xlu0 %2859
      %2861 = vrot.lane.b32.xlu0 %v2847, 124
      %v2862 = vpop.permute.xlu0 %2861
      %2863 = vrot.lane.b32.xlu0 %v2851, 124
      %v2864 = vpop.permute.xlu0 %2863
      %2865 = vrot.lane.b32.xlu0 %v2848, 124
      %v2866 = vpop.permute.xlu0 %2865
      %2867 = vrot.lane.b32.xlu0 %v2852, 124
      %v2868 = vpop.permute.xlu0 %2867
      %v2869 = vsel %vm1215, %v2862, %v2866
      %v2870 = vsel %vm1215, %v2864, %v2868
      %v2871 = vsel %vm1215, %v2858, %v2862
      %v2872 = vsel %vm1215, %v2860, %v2864
      %v2873 = vsel %vm1215, %v2854, %v2858
      %v2874 = vsel %vm1215, %v2856, %v2860
      %v2875 = vsel %vm1215, %v2866, %v2854
      %v2876 = vsel %vm1215, %v2868, %v2856
      %2877 = vrot.lane.b32.xlu0 %v2845, 4
      %v2878 = vpop.permute.xlu0 %2877
      %2879 = vrot.lane.b32.xlu0 %v2849, 4
      %v2880 = vpop.permute.xlu0 %2879
      %2881 = vrot.lane.b32.xlu0 %v2846, 4
      %v2882 = vpop.permute.xlu0 %2881
      %2883 = vrot.lane.b32.xlu0 %v2850, 4
      %v2884 = vpop.permute.xlu0 %2883
      %2885 = vrot.lane.b32.xlu0 %v2847, 4
      %v2886 = vpop.permute.xlu0 %2885
      %2887 = vrot.lane.b32.xlu0 %v2851, 4
      %v2888 = vpop.permute.xlu0 %2887
      %2889 = vrot.lane.b32.xlu0 %v2848, 4
      %v2890 = vpop.permute.xlu0 %2889
      %2891 = vrot.lane.b32.xlu0 %v2852, 4
      %v2892 = vpop.permute.xlu0 %2891
      %v2893 = vsel %vm1240, %v2886, %v2890
      %v2894 = vsel %vm1240, %v2888, %v2892
      %v2895 = vsel %vm1240, %v2882, %v2886
      %v2896 = vsel %vm1240, %v2884, %v2888
      %v2897 = vsel %vm1240, %v2878, %v2882
      %v2898 = vsel %vm1240, %v2880, %v2884
      %v2899 = vsel %vm1240, %v2890, %v2878
      %v2900 = vsel %vm1240, %v2892, %v2880
      %v2901 = vsub.f32 0.0, %v2873
      %v2902 = vsub.f32 0.0, %v2871
      %v2903 = vsub.f32 0.0, %v2869
      %v2904 = vsub.f32 0.0, %v2875
      %v2905 = vsub.f32 0.0, %v2874
      %v2906 = vsub.f32 0.0, %v2872
      %v2907 = vsub.f32 0.0, %v2870
      %v2908 = vsub.f32 0.0, %v2876
      %v2909 = vsel %vm564, %v2899, %v2901
      %v2910 = vsel %vm565, %v2897, %v2902
      %v2911 = vsel %vm566, %v2895, %v2903
      %v2912 = vsel %vm567, %v2893, %v2904
      %v2913 = vsel %vm564, %v2900, %v2905
      %v2914 = vsel %vm565, %v2898, %v2906
      %v2915 = vsel %vm566, %v2896, %v2907
      %v2916 = vsel %vm567, %v2894, %v2908
      %2917 = vset.pattern.permute.xlu0 33
      %2918 = vperm.xlu0 %2917, %v320
      %v2919 = vpop.permute.xlu0 %2918
      %2921 = vset.pattern.permute.xlu0 33
      %2922 = vperm.xlu0 %2921, %v321
      %v2923 = vpop.permute.xlu0 %2922
      %v2925 = vmul.f32 %v2919, %v2845
      %v2926 = vmul.f32 %v2919, %v2846
      %v2927 = vmul.f32 %v2919, %v2847
      %v2928 = vmul.f32 %v2919, %v2848
      %v2929 = vmul.f32 %v2923, %v2849
      %v2930 = vmul.f32 %v2923, %v2850
      %v2931 = vmul.f32 %v2923, %v2851
      %v2932 = vmul.f32 %v2923, %v2852
      %2933 = vset.pattern.permute.xlu0 33
      %2934 = vperm.xlu0 %2933, %v322
      %v2935 = vpop.permute.xlu0 %2934
      %2937 = vset.pattern.permute.xlu0 33
      %2938 = vperm.xlu0 %2937, %v323
      %v2939 = vpop.permute.xlu0 %2938
      %v2941 = vmul.f32 %v2935, %v2909
      %v2942 = vmul.f32 %v2935, %v2910
      %v2943 = vmul.f32 %v2935, %v2911
      %v2944 = vmul.f32 %v2935, %v2912
      %v2945 = vmul.f32 %v2939, %v2913
      %v2946 = vmul.f32 %v2939, %v2914
      %v2947 = vmul.f32 %v2939, %v2915
      %v2948 = vmul.f32 %v2939, %v2916
      %v2949 = vadd.f32 %v2925, %v2941
      %v2950 = vadd.f32 %v2926, %v2942
      %v2951 = vadd.f32 %v2927, %v2943
      %v2952 = vadd.f32 %v2928, %v2944
      %v2953 = vadd.f32 %v2929, %v2945
      %v2954 = vadd.f32 %v2930, %v2946
      %v2955 = vadd.f32 %v2931, %v2947
      %v2956 = vadd.f32 %v2932, %v2948
      %2957 = vrot.lane.b32.xlu0 %v2949, 126
      %v2958 = vpop.permute.xlu0 %2957
      %2959 = vrot.lane.b32.xlu0 %v2953, 126
      %v2960 = vpop.permute.xlu0 %2959
      %2961 = vrot.lane.b32.xlu0 %v2950, 126
      %v2962 = vpop.permute.xlu0 %2961
      %2963 = vrot.lane.b32.xlu0 %v2954, 126
      %v2964 = vpop.permute.xlu0 %2963
      %2965 = vrot.lane.b32.xlu0 %v2951, 126
      %v2966 = vpop.permute.xlu0 %2965
      %2967 = vrot.lane.b32.xlu0 %v2955, 126
      %v2968 = vpop.permute.xlu0 %2967
      %2969 = vrot.lane.b32.xlu0 %v2952, 126
      %v2970 = vpop.permute.xlu0 %2969
      %2971 = vrot.lane.b32.xlu0 %v2956, 126
      %v2972 = vpop.permute.xlu0 %2971
      %v2973 = vsel %vm1321, %v2966, %v2970
      %v2974 = vsel %vm1321, %v2968, %v2972
      %v2975 = vsel %vm1321, %v2962, %v2966
      %v2976 = vsel %vm1321, %v2964, %v2968
      %v2977 = vsel %vm1321, %v2958, %v2962
      %v2978 = vsel %vm1321, %v2960, %v2964
      %v2979 = vsel %vm1321, %v2970, %v2958
      %v2980 = vsel %vm1321, %v2972, %v2960
      %2981 = vrot.lane.b32.xlu0 %v2949, 2
      %v2982 = vpop.permute.xlu0 %2981
      %2983 = vrot.lane.b32.xlu0 %v2953, 2
      %v2984 = vpop.permute.xlu0 %2983
      %2985 = vrot.lane.b32.xlu0 %v2950, 2
      %v2986 = vpop.permute.xlu0 %2985
      %2987 = vrot.lane.b32.xlu0 %v2954, 2
      %v2988 = vpop.permute.xlu0 %2987
      %2989 = vrot.lane.b32.xlu0 %v2951, 2
      %v2990 = vpop.permute.xlu0 %2989
      %2991 = vrot.lane.b32.xlu0 %v2955, 2
      %v2992 = vpop.permute.xlu0 %2991
      %2993 = vrot.lane.b32.xlu0 %v2952, 2
      %v2994 = vpop.permute.xlu0 %2993
      %2995 = vrot.lane.b32.xlu0 %v2956, 2
      %v2996 = vpop.permute.xlu0 %2995
      %v2997 = vsel %vm1346, %v2990, %v2994
      %v2998 = vsel %vm1346, %v2992, %v2996
      %v2999 = vsel %vm1346, %v2986, %v2990
      %v3000 = vsel %vm1346, %v2988, %v2992
      %v3001 = vsel %vm1346, %v2982, %v2986
      %v3002 = vsel %vm1346, %v2984, %v2988
      %v3003 = vsel %vm1346, %v2994, %v2982
      %v3004 = vsel %vm1346, %v2996, %v2984
      %v3005 = vsub.f32 0.0, %v2977
      %v3006 = vsub.f32 0.0, %v2975
      %v3007 = vsub.f32 0.0, %v2973
      %v3008 = vsub.f32 0.0, %v2979
      %v3009 = vsub.f32 0.0, %v2978
      %v3010 = vsub.f32 0.0, %v2976
      %v3011 = vsub.f32 0.0, %v2974
      %v3012 = vsub.f32 0.0, %v2980
      %v3013 = vsel %vm604, %v3003, %v3005
      %v3014 = vsel %vm605, %v3001, %v3006
      %v3015 = vsel %vm606, %v2999, %v3007
      %v3016 = vsel %vm607, %v2997, %v3008
      %v3017 = vsel %vm604, %v3004, %v3009
      %v3018 = vsel %vm605, %v3002, %v3010
      %v3019 = vsel %vm606, %v3000, %v3011
      %v3020 = vsel %vm607, %v2998, %v3012
      %3021 = vset.pattern.permute.xlu0 34
      %3022 = vperm.xlu0 %3021, %v320
      %v3023 = vpop.permute.xlu0 %3022
      %3025 = vset.pattern.permute.xlu0 34
      %3026 = vperm.xlu0 %3025, %v321
      %v3027 = vpop.permute.xlu0 %3026
      %v3029 = vmul.f32 %v3023, %v2949
      %v3030 = vmul.f32 %v3023, %v2950
      %v3031 = vmul.f32 %v3023, %v2951
      %v3032 = vmul.f32 %v3023, %v2952
      %v3033 = vmul.f32 %v3027, %v2953
      %v3034 = vmul.f32 %v3027, %v2954
      %v3035 = vmul.f32 %v3027, %v2955
      %v3036 = vmul.f32 %v3027, %v2956
      %3037 = vset.pattern.permute.xlu0 34
      %3038 = vperm.xlu0 %3037, %v322
      %v3039 = vpop.permute.xlu0 %3038
      %3041 = vset.pattern.permute.xlu0 34
      %3042 = vperm.xlu0 %3041, %v323
      %v3043 = vpop.permute.xlu0 %3042
      %v3045 = vmul.f32 %v3039, %v3013
      %v3046 = vmul.f32 %v3039, %v3014
      %v3047 = vmul.f32 %v3039, %v3015
      %v3048 = vmul.f32 %v3039, %v3016
      %v3049 = vmul.f32 %v3043, %v3017
      %v3050 = vmul.f32 %v3043, %v3018
      %v3051 = vmul.f32 %v3043, %v3019
      %v3052 = vmul.f32 %v3043, %v3020
      %v3053 = vadd.f32 %v3029, %v3045
      %v3054 = vadd.f32 %v3030, %v3046
      %v3055 = vadd.f32 %v3031, %v3047
      %v3056 = vadd.f32 %v3032, %v3048
      %v3057 = vadd.f32 %v3033, %v3049
      %v3058 = vadd.f32 %v3034, %v3050
      %v3059 = vadd.f32 %v3035, %v3051
      %v3060 = vadd.f32 %v3036, %v3052
      %3061 = vrot.lane.b32.xlu0 %v3053, 127
      %v3062 = vpop.permute.xlu0 %3061
      %3063 = vrot.lane.b32.xlu0 %v3057, 127
      %v3064 = vpop.permute.xlu0 %3063
      %3065 = vrot.lane.b32.xlu0 %v3054, 127
      %v3066 = vpop.permute.xlu0 %3065
      %3067 = vrot.lane.b32.xlu0 %v3058, 127
      %v3068 = vpop.permute.xlu0 %3067
      %3069 = vrot.lane.b32.xlu0 %v3055, 127
      %v3070 = vpop.permute.xlu0 %3069
      %3071 = vrot.lane.b32.xlu0 %v3059, 127
      %v3072 = vpop.permute.xlu0 %3071
      %3073 = vrot.lane.b32.xlu0 %v3056, 127
      %v3074 = vpop.permute.xlu0 %3073
      %3075 = vrot.lane.b32.xlu0 %v3060, 127
      %v3076 = vpop.permute.xlu0 %3075
      %v3077 = vsel %vm1427, %v3070, %v3074
      %v3078 = vsel %vm1427, %v3072, %v3076
      %v3079 = vsel %vm1427, %v3066, %v3070
      %v3080 = vsel %vm1427, %v3068, %v3072
      %v3081 = vsel %vm1427, %v3062, %v3066
      %v3082 = vsel %vm1427, %v3064, %v3068
      %v3083 = vsel %vm1427, %v3074, %v3062
      %v3084 = vsel %vm1427, %v3076, %v3064
      %3085 = vrot.lane.b32.xlu0 %v3053, 1
      %v3086 = vpop.permute.xlu0 %3085
      %3087 = vrot.lane.b32.xlu0 %v3057, 1
      %v3088 = vpop.permute.xlu0 %3087
      %3089 = vrot.lane.b32.xlu0 %v3054, 1
      %v3090 = vpop.permute.xlu0 %3089
      %3091 = vrot.lane.b32.xlu0 %v3058, 1
      %v3092 = vpop.permute.xlu0 %3091
      %3093 = vrot.lane.b32.xlu0 %v3055, 1
      %v3094 = vpop.permute.xlu0 %3093
      %3095 = vrot.lane.b32.xlu0 %v3059, 1
      %v3096 = vpop.permute.xlu0 %3095
      %3097 = vrot.lane.b32.xlu0 %v3056, 1
      %v3098 = vpop.permute.xlu0 %3097
      %3099 = vrot.lane.b32.xlu0 %v3060, 1
      %v3100 = vpop.permute.xlu0 %3099
      %v3101 = vsel %vm1452, %v3094, %v3098
      %v3102 = vsel %vm1452, %v3096, %v3100
      %v3103 = vsel %vm1452, %v3090, %v3094
      %v3104 = vsel %vm1452, %v3092, %v3096
      %v3105 = vsel %vm1452, %v3086, %v3090
      %v3106 = vsel %vm1452, %v3088, %v3092
      %v3107 = vsel %vm1452, %v3098, %v3086
      %v3108 = vsel %vm1452, %v3100, %v3088
      %v3109 = vsub.f32 0.0, %v3081
      %v3110 = vsub.f32 0.0, %v3079
      %v3111 = vsub.f32 0.0, %v3077
      %v3112 = vsub.f32 0.0, %v3083
      %v3113 = vsub.f32 0.0, %v3082
      %v3114 = vsub.f32 0.0, %v3080
      %v3115 = vsub.f32 0.0, %v3078
      %v3116 = vsub.f32 0.0, %v3084
      %v3117 = vsel %vm644, %v3107, %v3109
      %v3118 = vsel %vm645, %v3105, %v3110
      %v3119 = vsel %vm646, %v3103, %v3111
      %v3120 = vsel %vm647, %v3101, %v3112
      %v3121 = vsel %vm644, %v3108, %v3113
      %v3122 = vsel %vm645, %v3106, %v3114
      %v3123 = vsel %vm646, %v3104, %v3115
      %v3124 = vsel %vm647, %v3102, %v3116
      %3125 = vset.pattern.permute.xlu0 35
      %3126 = vperm.xlu0 %3125, %v320
      %v3127 = vpop.permute.xlu0 %3126
      %3129 = vset.pattern.permute.xlu0 35
      %3130 = vperm.xlu0 %3129, %v321
      %v3131 = vpop.permute.xlu0 %3130
      %v3133 = vmul.f32 %v3127, %v3053
      %v3134 = vmul.f32 %v3127, %v3054
      %v3135 = vmul.f32 %v3127, %v3055
      %v3136 = vmul.f32 %v3127, %v3056
      %v3137 = vmul.f32 %v3131, %v3057
      %v3138 = vmul.f32 %v3131, %v3058
      %v3139 = vmul.f32 %v3131, %v3059
      %v3140 = vmul.f32 %v3131, %v3060
      %3141 = vset.pattern.permute.xlu0 35
      %3142 = vperm.xlu0 %3141, %v322
      %v3143 = vpop.permute.xlu0 %3142
      %3145 = vset.pattern.permute.xlu0 35
      %3146 = vperm.xlu0 %3145, %v323
      %v3147 = vpop.permute.xlu0 %3146
      %v3149 = vmul.f32 %v3143, %v3117
      %v3150 = vmul.f32 %v3143, %v3118
      %v3151 = vmul.f32 %v3143, %v3119
      %v3152 = vmul.f32 %v3143, %v3120
      %v3153 = vmul.f32 %v3147, %v3121
      %v3154 = vmul.f32 %v3147, %v3122
      %v3155 = vmul.f32 %v3147, %v3123
      %v3156 = vmul.f32 %v3147, %v3124
      %v3157 = vadd.f32 %v3133, %v3149
      %v3158 = vadd.f32 %v3134, %v3150
      %v3159 = vadd.f32 %v3135, %v3151
      %v3160 = vadd.f32 %v3136, %v3152
      %v3161 = vadd.f32 %v3137, %v3153
      %v3162 = vadd.f32 %v3138, %v3154
      %v3163 = vadd.f32 %v3139, %v3155
      %v3164 = vadd.f32 %v3140, %v3156
      %v3165 = vmul.f32 %v3157, %v216
      %v3166 = vmul.f32 %v3158, %v217
      %v3167 = vmul.f32 %v3159, %v218
      %v3168 = vmul.f32 %v3160, %v219
      %v3169 = vmul.f32 %v3161, %v216
      %v3170 = vmul.f32 %v3162, %v217
      %v3171 = vmul.f32 %v3163, %v218
      %v3172 = vmul.f32 %v3164, %v219
      %v3173 = vsub.f32 0.0, %v3167
      %v3174 = vsub.f32 0.0, %v3168
      %v3175 = vsub.f32 0.0, %v3165
      %v3176 = vsub.f32 0.0, %v3166
      %v3177 = vsub.f32 0.0, %v3171
      %v3178 = vsub.f32 0.0, %v3172
      %v3179 = vsub.f32 0.0, %v3169
      %v3180 = vsub.f32 0.0, %v3170
      %v3181 = vsel %vm328, %v3167, %v3173
      %v3182 = vsel %vm329, %v3168, %v3174
      %v3183 = vsel %vm330, %v3165, %v3175
      %v3184 = vsel %vm331, %v3166, %v3176
      %v3185 = vsel %vm328, %v3171, %v3177
      %v3186 = vsel %vm329, %v3172, %v3178
      %v3187 = vsel %vm330, %v3169, %v3179
      %v3188 = vsel %vm331, %v3170, %v3180
      %3189 = vset.pattern.permute.xlu0 36
      %3190 = vperm.xlu0 %3189, %v320
      %v3191 = vpop.permute.xlu0 %3190
      %3193 = vset.pattern.permute.xlu0 36
      %3194 = vperm.xlu0 %3193, %v321
      %v3195 = vpop.permute.xlu0 %3194
      %v3197 = vmul.f32 %v3191, %v3165
      %v3198 = vmul.f32 %v3191, %v3166
      %v3199 = vmul.f32 %v3191, %v3167
      %v3200 = vmul.f32 %v3191, %v3168
      %v3201 = vmul.f32 %v3195, %v3169
      %v3202 = vmul.f32 %v3195, %v3170
      %v3203 = vmul.f32 %v3195, %v3171
      %v3204 = vmul.f32 %v3195, %v3172
      %3205 = vset.pattern.permute.xlu0 36
      %3206 = vperm.xlu0 %3205, %v322
      %v3207 = vpop.permute.xlu0 %3206
      %3209 = vset.pattern.permute.xlu0 36
      %3210 = vperm.xlu0 %3209, %v323
      %v3211 = vpop.permute.xlu0 %3210
      %v3213 = vmul.f32 %v3207, %v3181
      %v3214 = vmul.f32 %v3207, %v3182
      %v3215 = vmul.f32 %v3207, %v3183
      %v3216 = vmul.f32 %v3207, %v3184
      %v3217 = vmul.f32 %v3211, %v3185
      %v3218 = vmul.f32 %v3211, %v3186
      %v3219 = vmul.f32 %v3211, %v3187
      %v3220 = vmul.f32 %v3211, %v3188
      %v3221 = vadd.f32 %v3197, %v3213
      %v3222 = vadd.f32 %v3198, %v3214
      %v3223 = vadd.f32 %v3199, %v3215
      %v3224 = vadd.f32 %v3200, %v3216
      %v3225 = vadd.f32 %v3201, %v3217
      %v3226 = vadd.f32 %v3202, %v3218
      %v3227 = vadd.f32 %v3203, %v3219
      %v3228 = vadd.f32 %v3204, %v3220
      %v3229 = vsub.f32 0.0, %v3222
      %v3230 = vsub.f32 0.0, %v3223
      %v3231 = vsub.f32 0.0, %v3224
      %v3232 = vsub.f32 0.0, %v3221
      %v3233 = vsub.f32 0.0, %v3226
      %v3234 = vsub.f32 0.0, %v3227
      %v3235 = vsub.f32 0.0, %v3228
      %v3236 = vsub.f32 0.0, %v3225
      %v3237 = vsel %vm364, %v3224, %v3229
      %v3238 = vsel %vm365, %v3221, %v3230
      %v3239 = vsel %vm366, %v3222, %v3231
      %v3240 = vsel %vm367, %v3223, %v3232
      %v3241 = vsel %vm364, %v3228, %v3233
      %v3242 = vsel %vm365, %v3225, %v3234
      %v3243 = vsel %vm366, %v3226, %v3235
      %v3244 = vsel %vm367, %v3227, %v3236
      %3245 = vset.pattern.permute.xlu0 37
      %3246 = vperm.xlu0 %3245, %v320
      %v3247 = vpop.permute.xlu0 %3246
      %3249 = vset.pattern.permute.xlu0 37
      %3250 = vperm.xlu0 %3249, %v321
      %v3251 = vpop.permute.xlu0 %3250
      %v3253 = vmul.f32 %v3247, %v3221
      %v3254 = vmul.f32 %v3247, %v3222
      %v3255 = vmul.f32 %v3247, %v3223
      %v3256 = vmul.f32 %v3247, %v3224
      %v3257 = vmul.f32 %v3251, %v3225
      %v3258 = vmul.f32 %v3251, %v3226
      %v3259 = vmul.f32 %v3251, %v3227
      %v3260 = vmul.f32 %v3251, %v3228
      %3261 = vset.pattern.permute.xlu0 37
      %3262 = vperm.xlu0 %3261, %v322
      %v3263 = vpop.permute.xlu0 %3262
      %3265 = vset.pattern.permute.xlu0 37
      %3266 = vperm.xlu0 %3265, %v323
      %v3267 = vpop.permute.xlu0 %3266
      %v3269 = vmul.f32 %v3263, %v3237
      %v3270 = vmul.f32 %v3263, %v3238
      %v3271 = vmul.f32 %v3263, %v3239
      %v3272 = vmul.f32 %v3263, %v3240
      %v3273 = vmul.f32 %v3267, %v3241
      %v3274 = vmul.f32 %v3267, %v3242
      %v3275 = vmul.f32 %v3267, %v3243
      %v3276 = vmul.f32 %v3267, %v3244
      %v3277 = vadd.f32 %v3253, %v3269
      %v3278 = vadd.f32 %v3254, %v3270
      %v3279 = vadd.f32 %v3255, %v3271
      %v3280 = vadd.f32 %v3256, %v3272
      %v3281 = vadd.f32 %v3257, %v3273
      %v3282 = vadd.f32 %v3258, %v3274
      %v3283 = vadd.f32 %v3259, %v3275
      %v3284 = vadd.f32 %v3260, %v3276
      %3285 = vrot.lane.b32.xlu0 %v3277, 64
      %v3286 = vpop.permute.xlu0 %3285
      %3287 = vrot.lane.b32.xlu0 %v3281, 64
      %v3288 = vpop.permute.xlu0 %3287
      %3289 = vrot.lane.b32.xlu0 %v3278, 64
      %v3290 = vpop.permute.xlu0 %3289
      %3291 = vrot.lane.b32.xlu0 %v3282, 64
      %v3292 = vpop.permute.xlu0 %3291
      %3293 = vrot.lane.b32.xlu0 %v3279, 64
      %v3294 = vpop.permute.xlu0 %3293
      %3295 = vrot.lane.b32.xlu0 %v3283, 64
      %v3296 = vpop.permute.xlu0 %3295
      %3297 = vrot.lane.b32.xlu0 %v3280, 64
      %v3298 = vpop.permute.xlu0 %3297
      %3299 = vrot.lane.b32.xlu0 %v3284, 64
      %v3300 = vpop.permute.xlu0 %3299
      %v3301 = vsel %vm816, %v3294, %v3298
      %v3302 = vsel %vm816, %v3296, %v3300
      %v3303 = vsel %vm816, %v3290, %v3294
      %v3304 = vsel %vm816, %v3292, %v3296
      %v3305 = vsel %vm816, %v3286, %v3290
      %v3306 = vsel %vm816, %v3288, %v3292
      %v3307 = vsel %vm816, %v3298, %v3286
      %v3308 = vsel %vm816, %v3300, %v3288
      %v3309 = vsub.f32 0.0, %v3305
      %v3310 = vsub.f32 0.0, %v3303
      %v3311 = vsub.f32 0.0, %v3301
      %v3312 = vsub.f32 0.0, %v3307
      %v3313 = vsub.f32 0.0, %v3306
      %v3314 = vsub.f32 0.0, %v3304
      %v3315 = vsub.f32 0.0, %v3302
      %v3316 = vsub.f32 0.0, %v3308
      %v3317 = vsel %vm404, %v3307, %v3309
      %v3318 = vsel %vm405, %v3305, %v3310
      %v3319 = vsel %vm406, %v3303, %v3311
      %v3320 = vsel %vm407, %v3301, %v3312
      %v3321 = vsel %vm404, %v3308, %v3313
      %v3322 = vsel %vm405, %v3306, %v3314
      %v3323 = vsel %vm406, %v3304, %v3315
      %v3324 = vsel %vm407, %v3302, %v3316
      %3325 = vset.pattern.permute.xlu0 38
      %3326 = vperm.xlu0 %3325, %v320
      %v3327 = vpop.permute.xlu0 %3326
      %3329 = vset.pattern.permute.xlu0 38
      %3330 = vperm.xlu0 %3329, %v321
      %v3331 = vpop.permute.xlu0 %3330
      %v3333 = vmul.f32 %v3327, %v3277
      %v3334 = vmul.f32 %v3327, %v3278
      %v3335 = vmul.f32 %v3327, %v3279
      %v3336 = vmul.f32 %v3327, %v3280
      %v3337 = vmul.f32 %v3331, %v3281
      %v3338 = vmul.f32 %v3331, %v3282
      %v3339 = vmul.f32 %v3331, %v3283
      %v3340 = vmul.f32 %v3331, %v3284
      %3341 = vset.pattern.permute.xlu0 38
      %3342 = vperm.xlu0 %3341, %v322
      %v3343 = vpop.permute.xlu0 %3342
      %3345 = vset.pattern.permute.xlu0 38
      %3346 = vperm.xlu0 %3345, %v323
      %v3347 = vpop.permute.xlu0 %3346
      %v3349 = vmul.f32 %v3343, %v3317
      %v3350 = vmul.f32 %v3343, %v3318
      %v3351 = vmul.f32 %v3343, %v3319
      %v3352 = vmul.f32 %v3343, %v3320
      %v3353 = vmul.f32 %v3347, %v3321
      %v3354 = vmul.f32 %v3347, %v3322
      %v3355 = vmul.f32 %v3347, %v3323
      %v3356 = vmul.f32 %v3347, %v3324
      %v3357 = vadd.f32 %v3333, %v3349
      %v3358 = vadd.f32 %v3334, %v3350
      %v3359 = vadd.f32 %v3335, %v3351
      %v3360 = vadd.f32 %v3336, %v3352
      %v3361 = vadd.f32 %v3337, %v3353
      %v3362 = vadd.f32 %v3338, %v3354
      %v3363 = vadd.f32 %v3339, %v3355
      %v3364 = vadd.f32 %v3340, %v3356
      %3365 = vrot.lane.b32.xlu0 %v3357, 96
      %v3366 = vpop.permute.xlu0 %3365
      %3367 = vrot.lane.b32.xlu0 %v3361, 96
      %v3368 = vpop.permute.xlu0 %3367
      %3369 = vrot.lane.b32.xlu0 %v3358, 96
      %v3370 = vpop.permute.xlu0 %3369
      %3371 = vrot.lane.b32.xlu0 %v3362, 96
      %v3372 = vpop.permute.xlu0 %3371
      %3373 = vrot.lane.b32.xlu0 %v3359, 96
      %v3374 = vpop.permute.xlu0 %3373
      %3375 = vrot.lane.b32.xlu0 %v3363, 96
      %v3376 = vpop.permute.xlu0 %3375
      %3377 = vrot.lane.b32.xlu0 %v3360, 96
      %v3378 = vpop.permute.xlu0 %3377
      %3379 = vrot.lane.b32.xlu0 %v3364, 96
      %v3380 = vpop.permute.xlu0 %3379
      %v3381 = vsel %vm897, %v3374, %v3378
      %v3382 = vsel %vm897, %v3376, %v3380
      %v3383 = vsel %vm897, %v3370, %v3374
      %v3384 = vsel %vm897, %v3372, %v3376
      %v3385 = vsel %vm897, %v3366, %v3370
      %v3386 = vsel %vm897, %v3368, %v3372
      %v3387 = vsel %vm897, %v3378, %v3366
      %v3388 = vsel %vm897, %v3380, %v3368
      %3389 = vrot.lane.b32.xlu0 %v3357, 32
      %v3390 = vpop.permute.xlu0 %3389
      %3391 = vrot.lane.b32.xlu0 %v3361, 32
      %v3392 = vpop.permute.xlu0 %3391
      %3393 = vrot.lane.b32.xlu0 %v3358, 32
      %v3394 = vpop.permute.xlu0 %3393
      %3395 = vrot.lane.b32.xlu0 %v3362, 32
      %v3396 = vpop.permute.xlu0 %3395
      %3397 = vrot.lane.b32.xlu0 %v3359, 32
      %v3398 = vpop.permute.xlu0 %3397
      %3399 = vrot.lane.b32.xlu0 %v3363, 32
      %v3400 = vpop.permute.xlu0 %3399
      %3401 = vrot.lane.b32.xlu0 %v3360, 32
      %v3402 = vpop.permute.xlu0 %3401
      %3403 = vrot.lane.b32.xlu0 %v3364, 32
      %v3404 = vpop.permute.xlu0 %3403
      %v3405 = vsel %vm922, %v3398, %v3402
      %v3406 = vsel %vm922, %v3400, %v3404
      %v3407 = vsel %vm922, %v3394, %v3398
      %v3408 = vsel %vm922, %v3396, %v3400
      %v3409 = vsel %vm922, %v3390, %v3394
      %v3410 = vsel %vm922, %v3392, %v3396
      %v3411 = vsel %vm922, %v3402, %v3390
      %v3412 = vsel %vm922, %v3404, %v3392
      %v3413 = vsub.f32 0.0, %v3385
      %v3414 = vsub.f32 0.0, %v3383
      %v3415 = vsub.f32 0.0, %v3381
      %v3416 = vsub.f32 0.0, %v3387
      %v3417 = vsub.f32 0.0, %v3386
      %v3418 = vsub.f32 0.0, %v3384
      %v3419 = vsub.f32 0.0, %v3382
      %v3420 = vsub.f32 0.0, %v3388
      %v3421 = vsel %vm444, %v3411, %v3413
      %v3422 = vsel %vm445, %v3409, %v3414
      %v3423 = vsel %vm446, %v3407, %v3415
      %v3424 = vsel %vm447, %v3405, %v3416
      %v3425 = vsel %vm444, %v3412, %v3417
      %v3426 = vsel %vm445, %v3410, %v3418
      %v3427 = vsel %vm446, %v3408, %v3419
      %v3428 = vsel %vm447, %v3406, %v3420
      %3429 = vset.pattern.permute.xlu0 39
      %3430 = vperm.xlu0 %3429, %v320
      %v3431 = vpop.permute.xlu0 %3430
      %3433 = vset.pattern.permute.xlu0 39
      %3434 = vperm.xlu0 %3433, %v321
      %v3435 = vpop.permute.xlu0 %3434
      %v3437 = vmul.f32 %v3431, %v3357
      %v3438 = vmul.f32 %v3431, %v3358
      %v3439 = vmul.f32 %v3431, %v3359
      %v3440 = vmul.f32 %v3431, %v3360
      %v3441 = vmul.f32 %v3435, %v3361
      %v3442 = vmul.f32 %v3435, %v3362
      %v3443 = vmul.f32 %v3435, %v3363
      %v3444 = vmul.f32 %v3435, %v3364
      %3445 = vset.pattern.permute.xlu0 39
      %3446 = vperm.xlu0 %3445, %v322
      %v3447 = vpop.permute.xlu0 %3446
      %3449 = vset.pattern.permute.xlu0 39
      %3450 = vperm.xlu0 %3449, %v323
      %v3451 = vpop.permute.xlu0 %3450
      %v3453 = vmul.f32 %v3447, %v3421
      %v3454 = vmul.f32 %v3447, %v3422
      %v3455 = vmul.f32 %v3447, %v3423
      %v3456 = vmul.f32 %v3447, %v3424
      %v3457 = vmul.f32 %v3451, %v3425
      %v3458 = vmul.f32 %v3451, %v3426
      %v3459 = vmul.f32 %v3451, %v3427
      %v3460 = vmul.f32 %v3451, %v3428
      %v3461 = vadd.f32 %v3437, %v3453
      %v3462 = vadd.f32 %v3438, %v3454
      %v3463 = vadd.f32 %v3439, %v3455
      %v3464 = vadd.f32 %v3440, %v3456
      %v3465 = vadd.f32 %v3441, %v3457
      %v3466 = vadd.f32 %v3442, %v3458
      %v3467 = vadd.f32 %v3443, %v3459
      %v3468 = vadd.f32 %v3444, %v3460
      %3469 = vrot.lane.b32.xlu0 %v3461, 112
      %v3470 = vpop.permute.xlu0 %3469
      %3471 = vrot.lane.b32.xlu0 %v3465, 112
      %v3472 = vpop.permute.xlu0 %3471
      %3473 = vrot.lane.b32.xlu0 %v3462, 112
      %v3474 = vpop.permute.xlu0 %3473
      %3475 = vrot.lane.b32.xlu0 %v3466, 112
      %v3476 = vpop.permute.xlu0 %3475
      %3477 = vrot.lane.b32.xlu0 %v3463, 112
      %v3478 = vpop.permute.xlu0 %3477
      %3479 = vrot.lane.b32.xlu0 %v3467, 112
      %v3480 = vpop.permute.xlu0 %3479
      %3481 = vrot.lane.b32.xlu0 %v3464, 112
      %v3482 = vpop.permute.xlu0 %3481
      %3483 = vrot.lane.b32.xlu0 %v3468, 112
      %v3484 = vpop.permute.xlu0 %3483
      %v3485 = vsel %vm1003, %v3478, %v3482
      %v3486 = vsel %vm1003, %v3480, %v3484
      %v3487 = vsel %vm1003, %v3474, %v3478
      %v3488 = vsel %vm1003, %v3476, %v3480
      %v3489 = vsel %vm1003, %v3470, %v3474
      %v3490 = vsel %vm1003, %v3472, %v3476
      %v3491 = vsel %vm1003, %v3482, %v3470
      %v3492 = vsel %vm1003, %v3484, %v3472
      %3493 = vrot.lane.b32.xlu0 %v3461, 16
      %v3494 = vpop.permute.xlu0 %3493
      %3495 = vrot.lane.b32.xlu0 %v3465, 16
      %v3496 = vpop.permute.xlu0 %3495
      %3497 = vrot.lane.b32.xlu0 %v3462, 16
      %v3498 = vpop.permute.xlu0 %3497
      %3499 = vrot.lane.b32.xlu0 %v3466, 16
      %v3500 = vpop.permute.xlu0 %3499
      %3501 = vrot.lane.b32.xlu0 %v3463, 16
      %v3502 = vpop.permute.xlu0 %3501
      %3503 = vrot.lane.b32.xlu0 %v3467, 16
      %v3504 = vpop.permute.xlu0 %3503
      %3505 = vrot.lane.b32.xlu0 %v3464, 16
      %v3506 = vpop.permute.xlu0 %3505
      %3507 = vrot.lane.b32.xlu0 %v3468, 16
      %v3508 = vpop.permute.xlu0 %3507
      %v3509 = vsel %vm1028, %v3502, %v3506
      %v3510 = vsel %vm1028, %v3504, %v3508
      %v3511 = vsel %vm1028, %v3498, %v3502
      %v3512 = vsel %vm1028, %v3500, %v3504
      %v3513 = vsel %vm1028, %v3494, %v3498
      %v3514 = vsel %vm1028, %v3496, %v3500
      %v3515 = vsel %vm1028, %v3506, %v3494
      %v3516 = vsel %vm1028, %v3508, %v3496
      %v3517 = vsub.f32 0.0, %v3489
      %v3518 = vsub.f32 0.0, %v3487
      %v3519 = vsub.f32 0.0, %v3485
      %v3520 = vsub.f32 0.0, %v3491
      %v3521 = vsub.f32 0.0, %v3490
      %v3522 = vsub.f32 0.0, %v3488
      %v3523 = vsub.f32 0.0, %v3486
      %v3524 = vsub.f32 0.0, %v3492
      %v3525 = vsel %vm484, %v3515, %v3517
      %v3526 = vsel %vm485, %v3513, %v3518
      %v3527 = vsel %vm486, %v3511, %v3519
      %v3528 = vsel %vm487, %v3509, %v3520
      %v3529 = vsel %vm484, %v3516, %v3521
      %v3530 = vsel %vm485, %v3514, %v3522
      %v3531 = vsel %vm486, %v3512, %v3523
      %v3532 = vsel %vm487, %v3510, %v3524
      %3533 = vset.pattern.permute.xlu0 40
      %3534 = vperm.xlu0 %3533, %v320
      %v3535 = vpop.permute.xlu0 %3534
      %3537 = vset.pattern.permute.xlu0 40
      %3538 = vperm.xlu0 %3537, %v321
      %v3539 = vpop.permute.xlu0 %3538
      %v3541 = vmul.f32 %v3535, %v3461
      %v3542 = vmul.f32 %v3535, %v3462
      %v3543 = vmul.f32 %v3535, %v3463
      %v3544 = vmul.f32 %v3535, %v3464
      %v3545 = vmul.f32 %v3539, %v3465
      %v3546 = vmul.f32 %v3539, %v3466
      %v3547 = vmul.f32 %v3539, %v3467
      %v3548 = vmul.f32 %v3539, %v3468
      %3549 = vset.pattern.permute.xlu0 40
      %3550 = vperm.xlu0 %3549, %v322
      %v3551 = vpop.permute.xlu0 %3550
      %3553 = vset.pattern.permute.xlu0 40
      %3554 = vperm.xlu0 %3553, %v323
      %v3555 = vpop.permute.xlu0 %3554
      %v3557 = vmul.f32 %v3551, %v3525
      %v3558 = vmul.f32 %v3551, %v3526
      %v3559 = vmul.f32 %v3551, %v3527
      %v3560 = vmul.f32 %v3551, %v3528
      %v3561 = vmul.f32 %v3555, %v3529
      %v3562 = vmul.f32 %v3555, %v3530
      %v3563 = vmul.f32 %v3555, %v3531
      %v3564 = vmul.f32 %v3555, %v3532
      %v3565 = vadd.f32 %v3541, %v3557
      %v3566 = vadd.f32 %v3542, %v3558
      %v3567 = vadd.f32 %v3543, %v3559
      %v3568 = vadd.f32 %v3544, %v3560
      %v3569 = vadd.f32 %v3545, %v3561
      %v3570 = vadd.f32 %v3546, %v3562
      %v3571 = vadd.f32 %v3547, %v3563
      %v3572 = vadd.f32 %v3548, %v3564
      %3573 = vrot.lane.b32.xlu0 %v3565, 120
      %v3574 = vpop.permute.xlu0 %3573
      %3575 = vrot.lane.b32.xlu0 %v3569, 120
      %v3576 = vpop.permute.xlu0 %3575
      %3577 = vrot.lane.b32.xlu0 %v3566, 120
      %v3578 = vpop.permute.xlu0 %3577
      %3579 = vrot.lane.b32.xlu0 %v3570, 120
      %v3580 = vpop.permute.xlu0 %3579
      %3581 = vrot.lane.b32.xlu0 %v3567, 120
      %v3582 = vpop.permute.xlu0 %3581
      %3583 = vrot.lane.b32.xlu0 %v3571, 120
      %v3584 = vpop.permute.xlu0 %3583
      %3585 = vrot.lane.b32.xlu0 %v3568, 120
      %v3586 = vpop.permute.xlu0 %3585
      %3587 = vrot.lane.b32.xlu0 %v3572, 120
      %v3588 = vpop.permute.xlu0 %3587
      %v3589 = vsel %vm1109, %v3582, %v3586
      %v3590 = vsel %vm1109, %v3584, %v3588
      %v3591 = vsel %vm1109, %v3578, %v3582
      %v3592 = vsel %vm1109, %v3580, %v3584
      %v3593 = vsel %vm1109, %v3574, %v3578
      %v3594 = vsel %vm1109, %v3576, %v3580
      %v3595 = vsel %vm1109, %v3586, %v3574
      %v3596 = vsel %vm1109, %v3588, %v3576
      %3597 = vrot.lane.b32.xlu0 %v3565, 8
      %v3598 = vpop.permute.xlu0 %3597
      %3599 = vrot.lane.b32.xlu0 %v3569, 8
      %v3600 = vpop.permute.xlu0 %3599
      %3601 = vrot.lane.b32.xlu0 %v3566, 8
      %v3602 = vpop.permute.xlu0 %3601
      %3603 = vrot.lane.b32.xlu0 %v3570, 8
      %v3604 = vpop.permute.xlu0 %3603
      %3605 = vrot.lane.b32.xlu0 %v3567, 8
      %v3606 = vpop.permute.xlu0 %3605
      %3607 = vrot.lane.b32.xlu0 %v3571, 8
      %v3608 = vpop.permute.xlu0 %3607
      %3609 = vrot.lane.b32.xlu0 %v3568, 8
      %v3610 = vpop.permute.xlu0 %3609
      %3611 = vrot.lane.b32.xlu0 %v3572, 8
      %v3612 = vpop.permute.xlu0 %3611
      %v3613 = vsel %vm1134, %v3606, %v3610
      %v3614 = vsel %vm1134, %v3608, %v3612
      %v3615 = vsel %vm1134, %v3602, %v3606
      %v3616 = vsel %vm1134, %v3604, %v3608
      %v3617 = vsel %vm1134, %v3598, %v3602
      %v3618 = vsel %vm1134, %v3600, %v3604
      %v3619 = vsel %vm1134, %v3610, %v3598
      %v3620 = vsel %vm1134, %v3612, %v3600
      %v3621 = vsub.f32 0.0, %v3593
      %v3622 = vsub.f32 0.0, %v3591
      %v3623 = vsub.f32 0.0, %v3589
      %v3624 = vsub.f32 0.0, %v3595
      %v3625 = vsub.f32 0.0, %v3594
      %v3626 = vsub.f32 0.0, %v3592
      %v3627 = vsub.f32 0.0, %v3590
      %v3628 = vsub.f32 0.0, %v3596
      %v3629 = vsel %vm524, %v3619, %v3621
      %v3630 = vsel %vm525, %v3617, %v3622
      %v3631 = vsel %vm526, %v3615, %v3623
      %v3632 = vsel %vm527, %v3613, %v3624
      %v3633 = vsel %vm524, %v3620, %v3625
      %v3634 = vsel %vm525, %v3618, %v3626
      %v3635 = vsel %vm526, %v3616, %v3627
      %v3636 = vsel %vm527, %v3614, %v3628
      %3637 = vset.pattern.permute.xlu0 41
      %3638 = vperm.xlu0 %3637, %v320
      %v3639 = vpop.permute.xlu0 %3638
      %3641 = vset.pattern.permute.xlu0 41
      %3642 = vperm.xlu0 %3641, %v321
      %v3643 = vpop.permute.xlu0 %3642
      %v3645 = vmul.f32 %v3639, %v3565
      %v3646 = vmul.f32 %v3639, %v3566
      %v3647 = vmul.f32 %v3639, %v3567
      %v3648 = vmul.f32 %v3639, %v3568
      %v3649 = vmul.f32 %v3643, %v3569
      %v3650 = vmul.f32 %v3643, %v3570
      %v3651 = vmul.f32 %v3643, %v3571
      %v3652 = vmul.f32 %v3643, %v3572
      %3653 = vset.pattern.permute.xlu0 41
      %3654 = vperm.xlu0 %3653, %v322
      %v3655 = vpop.permute.xlu0 %3654
      %3657 = vset.pattern.permute.xlu0 41
      %3658 = vperm.xlu0 %3657, %v323
      %v3659 = vpop.permute.xlu0 %3658
      %v3661 = vmul.f32 %v3655, %v3629
      %v3662 = vmul.f32 %v3655, %v3630
      %v3663 = vmul.f32 %v3655, %v3631
      %v3664 = vmul.f32 %v3655, %v3632
      %v3665 = vmul.f32 %v3659, %v3633
      %v3666 = vmul.f32 %v3659, %v3634
      %v3667 = vmul.f32 %v3659, %v3635
      %v3668 = vmul.f32 %v3659, %v3636
      %v3669 = vadd.f32 %v3645, %v3661
      %v3670 = vadd.f32 %v3646, %v3662
      %v3671 = vadd.f32 %v3647, %v3663
      %v3672 = vadd.f32 %v3648, %v3664
      %v3673 = vadd.f32 %v3649, %v3665
      %v3674 = vadd.f32 %v3650, %v3666
      %v3675 = vadd.f32 %v3651, %v3667
      %v3676 = vadd.f32 %v3652, %v3668
      %3677 = vrot.lane.b32.xlu0 %v3669, 124
      %v3678 = vpop.permute.xlu0 %3677
      %3679 = vrot.lane.b32.xlu0 %v3673, 124
      %v3680 = vpop.permute.xlu0 %3679
      %3681 = vrot.lane.b32.xlu0 %v3670, 124
      %v3682 = vpop.permute.xlu0 %3681
      %3683 = vrot.lane.b32.xlu0 %v3674, 124
      %v3684 = vpop.permute.xlu0 %3683
      %3685 = vrot.lane.b32.xlu0 %v3671, 124
      %v3686 = vpop.permute.xlu0 %3685
      %3687 = vrot.lane.b32.xlu0 %v3675, 124
      %v3688 = vpop.permute.xlu0 %3687
      %3689 = vrot.lane.b32.xlu0 %v3672, 124
      %v3690 = vpop.permute.xlu0 %3689
      %3691 = vrot.lane.b32.xlu0 %v3676, 124
      %v3692 = vpop.permute.xlu0 %3691
      %v3693 = vsel %vm1215, %v3686, %v3690
      %v3694 = vsel %vm1215, %v3688, %v3692
      %v3695 = vsel %vm1215, %v3682, %v3686
      %v3696 = vsel %vm1215, %v3684, %v3688
      %v3697 = vsel %vm1215, %v3678, %v3682
      %v3698 = vsel %vm1215, %v3680, %v3684
      %v3699 = vsel %vm1215, %v3690, %v3678
      %v3700 = vsel %vm1215, %v3692, %v3680
      %3701 = vrot.lane.b32.xlu0 %v3669, 4
      %v3702 = vpop.permute.xlu0 %3701
      %3703 = vrot.lane.b32.xlu0 %v3673, 4
      %v3704 = vpop.permute.xlu0 %3703
      %3705 = vrot.lane.b32.xlu0 %v3670, 4
      %v3706 = vpop.permute.xlu0 %3705
      %3707 = vrot.lane.b32.xlu0 %v3674, 4
      %v3708 = vpop.permute.xlu0 %3707
      %3709 = vrot.lane.b32.xlu0 %v3671, 4
      %v3710 = vpop.permute.xlu0 %3709
      %3711 = vrot.lane.b32.xlu0 %v3675, 4
      %v3712 = vpop.permute.xlu0 %3711
      %3713 = vrot.lane.b32.xlu0 %v3672, 4
      %v3714 = vpop.permute.xlu0 %3713
      %3715 = vrot.lane.b32.xlu0 %v3676, 4
      %v3716 = vpop.permute.xlu0 %3715
      %v3717 = vsel %vm1240, %v3710, %v3714
      %v3718 = vsel %vm1240, %v3712, %v3716
      %v3719 = vsel %vm1240, %v3706, %v3710
      %v3720 = vsel %vm1240, %v3708, %v3712
      %v3721 = vsel %vm1240, %v3702, %v3706
      %v3722 = vsel %vm1240, %v3704, %v3708
      %v3723 = vsel %vm1240, %v3714, %v3702
      %v3724 = vsel %vm1240, %v3716, %v3704
      %v3725 = vsub.f32 0.0, %v3697
      %v3726 = vsub.f32 0.0, %v3695
      %v3727 = vsub.f32 0.0, %v3693
      %v3728 = vsub.f32 0.0, %v3699
      %v3729 = vsub.f32 0.0, %v3698
      %v3730 = vsub.f32 0.0, %v3696
      %v3731 = vsub.f32 0.0, %v3694
      %v3732 = vsub.f32 0.0, %v3700
      %v3733 = vsel %vm564, %v3723, %v3725
      %v3734 = vsel %vm565, %v3721, %v3726
      %v3735 = vsel %vm566, %v3719, %v3727
      %v3736 = vsel %vm567, %v3717, %v3728
      %v3737 = vsel %vm564, %v3724, %v3729
      %v3738 = vsel %vm565, %v3722, %v3730
      %v3739 = vsel %vm566, %v3720, %v3731
      %v3740 = vsel %vm567, %v3718, %v3732
      %3741 = vset.pattern.permute.xlu0 42
      %3742 = vperm.xlu0 %3741, %v320
      %v3743 = vpop.permute.xlu0 %3742
      %3745 = vset.pattern.permute.xlu0 42
      %3746 = vperm.xlu0 %3745, %v321
      %v3747 = vpop.permute.xlu0 %3746
      %v3749 = vmul.f32 %v3743, %v3669
      %v3750 = vmul.f32 %v3743, %v3670
      %v3751 = vmul.f32 %v3743, %v3671
      %v3752 = vmul.f32 %v3743, %v3672
      %v3753 = vmul.f32 %v3747, %v3673
      %v3754 = vmul.f32 %v3747, %v3674
      %v3755 = vmul.f32 %v3747, %v3675
      %v3756 = vmul.f32 %v3747, %v3676
      %3757 = vset.pattern.permute.xlu0 42
      %3758 = vperm.xlu0 %3757, %v322
      %v3759 = vpop.permute.xlu0 %3758
      %3761 = vset.pattern.permute.xlu0 42
      %3762 = vperm.xlu0 %3761, %v323
      %v3763 = vpop.permute.xlu0 %3762
      %v3765 = vmul.f32 %v3759, %v3733
      %v3766 = vmul.f32 %v3759, %v3734
      %v3767 = vmul.f32 %v3759, %v3735
      %v3768 = vmul.f32 %v3759, %v3736
      %v3769 = vmul.f32 %v3763, %v3737
      %v3770 = vmul.f32 %v3763, %v3738
      %v3771 = vmul.f32 %v3763, %v3739
      %v3772 = vmul.f32 %v3763, %v3740
      %v3773 = vadd.f32 %v3749, %v3765
      %v3774 = vadd.f32 %v3750, %v3766
      %v3775 = vadd.f32 %v3751, %v3767
      %v3776 = vadd.f32 %v3752, %v3768
      %v3777 = vadd.f32 %v3753, %v3769
      %v3778 = vadd.f32 %v3754, %v3770
      %v3779 = vadd.f32 %v3755, %v3771
      %v3780 = vadd.f32 %v3756, %v3772
      %3781 = vrot.lane.b32.xlu0 %v3773, 126
      %v3782 = vpop.permute.xlu0 %3781
      %3783 = vrot.lane.b32.xlu0 %v3777, 126
      %v3784 = vpop.permute.xlu0 %3783
      %3785 = vrot.lane.b32.xlu0 %v3774, 126
      %v3786 = vpop.permute.xlu0 %3785
      %3787 = vrot.lane.b32.xlu0 %v3778, 126
      %v3788 = vpop.permute.xlu0 %3787
      %3789 = vrot.lane.b32.xlu0 %v3775, 126
      %v3790 = vpop.permute.xlu0 %3789
      %3791 = vrot.lane.b32.xlu0 %v3779, 126
      %v3792 = vpop.permute.xlu0 %3791
      %3793 = vrot.lane.b32.xlu0 %v3776, 126
      %v3794 = vpop.permute.xlu0 %3793
      %3795 = vrot.lane.b32.xlu0 %v3780, 126
      %v3796 = vpop.permute.xlu0 %3795
      %v3797 = vsel %vm1321, %v3790, %v3794
      %v3798 = vsel %vm1321, %v3792, %v3796
      %v3799 = vsel %vm1321, %v3786, %v3790
      %v3800 = vsel %vm1321, %v3788, %v3792
      %v3801 = vsel %vm1321, %v3782, %v3786
      %v3802 = vsel %vm1321, %v3784, %v3788
      %v3803 = vsel %vm1321, %v3794, %v3782
      %v3804 = vsel %vm1321, %v3796, %v3784
      %3805 = vrot.lane.b32.xlu0 %v3773, 2
      %v3806 = vpop.permute.xlu0 %3805
      %3807 = vrot.lane.b32.xlu0 %v3777, 2
      %v3808 = vpop.permute.xlu0 %3807
      %3809 = vrot.lane.b32.xlu0 %v3774, 2
      %v3810 = vpop.permute.xlu0 %3809
      %3811 = vrot.lane.b32.xlu0 %v3778, 2
      %v3812 = vpop.permute.xlu0 %3811
      %3813 = vrot.lane.b32.xlu0 %v3775, 2
      %v3814 = vpop.permute.xlu0 %3813
      %3815 = vrot.lane.b32.xlu0 %v3779, 2
      %v3816 = vpop.permute.xlu0 %3815
      %3817 = vrot.lane.b32.xlu0 %v3776, 2
      %v3818 = vpop.permute.xlu0 %3817
      %3819 = vrot.lane.b32.xlu0 %v3780, 2
      %v3820 = vpop.permute.xlu0 %3819
      %v3821 = vsel %vm1346, %v3814, %v3818
      %v3822 = vsel %vm1346, %v3816, %v3820
      %v3823 = vsel %vm1346, %v3810, %v3814
      %v3824 = vsel %vm1346, %v3812, %v3816
      %v3825 = vsel %vm1346, %v3806, %v3810
      %v3826 = vsel %vm1346, %v3808, %v3812
      %v3827 = vsel %vm1346, %v3818, %v3806
      %v3828 = vsel %vm1346, %v3820, %v3808
      %v3829 = vsub.f32 0.0, %v3801
      %v3830 = vsub.f32 0.0, %v3799
      %v3831 = vsub.f32 0.0, %v3797
      %v3832 = vsub.f32 0.0, %v3803
      %v3833 = vsub.f32 0.0, %v3802
      %v3834 = vsub.f32 0.0, %v3800
      %v3835 = vsub.f32 0.0, %v3798
      %v3836 = vsub.f32 0.0, %v3804
      %v3837 = vsel %vm604, %v3827, %v3829
      %v3838 = vsel %vm605, %v3825, %v3830
      %v3839 = vsel %vm606, %v3823, %v3831
      %v3840 = vsel %vm607, %v3821, %v3832
      %v3841 = vsel %vm604, %v3828, %v3833
      %v3842 = vsel %vm605, %v3826, %v3834
      %v3843 = vsel %vm606, %v3824, %v3835
      %v3844 = vsel %vm607, %v3822, %v3836
      %3845 = vset.pattern.permute.xlu0 43
      %3846 = vperm.xlu0 %3845, %v320
      %v3847 = vpop.permute.xlu0 %3846
      %3849 = vset.pattern.permute.xlu0 43
      %3850 = vperm.xlu0 %3849, %v321
      %v3851 = vpop.permute.xlu0 %3850
      %v3853 = vmul.f32 %v3847, %v3773
      %v3854 = vmul.f32 %v3847, %v3774
      %v3855 = vmul.f32 %v3847, %v3775
      %v3856 = vmul.f32 %v3847, %v3776
      %v3857 = vmul.f32 %v3851, %v3777
      %v3858 = vmul.f32 %v3851, %v3778
      %v3859 = vmul.f32 %v3851, %v3779
      %v3860 = vmul.f32 %v3851, %v3780
      %3861 = vset.pattern.permute.xlu0 43
      %3862 = vperm.xlu0 %3861, %v322
      %v3863 = vpop.permute.xlu0 %3862
      %3865 = vset.pattern.permute.xlu0 43
      %3866 = vperm.xlu0 %3865, %v323
      %v3867 = vpop.permute.xlu0 %3866
      %v3869 = vmul.f32 %v3863, %v3837
      %v3870 = vmul.f32 %v3863, %v3838
      %v3871 = vmul.f32 %v3863, %v3839
      %v3872 = vmul.f32 %v3863, %v3840
      %v3873 = vmul.f32 %v3867, %v3841
      %v3874 = vmul.f32 %v3867, %v3842
      %v3875 = vmul.f32 %v3867, %v3843
      %v3876 = vmul.f32 %v3867, %v3844
      %v3877 = vadd.f32 %v3853, %v3869
      %v3878 = vadd.f32 %v3854, %v3870
      %v3879 = vadd.f32 %v3855, %v3871
      %v3880 = vadd.f32 %v3856, %v3872
      %v3881 = vadd.f32 %v3857, %v3873
      %v3882 = vadd.f32 %v3858, %v3874
      %v3883 = vadd.f32 %v3859, %v3875
      %v3884 = vadd.f32 %v3860, %v3876
      %3885 = vrot.lane.b32.xlu0 %v3877, 127
      %v3886 = vpop.permute.xlu0 %3885
      %3887 = vrot.lane.b32.xlu0 %v3881, 127
      %v3888 = vpop.permute.xlu0 %3887
      %3889 = vrot.lane.b32.xlu0 %v3878, 127
      %v3890 = vpop.permute.xlu0 %3889
      %3891 = vrot.lane.b32.xlu0 %v3882, 127
      %v3892 = vpop.permute.xlu0 %3891
      %3893 = vrot.lane.b32.xlu0 %v3879, 127
      %v3894 = vpop.permute.xlu0 %3893
      %3895 = vrot.lane.b32.xlu0 %v3883, 127
      %v3896 = vpop.permute.xlu0 %3895
      %3897 = vrot.lane.b32.xlu0 %v3880, 127
      %v3898 = vpop.permute.xlu0 %3897
      %3899 = vrot.lane.b32.xlu0 %v3884, 127
      %v3900 = vpop.permute.xlu0 %3899
      %v3901 = vsel %vm1427, %v3894, %v3898
      %v3902 = vsel %vm1427, %v3896, %v3900
      %v3903 = vsel %vm1427, %v3890, %v3894
      %v3904 = vsel %vm1427, %v3892, %v3896
      %v3905 = vsel %vm1427, %v3886, %v3890
      %v3906 = vsel %vm1427, %v3888, %v3892
      %v3907 = vsel %vm1427, %v3898, %v3886
      %v3908 = vsel %vm1427, %v3900, %v3888
      %3909 = vrot.lane.b32.xlu0 %v3877, 1
      %v3910 = vpop.permute.xlu0 %3909
      %3911 = vrot.lane.b32.xlu0 %v3881, 1
      %v3912 = vpop.permute.xlu0 %3911
      %3913 = vrot.lane.b32.xlu0 %v3878, 1
      %v3914 = vpop.permute.xlu0 %3913
      %3915 = vrot.lane.b32.xlu0 %v3882, 1
      %v3916 = vpop.permute.xlu0 %3915
      %3917 = vrot.lane.b32.xlu0 %v3879, 1
      %v3918 = vpop.permute.xlu0 %3917
      %3919 = vrot.lane.b32.xlu0 %v3883, 1
      %v3920 = vpop.permute.xlu0 %3919
      %3921 = vrot.lane.b32.xlu0 %v3880, 1
      %v3922 = vpop.permute.xlu0 %3921
      %3923 = vrot.lane.b32.xlu0 %v3884, 1
      %v3924 = vpop.permute.xlu0 %3923
      %v3925 = vsel %vm1452, %v3918, %v3922
      %v3926 = vsel %vm1452, %v3920, %v3924
      %v3927 = vsel %vm1452, %v3914, %v3918
      %v3928 = vsel %vm1452, %v3916, %v3920
      %v3929 = vsel %vm1452, %v3910, %v3914
      %v3930 = vsel %vm1452, %v3912, %v3916
      %v3931 = vsel %vm1452, %v3922, %v3910
      %v3932 = vsel %vm1452, %v3924, %v3912
      %v3933 = vsub.f32 0.0, %v3905
      %v3934 = vsub.f32 0.0, %v3903
      %v3935 = vsub.f32 0.0, %v3901
      %v3936 = vsub.f32 0.0, %v3907
      %v3937 = vsub.f32 0.0, %v3906
      %v3938 = vsub.f32 0.0, %v3904
      %v3939 = vsub.f32 0.0, %v3902
      %v3940 = vsub.f32 0.0, %v3908
      %v3941 = vsel %vm644, %v3931, %v3933
      %v3942 = vsel %vm645, %v3929, %v3934
      %v3943 = vsel %vm646, %v3927, %v3935
      %v3944 = vsel %vm647, %v3925, %v3936
      %v3945 = vsel %vm644, %v3932, %v3937
      %v3946 = vsel %vm645, %v3930, %v3938
      %v3947 = vsel %vm646, %v3928, %v3939
      %v3948 = vsel %vm647, %v3926, %v3940
      %3949 = vset.pattern.permute.xlu0 44
      %3950 = vperm.xlu0 %3949, %v320
      %v3951 = vpop.permute.xlu0 %3950
      %3953 = vset.pattern.permute.xlu0 44
      %3954 = vperm.xlu0 %3953, %v321
      %v3955 = vpop.permute.xlu0 %3954
      %v3957 = vmul.f32 %v3951, %v3877
      %v3958 = vmul.f32 %v3951, %v3878
      %v3959 = vmul.f32 %v3951, %v3879
      %v3960 = vmul.f32 %v3951, %v3880
      %v3961 = vmul.f32 %v3955, %v3881
      %v3962 = vmul.f32 %v3955, %v3882
      %v3963 = vmul.f32 %v3955, %v3883
      %v3964 = vmul.f32 %v3955, %v3884
      %3965 = vset.pattern.permute.xlu0 44
      %3966 = vperm.xlu0 %3965, %v322
      %v3967 = vpop.permute.xlu0 %3966
      %3969 = vset.pattern.permute.xlu0 44
      %3970 = vperm.xlu0 %3969, %v323
      %v3971 = vpop.permute.xlu0 %3970
      %v3973 = vmul.f32 %v3967, %v3941
      %v3974 = vmul.f32 %v3967, %v3942
      %v3975 = vmul.f32 %v3967, %v3943
      %v3976 = vmul.f32 %v3967, %v3944
      %v3977 = vmul.f32 %v3971, %v3945
      %v3978 = vmul.f32 %v3971, %v3946
      %v3979 = vmul.f32 %v3971, %v3947
      %v3980 = vmul.f32 %v3971, %v3948
      %v3981 = vadd.f32 %v3957, %v3973
      %v3982 = vadd.f32 %v3958, %v3974
      %v3983 = vadd.f32 %v3959, %v3975
      %v3984 = vadd.f32 %v3960, %v3976
      %v3985 = vadd.f32 %v3961, %v3977
      %v3986 = vadd.f32 %v3962, %v3978
      %v3987 = vadd.f32 %v3963, %v3979
      %v3988 = vadd.f32 %v3964, %v3980
      %v3989 = vmul.f32 %v3981, %v216
      %v3990 = vmul.f32 %v3982, %v217
      %v3991 = vmul.f32 %v3983, %v218
      %v3992 = vmul.f32 %v3984, %v219
      %v3993 = vmul.f32 %v3985, %v216
      %v3994 = vmul.f32 %v3986, %v217
      %v3995 = vmul.f32 %v3987, %v218
      %v3996 = vmul.f32 %v3988, %v219
      %v3997 = vsub.f32 0.0, %v3991
      %v3998 = vsub.f32 0.0, %v3992
      %v3999 = vsub.f32 0.0, %v3989
      %v4000 = vsub.f32 0.0, %v3990
      %v4001 = vsub.f32 0.0, %v3995
      %v4002 = vsub.f32 0.0, %v3996
      %v4003 = vsub.f32 0.0, %v3993
      %v4004 = vsub.f32 0.0, %v3994
      %v4005 = vsel %vm328, %v3991, %v3997
      %v4006 = vsel %vm329, %v3992, %v3998
      %v4007 = vsel %vm330, %v3989, %v3999
      %v4008 = vsel %vm331, %v3990, %v4000
      %v4009 = vsel %vm328, %v3995, %v4001
      %v4010 = vsel %vm329, %v3996, %v4002
      %v4011 = vsel %vm330, %v3993, %v4003
      %v4012 = vsel %vm331, %v3994, %v4004
      %4013 = vset.pattern.permute.xlu0 45
      %4014 = vperm.xlu0 %4013, %v320
      %v4015 = vpop.permute.xlu0 %4014
      %4017 = vset.pattern.permute.xlu0 45
      %4018 = vperm.xlu0 %4017, %v321
      %v4019 = vpop.permute.xlu0 %4018
      %v4021 = vmul.f32 %v4015, %v3989
      %v4022 = vmul.f32 %v4015, %v3990
      %v4023 = vmul.f32 %v4015, %v3991
      %v4024 = vmul.f32 %v4015, %v3992
      %v4025 = vmul.f32 %v4019, %v3993
      %v4026 = vmul.f32 %v4019, %v3994
      %v4027 = vmul.f32 %v4019, %v3995
      %v4028 = vmul.f32 %v4019, %v3996
      %4029 = vset.pattern.permute.xlu0 45
      %4030 = vperm.xlu0 %4029, %v322
      %v4031 = vpop.permute.xlu0 %4030
      %4033 = vset.pattern.permute.xlu0 45
      %4034 = vperm.xlu0 %4033, %v323
      %v4035 = vpop.permute.xlu0 %4034
      %v4037 = vmul.f32 %v4031, %v4005
      %v4038 = vmul.f32 %v4031, %v4006
      %v4039 = vmul.f32 %v4031, %v4007
      %v4040 = vmul.f32 %v4031, %v4008
      %v4041 = vmul.f32 %v4035, %v4009
      %v4042 = vmul.f32 %v4035, %v4010
      %v4043 = vmul.f32 %v4035, %v4011
      %v4044 = vmul.f32 %v4035, %v4012
      %v4045 = vadd.f32 %v4021, %v4037
      %v4046 = vadd.f32 %v4022, %v4038
      %v4047 = vadd.f32 %v4023, %v4039
      %v4048 = vadd.f32 %v4024, %v4040
      %v4049 = vadd.f32 %v4025, %v4041
      %v4050 = vadd.f32 %v4026, %v4042
      %v4051 = vadd.f32 %v4027, %v4043
      %v4052 = vadd.f32 %v4028, %v4044
      %v4053 = vsub.f32 0.0, %v4046
      %v4054 = vsub.f32 0.0, %v4047
      %v4055 = vsub.f32 0.0, %v4048
      %v4056 = vsub.f32 0.0, %v4045
      %v4057 = vsub.f32 0.0, %v4050
      %v4058 = vsub.f32 0.0, %v4051
      %v4059 = vsub.f32 0.0, %v4052
      %v4060 = vsub.f32 0.0, %v4049
      %v4061 = vsel %vm364, %v4048, %v4053
      %v4062 = vsel %vm365, %v4045, %v4054
      %v4063 = vsel %vm366, %v4046, %v4055
      %v4064 = vsel %vm367, %v4047, %v4056
      %v4065 = vsel %vm364, %v4052, %v4057
      %v4066 = vsel %vm365, %v4049, %v4058
      %v4067 = vsel %vm366, %v4050, %v4059
      %v4068 = vsel %vm367, %v4051, %v4060
      %4069 = vset.pattern.permute.xlu0 46
      %4070 = vperm.xlu0 %4069, %v320
      %v4071 = vpop.permute.xlu0 %4070
      %4073 = vset.pattern.permute.xlu0 46
      %4074 = vperm.xlu0 %4073, %v321
      %v4075 = vpop.permute.xlu0 %4074
      %v4077 = vmul.f32 %v4071, %v4045
      %v4078 = vmul.f32 %v4071, %v4046
      %v4079 = vmul.f32 %v4071, %v4047
      %v4080 = vmul.f32 %v4071, %v4048
      %v4081 = vmul.f32 %v4075, %v4049
      %v4082 = vmul.f32 %v4075, %v4050
      %v4083 = vmul.f32 %v4075, %v4051
      %v4084 = vmul.f32 %v4075, %v4052
      %4085 = vset.pattern.permute.xlu0 46
      %4086 = vperm.xlu0 %4085, %v322
      %v4087 = vpop.permute.xlu0 %4086
      %4089 = vset.pattern.permute.xlu0 46
      %4090 = vperm.xlu0 %4089, %v323
      %v4091 = vpop.permute.xlu0 %4090
      %v4093 = vmul.f32 %v4087, %v4061
      %v4094 = vmul.f32 %v4087, %v4062
      %v4095 = vmul.f32 %v4087, %v4063
      %v4096 = vmul.f32 %v4087, %v4064
      %v4097 = vmul.f32 %v4091, %v4065
      %v4098 = vmul.f32 %v4091, %v4066
      %v4099 = vmul.f32 %v4091, %v4067
      %v4100 = vmul.f32 %v4091, %v4068
      %v4101 = vadd.f32 %v4077, %v4093
      %v4102 = vadd.f32 %v4078, %v4094
      %v4103 = vadd.f32 %v4079, %v4095
      %v4104 = vadd.f32 %v4080, %v4096
      %v4105 = vadd.f32 %v4081, %v4097
      %v4106 = vadd.f32 %v4082, %v4098
      %v4107 = vadd.f32 %v4083, %v4099
      %v4108 = vadd.f32 %v4084, %v4100
      %4109 = vrot.lane.b32.xlu0 %v4101, 64
      %v4110 = vpop.permute.xlu0 %4109
      %4111 = vrot.lane.b32.xlu0 %v4105, 64
      %v4112 = vpop.permute.xlu0 %4111
      %4113 = vrot.lane.b32.xlu0 %v4102, 64
      %v4114 = vpop.permute.xlu0 %4113
      %4115 = vrot.lane.b32.xlu0 %v4106, 64
      %v4116 = vpop.permute.xlu0 %4115
      %4117 = vrot.lane.b32.xlu0 %v4103, 64
      %v4118 = vpop.permute.xlu0 %4117
      %4119 = vrot.lane.b32.xlu0 %v4107, 64
      %v4120 = vpop.permute.xlu0 %4119
      %4121 = vrot.lane.b32.xlu0 %v4104, 64
      %v4122 = vpop.permute.xlu0 %4121
      %4123 = vrot.lane.b32.xlu0 %v4108, 64
      %v4124 = vpop.permute.xlu0 %4123
      %v4125 = vsel %vm816, %v4118, %v4122
      %v4126 = vsel %vm816, %v4120, %v4124
      %v4127 = vsel %vm816, %v4114, %v4118
      %v4128 = vsel %vm816, %v4116, %v4120
      %v4129 = vsel %vm816, %v4110, %v4114
      %v4130 = vsel %vm816, %v4112, %v4116
      %v4131 = vsel %vm816, %v4122, %v4110
      %v4132 = vsel %vm816, %v4124, %v4112
      %v4133 = vsub.f32 0.0, %v4129
      %v4134 = vsub.f32 0.0, %v4127
      %v4135 = vsub.f32 0.0, %v4125
      %v4136 = vsub.f32 0.0, %v4131
      %v4137 = vsub.f32 0.0, %v4130
      %v4138 = vsub.f32 0.0, %v4128
      %v4139 = vsub.f32 0.0, %v4126
      %v4140 = vsub.f32 0.0, %v4132
      %v4141 = vsel %vm404, %v4131, %v4133
      %v4142 = vsel %vm405, %v4129, %v4134
      %v4143 = vsel %vm406, %v4127, %v4135
      %v4144 = vsel %vm407, %v4125, %v4136
      %v4145 = vsel %vm404, %v4132, %v4137
      %v4146 = vsel %vm405, %v4130, %v4138
      %v4147 = vsel %vm406, %v4128, %v4139
      %v4148 = vsel %vm407, %v4126, %v4140
      %4149 = vset.pattern.permute.xlu0 47
      %4150 = vperm.xlu0 %4149, %v320
      %v4151 = vpop.permute.xlu0 %4150
      %4153 = vset.pattern.permute.xlu0 47
      %4154 = vperm.xlu0 %4153, %v321
      %v4155 = vpop.permute.xlu0 %4154
      %v4157 = vmul.f32 %v4151, %v4101
      %v4158 = vmul.f32 %v4151, %v4102
      %v4159 = vmul.f32 %v4151, %v4103
      %v4160 = vmul.f32 %v4151, %v4104
      %v4161 = vmul.f32 %v4155, %v4105
      %v4162 = vmul.f32 %v4155, %v4106
      %v4163 = vmul.f32 %v4155, %v4107
      %v4164 = vmul.f32 %v4155, %v4108
      %4165 = vset.pattern.permute.xlu0 47
      %4166 = vperm.xlu0 %4165, %v322
      %v4167 = vpop.permute.xlu0 %4166
      %4169 = vset.pattern.permute.xlu0 47
      %4170 = vperm.xlu0 %4169, %v323
      %v4171 = vpop.permute.xlu0 %4170
      %v4173 = vmul.f32 %v4167, %v4141
      %v4174 = vmul.f32 %v4167, %v4142
      %v4175 = vmul.f32 %v4167, %v4143
      %v4176 = vmul.f32 %v4167, %v4144
      %v4177 = vmul.f32 %v4171, %v4145
      %v4178 = vmul.f32 %v4171, %v4146
      %v4179 = vmul.f32 %v4171, %v4147
      %v4180 = vmul.f32 %v4171, %v4148
      %v4181 = vadd.f32 %v4157, %v4173
      %v4182 = vadd.f32 %v4158, %v4174
      %v4183 = vadd.f32 %v4159, %v4175
      %v4184 = vadd.f32 %v4160, %v4176
      %v4185 = vadd.f32 %v4161, %v4177
      %v4186 = vadd.f32 %v4162, %v4178
      %v4187 = vadd.f32 %v4163, %v4179
      %v4188 = vadd.f32 %v4164, %v4180
      %4189 = vrot.lane.b32.xlu0 %v4181, 96
      %v4190 = vpop.permute.xlu0 %4189
      %4191 = vrot.lane.b32.xlu0 %v4185, 96
      %v4192 = vpop.permute.xlu0 %4191
      %4193 = vrot.lane.b32.xlu0 %v4182, 96
      %v4194 = vpop.permute.xlu0 %4193
      %4195 = vrot.lane.b32.xlu0 %v4186, 96
      %v4196 = vpop.permute.xlu0 %4195
      %4197 = vrot.lane.b32.xlu0 %v4183, 96
      %v4198 = vpop.permute.xlu0 %4197
      %4199 = vrot.lane.b32.xlu0 %v4187, 96
      %v4200 = vpop.permute.xlu0 %4199
      %4201 = vrot.lane.b32.xlu0 %v4184, 96
      %v4202 = vpop.permute.xlu0 %4201
      %4203 = vrot.lane.b32.xlu0 %v4188, 96
      %v4204 = vpop.permute.xlu0 %4203
      %v4205 = vsel %vm897, %v4198, %v4202
      %v4206 = vsel %vm897, %v4200, %v4204
      %v4207 = vsel %vm897, %v4194, %v4198
      %v4208 = vsel %vm897, %v4196, %v4200
      %v4209 = vsel %vm897, %v4190, %v4194
      %v4210 = vsel %vm897, %v4192, %v4196
      %v4211 = vsel %vm897, %v4202, %v4190
      %v4212 = vsel %vm897, %v4204, %v4192
      %4213 = vrot.lane.b32.xlu0 %v4181, 32
      %v4214 = vpop.permute.xlu0 %4213
      %4215 = vrot.lane.b32.xlu0 %v4185, 32
      %v4216 = vpop.permute.xlu0 %4215
      %4217 = vrot.lane.b32.xlu0 %v4182, 32
      %v4218 = vpop.permute.xlu0 %4217
      %4219 = vrot.lane.b32.xlu0 %v4186, 32
      %v4220 = vpop.permute.xlu0 %4219
      %4221 = vrot.lane.b32.xlu0 %v4183, 32
      %v4222 = vpop.permute.xlu0 %4221
      %4223 = vrot.lane.b32.xlu0 %v4187, 32
      %v4224 = vpop.permute.xlu0 %4223
      %4225 = vrot.lane.b32.xlu0 %v4184, 32
      %v4226 = vpop.permute.xlu0 %4225
      %4227 = vrot.lane.b32.xlu0 %v4188, 32
      %v4228 = vpop.permute.xlu0 %4227
      %v4229 = vsel %vm922, %v4222, %v4226
      %v4230 = vsel %vm922, %v4224, %v4228
      %v4231 = vsel %vm922, %v4218, %v4222
      %v4232 = vsel %vm922, %v4220, %v4224
      %v4233 = vsel %vm922, %v4214, %v4218
      %v4234 = vsel %vm922, %v4216, %v4220
      %v4235 = vsel %vm922, %v4226, %v4214
      %v4236 = vsel %vm922, %v4228, %v4216
      %v4237 = vsub.f32 0.0, %v4209
      %v4238 = vsub.f32 0.0, %v4207
      %v4239 = vsub.f32 0.0, %v4205
      %v4240 = vsub.f32 0.0, %v4211
      %v4241 = vsub.f32 0.0, %v4210
      %v4242 = vsub.f32 0.0, %v4208
      %v4243 = vsub.f32 0.0, %v4206
      %v4244 = vsub.f32 0.0, %v4212
      %v4245 = vsel %vm444, %v4235, %v4237
      %v4246 = vsel %vm445, %v4233, %v4238
      %v4247 = vsel %vm446, %v4231, %v4239
      %v4248 = vsel %vm447, %v4229, %v4240
      %v4249 = vsel %vm444, %v4236, %v4241
      %v4250 = vsel %vm445, %v4234, %v4242
      %v4251 = vsel %vm446, %v4232, %v4243
      %v4252 = vsel %vm447, %v4230, %v4244
      %4253 = vset.pattern.permute.xlu0 48
      %4254 = vperm.xlu0 %4253, %v320
      %v4255 = vpop.permute.xlu0 %4254
      %4257 = vset.pattern.permute.xlu0 48
      %4258 = vperm.xlu0 %4257, %v321
      %v4259 = vpop.permute.xlu0 %4258
      %v4261 = vmul.f32 %v4255, %v4181
      %v4262 = vmul.f32 %v4255, %v4182
      %v4263 = vmul.f32 %v4255, %v4183
      %v4264 = vmul.f32 %v4255, %v4184
      %v4265 = vmul.f32 %v4259, %v4185
      %v4266 = vmul.f32 %v4259, %v4186
      %v4267 = vmul.f32 %v4259, %v4187
      %v4268 = vmul.f32 %v4259, %v4188
      %4269 = vset.pattern.permute.xlu0 48
      %4270 = vperm.xlu0 %4269, %v322
      %v4271 = vpop.permute.xlu0 %4270
      %4273 = vset.pattern.permute.xlu0 48
      %4274 = vperm.xlu0 %4273, %v323
      %v4275 = vpop.permute.xlu0 %4274
      %v4277 = vmul.f32 %v4271, %v4245
      %v4278 = vmul.f32 %v4271, %v4246
      %v4279 = vmul.f32 %v4271, %v4247
      %v4280 = vmul.f32 %v4271, %v4248
      %v4281 = vmul.f32 %v4275, %v4249
      %v4282 = vmul.f32 %v4275, %v4250
      %v4283 = vmul.f32 %v4275, %v4251
      %v4284 = vmul.f32 %v4275, %v4252
      %v4285 = vadd.f32 %v4261, %v4277
      %v4286 = vadd.f32 %v4262, %v4278
      %v4287 = vadd.f32 %v4263, %v4279
      %v4288 = vadd.f32 %v4264, %v4280
      %v4289 = vadd.f32 %v4265, %v4281
      %v4290 = vadd.f32 %v4266, %v4282
      %v4291 = vadd.f32 %v4267, %v4283
      %v4292 = vadd.f32 %v4268, %v4284
      %4293 = vrot.lane.b32.xlu0 %v4285, 112
      %v4294 = vpop.permute.xlu0 %4293
      %4295 = vrot.lane.b32.xlu0 %v4289, 112
      %v4296 = vpop.permute.xlu0 %4295
      %4297 = vrot.lane.b32.xlu0 %v4286, 112
      %v4298 = vpop.permute.xlu0 %4297
      %4299 = vrot.lane.b32.xlu0 %v4290, 112
      %v4300 = vpop.permute.xlu0 %4299
      %4301 = vrot.lane.b32.xlu0 %v4287, 112
      %v4302 = vpop.permute.xlu0 %4301
      %4303 = vrot.lane.b32.xlu0 %v4291, 112
      %v4304 = vpop.permute.xlu0 %4303
      %4305 = vrot.lane.b32.xlu0 %v4288, 112
      %v4306 = vpop.permute.xlu0 %4305
      %4307 = vrot.lane.b32.xlu0 %v4292, 112
      %v4308 = vpop.permute.xlu0 %4307
      %v4309 = vsel %vm1003, %v4302, %v4306
      %v4310 = vsel %vm1003, %v4304, %v4308
      %v4311 = vsel %vm1003, %v4298, %v4302
      %v4312 = vsel %vm1003, %v4300, %v4304
      %v4313 = vsel %vm1003, %v4294, %v4298
      %v4314 = vsel %vm1003, %v4296, %v4300
      %v4315 = vsel %vm1003, %v4306, %v4294
      %v4316 = vsel %vm1003, %v4308, %v4296
      %4317 = vrot.lane.b32.xlu0 %v4285, 16
      %v4318 = vpop.permute.xlu0 %4317
      %4319 = vrot.lane.b32.xlu0 %v4289, 16
      %v4320 = vpop.permute.xlu0 %4319
      %4321 = vrot.lane.b32.xlu0 %v4286, 16
      %v4322 = vpop.permute.xlu0 %4321
      %4323 = vrot.lane.b32.xlu0 %v4290, 16
      %v4324 = vpop.permute.xlu0 %4323
      %4325 = vrot.lane.b32.xlu0 %v4287, 16
      %v4326 = vpop.permute.xlu0 %4325
      %4327 = vrot.lane.b32.xlu0 %v4291, 16
      %v4328 = vpop.permute.xlu0 %4327
      %4329 = vrot.lane.b32.xlu0 %v4288, 16
      %v4330 = vpop.permute.xlu0 %4329
      %4331 = vrot.lane.b32.xlu0 %v4292, 16
      %v4332 = vpop.permute.xlu0 %4331
      %v4333 = vsel %vm1028, %v4326, %v4330
      %v4334 = vsel %vm1028, %v4328, %v4332
      %v4335 = vsel %vm1028, %v4322, %v4326
      %v4336 = vsel %vm1028, %v4324, %v4328
      %v4337 = vsel %vm1028, %v4318, %v4322
      %v4338 = vsel %vm1028, %v4320, %v4324
      %v4339 = vsel %vm1028, %v4330, %v4318
      %v4340 = vsel %vm1028, %v4332, %v4320
      %v4341 = vsub.f32 0.0, %v4313
      %v4342 = vsub.f32 0.0, %v4311
      %v4343 = vsub.f32 0.0, %v4309
      %v4344 = vsub.f32 0.0, %v4315
      %v4345 = vsub.f32 0.0, %v4314
      %v4346 = vsub.f32 0.0, %v4312
      %v4347 = vsub.f32 0.0, %v4310
      %v4348 = vsub.f32 0.0, %v4316
      %v4349 = vsel %vm484, %v4339, %v4341
      %v4350 = vsel %vm485, %v4337, %v4342
      %v4351 = vsel %vm486, %v4335, %v4343
      %v4352 = vsel %vm487, %v4333, %v4344
      %v4353 = vsel %vm484, %v4340, %v4345
      %v4354 = vsel %vm485, %v4338, %v4346
      %v4355 = vsel %vm486, %v4336, %v4347
      %v4356 = vsel %vm487, %v4334, %v4348
      %4357 = vset.pattern.permute.xlu0 49
      %4358 = vperm.xlu0 %4357, %v320
      %v4359 = vpop.permute.xlu0 %4358
      %4361 = vset.pattern.permute.xlu0 49
      %4362 = vperm.xlu0 %4361, %v321
      %v4363 = vpop.permute.xlu0 %4362
      %v4365 = vmul.f32 %v4359, %v4285
      %v4366 = vmul.f32 %v4359, %v4286
      %v4367 = vmul.f32 %v4359, %v4287
      %v4368 = vmul.f32 %v4359, %v4288
      %v4369 = vmul.f32 %v4363, %v4289
      %v4370 = vmul.f32 %v4363, %v4290
      %v4371 = vmul.f32 %v4363, %v4291
      %v4372 = vmul.f32 %v4363, %v4292
      %4373 = vset.pattern.permute.xlu0 49
      %4374 = vperm.xlu0 %4373, %v322
      %v4375 = vpop.permute.xlu0 %4374
      %4377 = vset.pattern.permute.xlu0 49
      %4378 = vperm.xlu0 %4377, %v323
      %v4379 = vpop.permute.xlu0 %4378
      %v4381 = vmul.f32 %v4375, %v4349
      %v4382 = vmul.f32 %v4375, %v4350
      %v4383 = vmul.f32 %v4375, %v4351
      %v4384 = vmul.f32 %v4375, %v4352
      %v4385 = vmul.f32 %v4379, %v4353
      %v4386 = vmul.f32 %v4379, %v4354
      %v4387 = vmul.f32 %v4379, %v4355
      %v4388 = vmul.f32 %v4379, %v4356
      %v4389 = vadd.f32 %v4365, %v4381
      %v4390 = vadd.f32 %v4366, %v4382
      %v4391 = vadd.f32 %v4367, %v4383
      %v4392 = vadd.f32 %v4368, %v4384
      %v4393 = vadd.f32 %v4369, %v4385
      %v4394 = vadd.f32 %v4370, %v4386
      %v4395 = vadd.f32 %v4371, %v4387
      %v4396 = vadd.f32 %v4372, %v4388
      %4397 = vrot.lane.b32.xlu0 %v4389, 120
      %v4398 = vpop.permute.xlu0 %4397
      %4399 = vrot.lane.b32.xlu0 %v4393, 120
      %v4400 = vpop.permute.xlu0 %4399
      %4401 = vrot.lane.b32.xlu0 %v4390, 120
      %v4402 = vpop.permute.xlu0 %4401
      %4403 = vrot.lane.b32.xlu0 %v4394, 120
      %v4404 = vpop.permute.xlu0 %4403
      %4405 = vrot.lane.b32.xlu0 %v4391, 120
      %v4406 = vpop.permute.xlu0 %4405
      %4407 = vrot.lane.b32.xlu0 %v4395, 120
      %v4408 = vpop.permute.xlu0 %4407
      %4409 = vrot.lane.b32.xlu0 %v4392, 120
      %v4410 = vpop.permute.xlu0 %4409
      %4411 = vrot.lane.b32.xlu0 %v4396, 120
      %v4412 = vpop.permute.xlu0 %4411
      %v4413 = vsel %vm1109, %v4406, %v4410
      %v4414 = vsel %vm1109, %v4408, %v4412
      %v4415 = vsel %vm1109, %v4402, %v4406
      %v4416 = vsel %vm1109, %v4404, %v4408
      %v4417 = vsel %vm1109, %v4398, %v4402
      %v4418 = vsel %vm1109, %v4400, %v4404
      %v4419 = vsel %vm1109, %v4410, %v4398
      %v4420 = vsel %vm1109, %v4412, %v4400
      %4421 = vrot.lane.b32.xlu0 %v4389, 8
      %v4422 = vpop.permute.xlu0 %4421
      %4423 = vrot.lane.b32.xlu0 %v4393, 8
      %v4424 = vpop.permute.xlu0 %4423
      %4425 = vrot.lane.b32.xlu0 %v4390, 8
      %v4426 = vpop.permute.xlu0 %4425
      %4427 = vrot.lane.b32.xlu0 %v4394, 8
      %v4428 = vpop.permute.xlu0 %4427
      %4429 = vrot.lane.b32.xlu0 %v4391, 8
      %v4430 = vpop.permute.xlu0 %4429
      %4431 = vrot.lane.b32.xlu0 %v4395, 8
      %v4432 = vpop.permute.xlu0 %4431
      %4433 = vrot.lane.b32.xlu0 %v4392, 8
      %v4434 = vpop.permute.xlu0 %4433
      %4435 = vrot.lane.b32.xlu0 %v4396, 8
      %v4436 = vpop.permute.xlu0 %4435
      %v4437 = vsel %vm1134, %v4430, %v4434
      %v4438 = vsel %vm1134, %v4432, %v4436
      %v4439 = vsel %vm1134, %v4426, %v4430
      %v4440 = vsel %vm1134, %v4428, %v4432
      %v4441 = vsel %vm1134, %v4422, %v4426
      %v4442 = vsel %vm1134, %v4424, %v4428
      %v4443 = vsel %vm1134, %v4434, %v4422
      %v4444 = vsel %vm1134, %v4436, %v4424
      %v4445 = vsub.f32 0.0, %v4417
      %v4446 = vsub.f32 0.0, %v4415
      %v4447 = vsub.f32 0.0, %v4413
      %v4448 = vsub.f32 0.0, %v4419
      %v4449 = vsub.f32 0.0, %v4418
      %v4450 = vsub.f32 0.0, %v4416
      %v4451 = vsub.f32 0.0, %v4414
      %v4452 = vsub.f32 0.0, %v4420
      %v4453 = vsel %vm524, %v4443, %v4445
      %v4454 = vsel %vm525, %v4441, %v4446
      %v4455 = vsel %vm526, %v4439, %v4447
      %v4456 = vsel %vm527, %v4437, %v4448
      %v4457 = vsel %vm524, %v4444, %v4449
      %v4458 = vsel %vm525, %v4442, %v4450
      %v4459 = vsel %vm526, %v4440, %v4451
      %v4460 = vsel %vm527, %v4438, %v4452
      %4461 = vset.pattern.permute.xlu0 50
      %4462 = vperm.xlu0 %4461, %v320
      %v4463 = vpop.permute.xlu0 %4462
      %4465 = vset.pattern.permute.xlu0 50
      %4466 = vperm.xlu0 %4465, %v321
      %v4467 = vpop.permute.xlu0 %4466
      %v4469 = vmul.f32 %v4463, %v4389
      %v4470 = vmul.f32 %v4463, %v4390
      %v4471 = vmul.f32 %v4463, %v4391
      %v4472 = vmul.f32 %v4463, %v4392
      %v4473 = vmul.f32 %v4467, %v4393
      %v4474 = vmul.f32 %v4467, %v4394
      %v4475 = vmul.f32 %v4467, %v4395
      %v4476 = vmul.f32 %v4467, %v4396
      %4477 = vset.pattern.permute.xlu0 50
      %4478 = vperm.xlu0 %4477, %v322
      %v4479 = vpop.permute.xlu0 %4478
      %4481 = vset.pattern.permute.xlu0 50
      %4482 = vperm.xlu0 %4481, %v323
      %v4483 = vpop.permute.xlu0 %4482
      %v4485 = vmul.f32 %v4479, %v4453
      %v4486 = vmul.f32 %v4479, %v4454
      %v4487 = vmul.f32 %v4479, %v4455
      %v4488 = vmul.f32 %v4479, %v4456
      %v4489 = vmul.f32 %v4483, %v4457
      %v4490 = vmul.f32 %v4483, %v4458
      %v4491 = vmul.f32 %v4483, %v4459
      %v4492 = vmul.f32 %v4483, %v4460
      %v4493 = vadd.f32 %v4469, %v4485
      %v4494 = vadd.f32 %v4470, %v4486
      %v4495 = vadd.f32 %v4471, %v4487
      %v4496 = vadd.f32 %v4472, %v4488
      %v4497 = vadd.f32 %v4473, %v4489
      %v4498 = vadd.f32 %v4474, %v4490
      %v4499 = vadd.f32 %v4475, %v4491
      %v4500 = vadd.f32 %v4476, %v4492
      %4501 = vrot.lane.b32.xlu0 %v4493, 124
      %v4502 = vpop.permute.xlu0 %4501
      %4503 = vrot.lane.b32.xlu0 %v4497, 124
      %v4504 = vpop.permute.xlu0 %4503
      %4505 = vrot.lane.b32.xlu0 %v4494, 124
      %v4506 = vpop.permute.xlu0 %4505
      %4507 = vrot.lane.b32.xlu0 %v4498, 124
      %v4508 = vpop.permute.xlu0 %4507
      %4509 = vrot.lane.b32.xlu0 %v4495, 124
      %v4510 = vpop.permute.xlu0 %4509
      %4511 = vrot.lane.b32.xlu0 %v4499, 124
      %v4512 = vpop.permute.xlu0 %4511
      %4513 = vrot.lane.b32.xlu0 %v4496, 124
      %v4514 = vpop.permute.xlu0 %4513
      %4515 = vrot.lane.b32.xlu0 %v4500, 124
      %v4516 = vpop.permute.xlu0 %4515
      %v4517 = vsel %vm1215, %v4510, %v4514
      %v4518 = vsel %vm1215, %v4512, %v4516
      %v4519 = vsel %vm1215, %v4506, %v4510
      %v4520 = vsel %vm1215, %v4508, %v4512
      %v4521 = vsel %vm1215, %v4502, %v4506
      %v4522 = vsel %vm1215, %v4504, %v4508
      %v4523 = vsel %vm1215, %v4514, %v4502
      %v4524 = vsel %vm1215, %v4516, %v4504
      %4525 = vrot.lane.b32.xlu0 %v4493, 4
      %v4526 = vpop.permute.xlu0 %4525
      %4527 = vrot.lane.b32.xlu0 %v4497, 4
      %v4528 = vpop.permute.xlu0 %4527
      %4529 = vrot.lane.b32.xlu0 %v4494, 4
      %v4530 = vpop.permute.xlu0 %4529
      %4531 = vrot.lane.b32.xlu0 %v4498, 4
      %v4532 = vpop.permute.xlu0 %4531
      %4533 = vrot.lane.b32.xlu0 %v4495, 4
      %v4534 = vpop.permute.xlu0 %4533
      %4535 = vrot.lane.b32.xlu0 %v4499, 4
      %v4536 = vpop.permute.xlu0 %4535
      %4537 = vrot.lane.b32.xlu0 %v4496, 4
      %v4538 = vpop.permute.xlu0 %4537
      %4539 = vrot.lane.b32.xlu0 %v4500, 4
      %v4540 = vpop.permute.xlu0 %4539
      %v4541 = vsel %vm1240, %v4534, %v4538
      %v4542 = vsel %vm1240, %v4536, %v4540
      %v4543 = vsel %vm1240, %v4530, %v4534
      %v4544 = vsel %vm1240, %v4532, %v4536
      %v4545 = vsel %vm1240, %v4526, %v4530
      %v4546 = vsel %vm1240, %v4528, %v4532
      %v4547 = vsel %vm1240, %v4538, %v4526
      %v4548 = vsel %vm1240, %v4540, %v4528
      %v4549 = vsub.f32 0.0, %v4521
      %v4550 = vsub.f32 0.0, %v4519
      %v4551 = vsub.f32 0.0, %v4517
      %v4552 = vsub.f32 0.0, %v4523
      %v4553 = vsub.f32 0.0, %v4522
      %v4554 = vsub.f32 0.0, %v4520
      %v4555 = vsub.f32 0.0, %v4518
      %v4556 = vsub.f32 0.0, %v4524
      %v4557 = vsel %vm564, %v4547, %v4549
      %v4558 = vsel %vm565, %v4545, %v4550
      %v4559 = vsel %vm566, %v4543, %v4551
      %v4560 = vsel %vm567, %v4541, %v4552
      %v4561 = vsel %vm564, %v4548, %v4553
      %v4562 = vsel %vm565, %v4546, %v4554
      %v4563 = vsel %vm566, %v4544, %v4555
      %v4564 = vsel %vm567, %v4542, %v4556
      %4565 = vset.pattern.permute.xlu0 51
      %4566 = vperm.xlu0 %4565, %v320
      %v4567 = vpop.permute.xlu0 %4566
      %4569 = vset.pattern.permute.xlu0 51
      %4570 = vperm.xlu0 %4569, %v321
      %v4571 = vpop.permute.xlu0 %4570
      %v4573 = vmul.f32 %v4567, %v4493
      %v4574 = vmul.f32 %v4567, %v4494
      %v4575 = vmul.f32 %v4567, %v4495
      %v4576 = vmul.f32 %v4567, %v4496
      %v4577 = vmul.f32 %v4571, %v4497
      %v4578 = vmul.f32 %v4571, %v4498
      %v4579 = vmul.f32 %v4571, %v4499
      %v4580 = vmul.f32 %v4571, %v4500
      %4581 = vset.pattern.permute.xlu0 51
      %4582 = vperm.xlu0 %4581, %v322
      %v4583 = vpop.permute.xlu0 %4582
      %4585 = vset.pattern.permute.xlu0 51
      %4586 = vperm.xlu0 %4585, %v323
      %v4587 = vpop.permute.xlu0 %4586
      %v4589 = vmul.f32 %v4583, %v4557
      %v4590 = vmul.f32 %v4583, %v4558
      %v4591 = vmul.f32 %v4583, %v4559
      %v4592 = vmul.f32 %v4583, %v4560
      %v4593 = vmul.f32 %v4587, %v4561
      %v4594 = vmul.f32 %v4587, %v4562
      %v4595 = vmul.f32 %v4587, %v4563
      %v4596 = vmul.f32 %v4587, %v4564
      %v4597 = vadd.f32 %v4573, %v4589
      %v4598 = vadd.f32 %v4574, %v4590
      %v4599 = vadd.f32 %v4575, %v4591
      %v4600 = vadd.f32 %v4576, %v4592
      %v4601 = vadd.f32 %v4577, %v4593
      %v4602 = vadd.f32 %v4578, %v4594
      %v4603 = vadd.f32 %v4579, %v4595
      %v4604 = vadd.f32 %v4580, %v4596
      %4605 = vrot.lane.b32.xlu0 %v4597, 126
      %v4606 = vpop.permute.xlu0 %4605
      %4607 = vrot.lane.b32.xlu0 %v4601, 126
      %v4608 = vpop.permute.xlu0 %4607
      %4609 = vrot.lane.b32.xlu0 %v4598, 126
      %v4610 = vpop.permute.xlu0 %4609
      %4611 = vrot.lane.b32.xlu0 %v4602, 126
      %v4612 = vpop.permute.xlu0 %4611
      %4613 = vrot.lane.b32.xlu0 %v4599, 126
      %v4614 = vpop.permute.xlu0 %4613
      %4615 = vrot.lane.b32.xlu0 %v4603, 126
      %v4616 = vpop.permute.xlu0 %4615
      %4617 = vrot.lane.b32.xlu0 %v4600, 126
      %v4618 = vpop.permute.xlu0 %4617
      %4619 = vrot.lane.b32.xlu0 %v4604, 126
      %v4620 = vpop.permute.xlu0 %4619
      %v4621 = vsel %vm1321, %v4614, %v4618
      %v4622 = vsel %vm1321, %v4616, %v4620
      %v4623 = vsel %vm1321, %v4610, %v4614
      %v4624 = vsel %vm1321, %v4612, %v4616
      %v4625 = vsel %vm1321, %v4606, %v4610
      %v4626 = vsel %vm1321, %v4608, %v4612
      %v4627 = vsel %vm1321, %v4618, %v4606
      %v4628 = vsel %vm1321, %v4620, %v4608
      %4629 = vrot.lane.b32.xlu0 %v4597, 2
      %v4630 = vpop.permute.xlu0 %4629
      %4631 = vrot.lane.b32.xlu0 %v4601, 2
      %v4632 = vpop.permute.xlu0 %4631
      %4633 = vrot.lane.b32.xlu0 %v4598, 2
      %v4634 = vpop.permute.xlu0 %4633
      %4635 = vrot.lane.b32.xlu0 %v4602, 2
      %v4636 = vpop.permute.xlu0 %4635
      %4637 = vrot.lane.b32.xlu0 %v4599, 2
      %v4638 = vpop.permute.xlu0 %4637
      %4639 = vrot.lane.b32.xlu0 %v4603, 2
      %v4640 = vpop.permute.xlu0 %4639
      %4641 = vrot.lane.b32.xlu0 %v4600, 2
      %v4642 = vpop.permute.xlu0 %4641
      %4643 = vrot.lane.b32.xlu0 %v4604, 2
      %v4644 = vpop.permute.xlu0 %4643
      %v4645 = vsel %vm1346, %v4638, %v4642
      %v4646 = vsel %vm1346, %v4640, %v4644
      %v4647 = vsel %vm1346, %v4634, %v4638
      %v4648 = vsel %vm1346, %v4636, %v4640
      %v4649 = vsel %vm1346, %v4630, %v4634
      %v4650 = vsel %vm1346, %v4632, %v4636
      %v4651 = vsel %vm1346, %v4642, %v4630
      %v4652 = vsel %vm1346, %v4644, %v4632
      %v4653 = vsub.f32 0.0, %v4625
      %v4654 = vsub.f32 0.0, %v4623
      %v4655 = vsub.f32 0.0, %v4621
      %v4656 = vsub.f32 0.0, %v4627
      %v4657 = vsub.f32 0.0, %v4626
      %v4658 = vsub.f32 0.0, %v4624
      %v4659 = vsub.f32 0.0, %v4622
      %v4660 = vsub.f32 0.0, %v4628
      %v4661 = vsel %vm604, %v4651, %v4653
      %v4662 = vsel %vm605, %v4649, %v4654
      %v4663 = vsel %vm606, %v4647, %v4655
      %v4664 = vsel %vm607, %v4645, %v4656
      %v4665 = vsel %vm604, %v4652, %v4657
      %v4666 = vsel %vm605, %v4650, %v4658
      %v4667 = vsel %vm606, %v4648, %v4659
      %v4668 = vsel %vm607, %v4646, %v4660
      %4669 = vset.pattern.permute.xlu0 52
      %4670 = vperm.xlu0 %4669, %v320
      %v4671 = vpop.permute.xlu0 %4670
      %4673 = vset.pattern.permute.xlu0 52
      %4674 = vperm.xlu0 %4673, %v321
      %v4675 = vpop.permute.xlu0 %4674
      %v4677 = vmul.f32 %v4671, %v4597
      %v4678 = vmul.f32 %v4671, %v4598
      %v4679 = vmul.f32 %v4671, %v4599
      %v4680 = vmul.f32 %v4671, %v4600
      %v4681 = vmul.f32 %v4675, %v4601
      %v4682 = vmul.f32 %v4675, %v4602
      %v4683 = vmul.f32 %v4675, %v4603
      %v4684 = vmul.f32 %v4675, %v4604
      %4685 = vset.pattern.permute.xlu0 52
      %4686 = vperm.xlu0 %4685, %v322
      %v4687 = vpop.permute.xlu0 %4686
      %4689 = vset.pattern.permute.xlu0 52
      %4690 = vperm.xlu0 %4689, %v323
      %v4691 = vpop.permute.xlu0 %4690
      %v4693 = vmul.f32 %v4687, %v4661
      %v4694 = vmul.f32 %v4687, %v4662
      %v4695 = vmul.f32 %v4687, %v4663
      %v4696 = vmul.f32 %v4687, %v4664
      %v4697 = vmul.f32 %v4691, %v4665
      %v4698 = vmul.f32 %v4691, %v4666
      %v4699 = vmul.f32 %v4691, %v4667
      %v4700 = vmul.f32 %v4691, %v4668
      %v4701 = vadd.f32 %v4677, %v4693
      %v4702 = vadd.f32 %v4678, %v4694
      %v4703 = vadd.f32 %v4679, %v4695
      %v4704 = vadd.f32 %v4680, %v4696
      %v4705 = vadd.f32 %v4681, %v4697
      %v4706 = vadd.f32 %v4682, %v4698
      %v4707 = vadd.f32 %v4683, %v4699
      %v4708 = vadd.f32 %v4684, %v4700
      %4709 = vrot.lane.b32.xlu0 %v4701, 127
      %v4710 = vpop.permute.xlu0 %4709
      %4711 = vrot.lane.b32.xlu0 %v4705, 127
      %v4712 = vpop.permute.xlu0 %4711
      %4713 = vrot.lane.b32.xlu0 %v4702, 127
      %v4714 = vpop.permute.xlu0 %4713
      %4715 = vrot.lane.b32.xlu0 %v4706, 127
      %v4716 = vpop.permute.xlu0 %4715
      %4717 = vrot.lane.b32.xlu0 %v4703, 127
      %v4718 = vpop.permute.xlu0 %4717
      %4719 = vrot.lane.b32.xlu0 %v4707, 127
      %v4720 = vpop.permute.xlu0 %4719
      %v4721 = vsel %vm1427, %v4714, %v4718
      %v4722 = vsel %vm1427, %v4716, %v4720
      %v4723 = vsel %vm1427, %v4710, %v4714
      %v4724 = vsel %vm1427, %v4712, %v4716
      %4725 = vrot.lane.b32.xlu0 %v4701, 1
      %v4726 = vpop.permute.xlu0 %4725
      %4727 = vrot.lane.b32.xlu0 %v4705, 1
      %v4728 = vpop.permute.xlu0 %4727
      %4729 = vrot.lane.b32.xlu0 %v4702, 1
      %v4730 = vpop.permute.xlu0 %4729
      %4731 = vrot.lane.b32.xlu0 %v4706, 1
      %v4732 = vpop.permute.xlu0 %4731
      %4733 = vrot.lane.b32.xlu0 %v4704, 1
      %v4734 = vpop.permute.xlu0 %4733
      %4735 = vrot.lane.b32.xlu0 %v4708, 1
      %v4736 = vpop.permute.xlu0 %4735
      %v4737 = vsel %vm1452, %v4726, %v4730
      %v4738 = vsel %vm1452, %v4728, %v4732
      %v4739 = vsel %vm1452, %v4734, %v4726
      %v4740 = vsel %vm1452, %v4736, %v4728
      %v4741 = vsub.f32 0.0, %v4723
      %v4742 = vsub.f32 0.0, %v4721
      %v4743 = vsub.f32 0.0, %v4724
      %v4744 = vsub.f32 0.0, %v4722
      %v4745 = vsel %vm644, %v4739, %v4741
      %v4746 = vsel %vm645, %v4737, %v4742
      %v4747 = vsel %vm644, %v4740, %v4743
      %v4748 = vsel %vm645, %v4738, %v4744
      %4749 = vset.pattern.permute.xlu0 53
      %4750 = vperm.xlu0 %4749, %v320
      %v4751 = vpop.permute.xlu0 %4750
      %4753 = vset.pattern.permute.xlu0 53
      %4754 = vperm.xlu0 %4753, %v321
      %v4755 = vpop.permute.xlu0 %4754
      %v4757 = vmul.f32 %v4751, %v4701
      %v4758 = vmul.f32 %v4751, %v4702
      %v4759 = vmul.f32 %v4755, %v4705
      %v4760 = vmul.f32 %v4755, %v4706
      %4761 = vset.pattern.permute.xlu0 53
      %4762 = vperm.xlu0 %4761, %v322
      %v4763 = vpop.permute.xlu0 %4762
      %4765 = vset.pattern.permute.xlu0 53
      %4766 = vperm.xlu0 %4765, %v323
      %v4767 = vpop.permute.xlu0 %4766
      %v4769 = vmul.f32 %v4763, %v4745
      %v4770 = vmul.f32 %v4763, %v4746
      %v4771 = vmul.f32 %v4767, %v4747
      %v4772 = vmul.f32 %v4767, %v4748
      %v4773 = vadd.f32 %v4757, %v4769
      %v4774 = vadd.f32 %v4758, %v4770
      %v4775 = vadd.f32 %v4759, %v4771
      %v4776 = vadd.f32 %v4760, %v4772
      %v4777 = vmul.f32 %v4773, %v4773
      %v4778 = vmul.f32 %v4774, %v4774
      %v4779 = vmul.f32 %v4775, %v4775
      %v4780 = vmul.f32 %v4776, %v4776
      %v4781 = vmax.f32 %v4777, %v4778
      %4782 = vmax.xlane.f32.xlu0 %v4781
      %v4783 = vpop.xlane.xlu0 %4782
      %v4784 = vmax.f32 %v4779, %v4780
      %4785 = vmax.xlane.f32.xlu0 %v4784
      %v4786 = vpop.xlane.xlu0 %4785
      %v4787 = vrcp.pop %v4783
      %v4788 = vrcp.pop %v4786
      %v4789 = vmul.f32 %v4777, %v4787
      %v4790 = vmul.f32 %v4778, %v4787
      %v4791 = vmul.f32 %v4779, %v4788
      %v4792 = vmul.f32 %v4780, %v4788
      %4793 = vst [vmem:[%s169] sm:$0xff] %v4789
      %4794 = vst [vmem:[%s169 + $0x8] sm:$0xff] %v4790
      %4795 = vst [vmem:[%s169 + $0x10] sm:$0xff] %v4791
      %4796 = vst [vmem:[%s169 + $0x18] sm:$0xff] %v4792
      %s4797 = smul.u32 2, %s13
      %p4798 = scmp.lt.s32.totalorder %s4797, 11
      %s4799 = scalar_select %p4798, %s4797, 11
      %s4800 = smul.addr %s4799, 2
      %s4801 = smul.addr %s4800, 8
      %s4802 = scalar_lea.vmem %s2, %s4801
      // Predicated region
      $region29: #{patch_quantum_generator.1} parent=27 // pred_check
        %p4803 = pneg %p83
      $region30: #{patch_quantum_generator.1} parent=27 // pred_check_branch
        %4805 = sbr.rel (%p4803) target = $region32
      $region31: #{patch_quantum_generator.1} parent=27 // pred_region
        %s4806 = smul.u32 2, %s13
      $region32: #{patch_quantum_generator.1} parent=27 // pred_fallthru
        _
    $region28: #{patch_quantum_generator.1} parent=5 // pred_fallthru
      _
    %p4807 = scmp.le.s32.totalorder 2, %s8
    // Predicated region
    $region33: #{patch_quantum_generator.1} parent=5 // pred_check
      %p4808 = pneg %p4807
    $region34: #{patch_quantum_generator.1} parent=5 // pred_check_branch
      %4810 = sbr.rel (%p4808) target = $region36
    $region35: #{patch_quantum_generator.1} parent=5 // pred_region
      %s4811 = ssub.s32 %s8, 2
      // Predicated region
      $region37: #{patch_quantum_generator.1} parent=35 // pred_check
        %p4812 = pneg %p89
      $region38: #{patch_quantum_generator.1} parent=35 // pred_check_branch
        %4814 = sbr.rel (%p4812) target = $region40
      $region39: #{patch_quantum_generator.1} parent=35 // pred_region
        %s4815 = smul.u32 2, %s14
        %p4816 = scmp.lt.s32.totalorder %s4815, 11
        %s4817 = scalar_select %p4816, %s4815, 11
        %s4818 = smul.addr %s4817, 2
        %s4819 = smul.addr %s4818, 8
        %s4820 = scalar_lea.vmem %s2, %s4819
      $region40: #{patch_quantum_generator.1} parent=35 // pred_fallthru
        _
    $region36: #{patch_quantum_generator.1} parent=5 // pred_fallthru
      _
  $region6: #{patch_quantum_generator.1} parent=0 // loop_footer
    %s12 = sadd.s32 1, %s8
  $region7: #{patch_quantum_generator.1} parent=0 // loop_footer_branch
    %7 = sbr.rel target = $region3
  $region8: #{patch_quantum_generator.1} parent=0 // loop_exit
    _

</llo_original>
